<compile_context>
chip_gen: v6e
topology: v6e:2x2x1
jax: 0.10.0
libtpu: 0.0.40
codegen_flags: <defaults>
</compile_context>

<pallas_src>
import math
import jax
import jax.numpy as jnp
from jax.experimental import pallas as pl
from jax.experimental.pallas import tpu as pltpu

EMBED_LEN = 300
MAX_WORDS = 25
IN_DIM = MAX_WORDS * EMBED_LEN          # 7500
K_PAD = 7552                            # 59 * 128 (lane-aligned contraction dim)
H1, H2, H3, OUT = 256, 128, 64, 4
OUT_PAD = 128                           # lane-dense output block


def _round_up(x, m):
    return ((x + m - 1) // m) * m


def _mlp_kernel(x_ref, w1_ref, b1_ref, w2_ref, b2_ref,
                w3_ref, b3_ref, w4_ref, b4_ref, o_ref):
    # x tile: (TM, K_PAD) bf16; weights bf16 (VMEM-resident); biases f32.
    # All matmuls accumulate in f32 on the MXU; activations recast to bf16.
    h = jnp.dot(x_ref[...], w1_ref[...],
                preferred_element_type=jnp.float32) + b1_ref[...]
    h = jnp.maximum(h, 0.0).astype(jnp.bfloat16)
    h = jnp.dot(h, w2_ref[...],
                preferred_element_type=jnp.float32) + b2_ref[...]
    h = jnp.maximum(h, 0.0).astype(jnp.bfloat16)
    h = jnp.dot(h, w3_ref[...],
                preferred_element_type=jnp.float32) + b3_ref[...]
    h = jnp.maximum(h, 0.0).astype(jnp.bfloat16)
    o = jnp.dot(h, w4_ref[...],
                preferred_element_type=jnp.float32) + b4_ref[...]
    o_ref[...] = o  # (TM, OUT_PAD) f32, lane-dense store


def prepare_kernel_params(params):
    """One-time conversion of f32 [in,out] params to padded bf16 kernel params."""
    w1 = jnp.pad(params["w1"], ((0, K_PAD - IN_DIM), (0, 0))).astype(jnp.bfloat16)
    w2 = params["w2"].astype(jnp.bfloat16)
    w3 = params["w3"].astype(jnp.bfloat16)
    w4 = jnp.pad(params["w4"], ((0, 0), (0, OUT_PAD - OUT))).astype(jnp.bfloat16)
    b4 = jnp.pad(params["b4"], ((0, 0), (0, OUT_PAD - OUT)))
    return {
        "w1": w1, "b1": params["b1"],
        "w2": w2, "b2": params["b2"],
        "w3": w3, "b3": params["b3"],
        "w4": w4, "b4": b4,
    }


def embedding_classifier_forward(x, kparams, *, tm=512):
    """x: [B, 7500] float32; kparams: output of prepare_kernel_params()."""
    B = x.shape[0]
    # Batch tile: multiple of 8 sublanes, capped at `tm` (sized for 48 MiB VMEM).
    TM = max(8, min(tm, _round_up(B, 8)))
    B_pad = _round_up(B, TM)

    xp = jnp.pad(x, ((0, B_pad - B), (0, K_PAD - IN_DIM))).astype(jnp.bfloat16)

    const = lambda i: (0, 0)          # weights / biases: resident across the grid
    out = pl.pallas_call(
        _mlp_kernel,
        out_shape=jax.ShapeDtypeStruct((B_pad, OUT_PAD), jnp.float32),
        grid=(B_pad // TM,),
        in_specs=[
            pl.BlockSpec((TM, K_PAD), lambda i: (i, 0)),   # streamed x tiles
            pl.BlockSpec((K_PAD, H1), const),
            pl.BlockSpec((1, H1), const),
            pl.BlockSpec((H1, H2), const),
            pl.BlockSpec((1, H2), const),
            pl.BlockSpec((H2, H3), const),
            pl.BlockSpec((1, H3), const),
            pl.BlockSpec((H3, OUT_PAD), const),
            pl.BlockSpec((1, OUT_PAD), const),
        ],
        out_specs=pl.BlockSpec((TM, OUT_PAD), lambda i: (i, 0)),
        compiler_params=pltpu.CompilerParams(
            dimension_semantics=("parallel",),
            vmem_limit_bytes=48 << 20,
        ),
    )(xp,
      kparams["w1"], kparams["b1"],
      kparams["w2"], kparams["b2"],
      kparams["w3"], kparams["b3"],
      kparams["w4"], kparams["b4"])
    return out[:B, :OUT]


def init_params(key):
    """Deterministic init mimicking torch.nn.Linear default: U(-1/sqrt(in), 1/sqrt(in))."""
    dims = [(IN_DIM, H1), (H1, H2), (H2, H3), (H3, OUT)]
    params = {}
    keys = jax.random.split(key, 2 * len(dims))
    for i, (din, dout) in enumerate(dims):
        bound = 1.0 / math.sqrt(din)
        # Stored already transposed: [in, out] (PyTorch keeps [out, in]).
        params[f"w{i+1}"] = jax.random.uniform(
            keys[2 * i], (din, dout), jnp.float32, -bound, bound)
        params[f"b{i+1}"] = jax.random.uniform(
            keys[2 * i + 1], (1, dout), jnp.float32, -bound, bound)
    return params


def reference_forward_f32(x, params):
    h = jnp.maximum(x @ params["w1"] + params["b1"], 0.0)
    h = jnp.maximum(h @ params["w2"] + params["b2"], 0.0)
    h = jnp.maximum(h @ params["w3"] + params["b3"], 0.0)
    return h @ params["w4"] + params["b4"]


def reference_forward_matched(x, kparams):
    """Pure-JAX reference using the same bf16-input / f32-accumulate precision."""
    xp = jnp.pad(x, ((0, 0), (0, K_PAD - IN_DIM))).astype(jnp.bfloat16)
    h = jnp.dot(xp, kparams["w1"], preferred_element_type=jnp.float32) + kparams["b1"]
    h = jnp.maximum(h, 0.0).astype(jnp.bfloat16)
    h = jnp.dot(h, kparams["w2"], preferred_element_type=jnp.float32) + kparams["b2"]
    h = jnp.maximum(h, 0.0).astype(jnp.bfloat16)
    h = jnp.dot(h, kparams["w3"], preferred_element_type=jnp.float32) + kparams["b3"]
    h = jnp.maximum(h, 0.0).astype(jnp.bfloat16)
    o = jnp.dot(h, kparams["w4"], preferred_element_type=jnp.float32) + kparams["b4"]
    return o[:, :OUT]


if __name__ == "__main__":
    key = jax.random.PRNGKey(0)
    pkey, xkey, xkey2 = jax.random.split(key, 3)

    params = init_params(pkey)
    kparams = prepare_kernel_params(params)

    # Small batch, multiple of 8 sublanes.
    B = 8
    x = jax.random.normal(xkey, (B, IN_DIM), dtype=jnp.float32)

    out = embedding_classifier_forward(x, kparams)
    out = jax.block_until_ready(out)
    assert out.shape == (B, OUT), out.shape

    # Tight check vs. a precision-matched pure-JAX reference.
    ref_m = reference_forward_matched(x, kparams)
    assert jnp.allclose(out, ref_m, atol=2e-3, rtol=2e-3), "mismatch vs matched-precision reference"

    # Loose check vs. the full-f32 reference (bf16 weights/inputs -> ~1e-2 error).
    ref_f32 = reference_forward_f32(x, params)
    assert jnp.allclose(out, ref_f32, atol=1e-1, rtol=1e-1), "mismatch vs f32 reference"

    # Second call with a ragged batch to exercise batch padding / slicing.
    B2 = 20
    x2 = jax.random.normal(xkey2, (B2, IN_DIM), dtype=jnp.float32)
    out2 = jax.block_until_ready(embedding_classifier_forward(x2, kparams))
    ref2 = reference_forward_matched(x2, kparams)
    assert out2.shape == (B2, OUT), out2.shape
    assert jnp.allclose(out2, ref2, atol=2e-3, rtol=2e-3), "mismatch on ragged batch"

    print("KERNEL_OK")
</pallas_src>

<mosaic_0001>
module attributes {stable_mosaic.version = 11 : i64} {
  func.func @_mlp_kernel(%arg0: i32, %arg1: memref<8x7552xbf16, #tpu.memory_space<vmem>>, %arg2: memref<7552x256xbf16, #tpu.memory_space<vmem>>, %arg3: memref<1x256xf32, #tpu.memory_space<vmem>>, %arg4: memref<256x128xbf16, #tpu.memory_space<vmem>>, %arg5: memref<1x128xf32, #tpu.memory_space<vmem>>, %arg6: memref<128x64xbf16, #tpu.memory_space<vmem>>, %arg7: memref<1x64xf32, #tpu.memory_space<vmem>>, %arg8: memref<64x128xbf16, #tpu.memory_space<vmem>>, %arg9: memref<1x128xf32, #tpu.memory_space<vmem>>, %arg10: memref<8x128xf32, #tpu.memory_space<vmem>>) attributes {dimension_semantics = [#tpu.dimension_semantics<parallel>], iteration_bounds = array<i64: 1>, scalar_prefetch = 0 : i64, scratch_operands = 0 : i64, tpu.core_type = #tpu.core_type<tc>, window_params = [{transform_indices = @transform_0, window_bounds = array<i64: 8, 7552>}, {pipeline_mode = #tpu.pipeline_mode<synchronous>, transform_indices = @transform_1, window_bounds = array<i64: 7552, 256>}, {pipeline_mode = #tpu.pipeline_mode<synchronous>, transform_indices = @transform_2, window_bounds = array<i64: 1, 256>}, {pipeline_mode = #tpu.pipeline_mode<synchronous>, transform_indices = @transform_3, window_bounds = array<i64: 256, 128>}, {pipeline_mode = #tpu.pipeline_mode<synchronous>, transform_indices = @transform_4, window_bounds = array<i64: 1, 128>}, {pipeline_mode = #tpu.pipeline_mode<synchronous>, transform_indices = @transform_5, window_bounds = array<i64: 128, 64>}, {pipeline_mode = #tpu.pipeline_mode<synchronous>, transform_indices = @transform_6, window_bounds = array<i64: 1, 64>}, {pipeline_mode = #tpu.pipeline_mode<synchronous>, transform_indices = @transform_7, window_bounds = array<i64: 64, 128>}, {pipeline_mode = #tpu.pipeline_mode<synchronous>, transform_indices = @transform_8, window_bounds = array<i64: 1, 128>}, {transform_indices = @transform_9, window_bounds = array<i64: 8, 128>}]} {
    %c0 = arith.constant 0 : index
    %c0_0 = arith.constant 0 : index
    %0 = vector.load %arg1[%c0, %c0_0] : memref<8x7552xbf16, #tpu.memory_space<vmem>>, vector<8x7552xbf16>
    %c0_1 = arith.constant 0 : index
    %c0_2 = arith.constant 0 : index
    %1 = vector.load %arg2[%c0_1, %c0_2] : memref<7552x256xbf16, #tpu.memory_space<vmem>>, vector<7552x256xbf16>
    %cst = arith.constant dense<0.000000e+00> : vector<8x256xf32>
    %2 = tpu.matmul %0, %1, %cst {dimension_numbers = #tpu.dot_dimension_numbers<[1], [0], [0], [1], [0, 0, 1, 1], [], []>} : vector<8x7552xbf16>, vector<7552x256xbf16>, vector<8x256xf32> -> vector<8x256xf32>
    %c0_3 = arith.constant 0 : index
    %c0_4 = arith.constant 0 : index
    %3 = vector.load %arg3[%c0_3, %c0_4] : memref<1x256xf32, #tpu.memory_space<vmem>>, vector<1x256xf32>
    %4 = vector.broadcast %3 : vector<1x256xf32> to vector<8x256xf32>
    %5 = arith.addf %2, %4 : vector<8x256xf32>
    %cst_5 = arith.constant 0.000000e+00 : f32
    %6 = vector.broadcast %cst_5 : f32 to vector<8x256xf32>
    %7 = arith.maximumf %5, %6 : vector<8x256xf32>
    %8 = arith.truncf %7 : vector<8x256xf32> to vector<8x256xbf16>
    %c0_6 = arith.constant 0 : index
    %c0_7 = arith.constant 0 : index
    %9 = vector.load %arg4[%c0_6, %c0_7] : memref<256x128xbf16, #tpu.memory_space<vmem>>, vector<256x128xbf16>
    %cst_8 = arith.constant dense<0.000000e+00> : vector<8x128xf32>
    %10 = tpu.matmul %8, %9, %cst_8 {dimension_numbers = #tpu.dot_dimension_numbers<[1], [0], [0], [1], [0, 0, 1, 1], [], []>} : vector<8x256xbf16>, vector<256x128xbf16>, vector<8x128xf32> -> vector<8x128xf32>
    %c0_9 = arith.constant 0 : index
    %c0_10 = arith.constant 0 : index
    %11 = vector.load %arg5[%c0_9, %c0_10] : memref<1x128xf32, #tpu.memory_space<vmem>>, vector<1x128xf32>
    %12 = vector.broadcast %11 : vector<1x128xf32> to vector<8x128xf32>
    %13 = arith.addf %10, %12 : vector<8x128xf32>
    %cst_11 = arith.constant 0.000000e+00 : f32
    %14 = vector.broadcast %cst_11 : f32 to vector<8x128xf32>
    %15 = arith.maximumf %13, %14 : vector<8x128xf32>
    %16 = arith.truncf %15 : vector<8x128xf32> to vector<8x128xbf16>
    %c0_12 = arith.constant 0 : index
    %c0_13 = arith.constant 0 : index
    %17 = vector.load %arg6[%c0_12, %c0_13] : memref<128x64xbf16, #tpu.memory_space<vmem>>, vector<128x64xbf16>
    %cst_14 = arith.constant dense<0.000000e+00> : vector<8x64xf32>
    %18 = tpu.matmul %16, %17, %cst_14 {dimension_numbers = #tpu.dot_dimension_numbers<[1], [0], [0], [1], [0, 0, 1, 1], [], []>} : vector<8x128xbf16>, vector<128x64xbf16>, vector<8x64xf32> -> vector<8x64xf32>
    %c0_15 = arith.constant 0 : index
    %c0_16 = arith.constant 0 : index
    %19 = vector.load %arg7[%c0_15, %c0_16] : memref<1x64xf32, #tpu.memory_space<vmem>>, vector<1x64xf32>
    %20 = vector.broadcast %19 : vector<1x64xf32> to vector<8x64xf32>
    %21 = arith.addf %18, %20 : vector<8x64xf32>
    %cst_17 = arith.constant 0.000000e+00 : f32
    %22 = vector.broadcast %cst_17 : f32 to vector<8x64xf32>
    %23 = arith.maximumf %21, %22 : vector<8x64xf32>
    %24 = arith.truncf %23 : vector<8x64xf32> to vector<8x64xbf16>
    %c0_18 = arith.constant 0 : index
    %c0_19 = arith.constant 0 : index
    %25 = vector.load %arg8[%c0_18, %c0_19] : memref<64x128xbf16, #tpu.memory_space<vmem>>, vector<64x128xbf16>
    %cst_20 = arith.constant dense<0.000000e+00> : vector<8x128xf32>
    %26 = tpu.matmul %24, %25, %cst_20 {dimension_numbers = #tpu.dot_dimension_numbers<[1], [0], [0], [1], [0, 0, 1, 1], [], []>} : vector<8x64xbf16>, vector<64x128xbf16>, vector<8x128xf32> -> vector<8x128xf32>
    %c0_21 = arith.constant 0 : index
    %c0_22 = arith.constant 0 : index
    %27 = vector.load %arg9[%c0_21, %c0_22] : memref<1x128xf32, #tpu.memory_space<vmem>>, vector<1x128xf32>
    %28 = vector.broadcast %27 : vector<1x128xf32> to vector<8x128xf32>
    %29 = arith.addf %26, %28 : vector<8x128xf32>
    %c0_23 = arith.constant 0 : index
    %c0_24 = arith.constant 0 : index
    %30 = vector.load %arg10[%c0_23, %c0_24] : memref<8x128xf32, #tpu.memory_space<vmem>>, vector<8x128xf32>
    tpu.vector_store %arg10[%c0_23, %c0_24], %29 {strides = array<i32>} : memref<8x128xf32, #tpu.memory_space<vmem>>, vector<8x128xf32>,
    return
  }
  func.func @transform_0(%arg0: i32) -> (i32, i32) {
    %c0_i32 = arith.constant 0 : i32
    %c0_i32_0 = arith.constant 0 : i32
    return %arg0, %c0_i32 : i32, i32
  }
  func.func @transform_1(%arg0: i32) -> (i32, i32) {
    %c0_i32 = arith.constant 0 : i32
    %c0_i32_0 = arith.constant 0 : i32
    %c0_i32_1 = arith.constant 0 : i32
    return %c0_i32, %c0_i32_0 : i32, i32
  }
  func.func @transform_2(%arg0: i32) -> (i32, i32) {
    %c0_i32 = arith.constant 0 : i32
    %c0_i32_0 = arith.constant 0 : i32
    %c0_i32_1 = arith.constant 0 : i32
    return %c0_i32, %c0_i32_0 : i32, i32
  }
  func.func @transform_3(%arg0: i32) -> (i32, i32) {
    %c0_i32 = arith.constant 0 : i32
    %c0_i32_0 = arith.constant 0 : i32
    %c0_i32_1 = arith.constant 0 : i32
    return %c0_i32, %c0_i32_0 : i32, i32
  }
  func.func @transform_4(%arg0: i32) -> (i32, i32) {
    %c0_i32 = arith.constant 0 : i32
    %c0_i32_0 = arith.constant 0 : i32
    %c0_i32_1 = arith.constant 0 : i32
    return %c0_i32, %c0_i32_0 : i32, i32
  }
  func.func @transform_5(%arg0: i32) -> (i32, i32) {
    %c0_i32 = arith.constant 0 : i32
    %c0_i32_0 = arith.constant 0 : i32
    %c0_i32_1 = arith.constant 0 : i32
    return %c0_i32, %c0_i32_0 : i32, i32
  }
  func.func @transform_6(%arg0: i32) -> (i32, i32) {
    %c0_i32 = arith.constant 0 : i32
    %c0_i32_0 = arith.constant 0 : i32
    %c0_i32_1 = arith.constant 0 : i32
    return %c0_i32, %c0_i32_0 : i32, i32
  }
  func.func @transform_7(%arg0: i32) -> (i32, i32) {
    %c0_i32 = arith.constant 0 : i32
    %c0_i32_0 = arith.constant 0 : i32
    %c0_i32_1 = arith.constant 0 : i32
    return %c0_i32, %c0_i32_0 : i32, i32
  }
  func.func @transform_8(%arg0: i32) -> (i32, i32) {
    %c0_i32 = arith.constant 0 : i32
    %c0_i32_0 = arith.constant 0 : i32
    %c0_i32_1 = arith.constant 0 : i32
    return %c0_i32, %c0_i32_0 : i32, i32
  }
  func.func @transform_9(%arg0: i32) -> (i32, i32) {
    %c0_i32 = arith.constant 0 : i32
    %c0_i32_0 = arith.constant 0 : i32
    return %arg0, %c0_i32 : i32, i32
  }
}

</mosaic_0001>

<llo_original>
// kernel: tpu_custom_call.1
$region0: #{tpu_custom_call.1}
  #allocation0 [shape = 'u32[]', space=smem, size = 0x4, offset = 0x4, fixed_abs, tag = 'smem constant byte address 0x4 - core index']
  #allocation1 [shape = 'u32[144,128]{1,0:T(1,128)}', space=vmem, size = 0x12000, scoped, tag = 'internal scratch']
  %s0 = inlined_call_operand.hbm [shape: bf16[8,7552], index: 0, kind: input, shape index: {}]
  %s1 = inlined_call_operand.hbm [shape: bf16[7552,256], index: 1, kind: input, shape index: {}]
  %s2 = inlined_call_operand.hbm [shape: f32[1,256], index: 2, kind: input, shape index: {}]
  %s3 = inlined_call_operand.hbm [shape: bf16[256,128], index: 3, kind: input, shape index: {}]
  %s4 = inlined_call_operand.hbm [shape: f32[1,128], index: 4, kind: input, shape index: {}]
  %s5 = inlined_call_operand.vmem [shape: bf16[128,64], index: 5, kind: input, shape index: {}]
  %s6 = inlined_call_operand.hbm [shape: f32[1,64], index: 6, kind: input, shape index: {}]
  %s7 = inlined_call_operand.hbm [shape: bf16[64,128], index: 7, kind: input, shape index: {}]
  %s8 = inlined_call_operand.hbm [shape: f32[1,128], index: 8, kind: input, shape index: {}]
  %s9 = inlined_call_operand.hbm [shape: f32[8,128], index: 9, kind: output, shape index: {}]
  %s10 = sld [smem:[#allocation0]]
  $region78: #{tpu_custom_call.1} parent=0
    _
  %s12 = ssub.s32 1, %s10
  %s13 = scalar_select 0, %s12, %s10
  $region1: #{tpu_custom_call.1} parent=0
    #allocation2 [shape = 'u8[120832]{0}', space=vmem, size = 0x1d800, scoped, tag = 'input window, operand 0, single buffered']
    #allocation3 [shape = 's32[1]{0}', space=sflag, size = 0x4, scoped, tag = 'scoped memory for tpu_custom_call.1']
    #allocation4 [shape = 's32[1]{0}', space=sflag, size = 0x4, scoped, tag = 'scoped memory for tpu_custom_call.1']
    #allocation5 [shape = 'u8[3866624]{0}', space=vmem, size = 0x3b0000, scoped, tag = 'input window, operand 1, single buffered']
    #allocation6 [shape = 's32[1]{0}', space=sflag, size = 0x4, scoped, tag = 'scoped memory for tpu_custom_call.1']
    #allocation7 [shape = 'u8[1024]{0}', space=vmem, size = 0x400, scoped, tag = 'input window, operand 2, single buffered']
    #allocation8 [shape = 'u8[65536]{0}', space=vmem, size = 0x10000, scoped, tag = 'input window, operand 3, single buffered']
    #allocation9 [shape = 's32[1]{0}', space=sflag, size = 0x4, scoped, tag = 'scoped memory for tpu_custom_call.1']
    #allocation10 [shape = 'u8[512]{0}', space=vmem, size = 0x400, scoped, tag = 'input window, operand 4, single buffered']
    #allocation11 [shape = 'u8[512]{0}', space=vmem, size = 0x400, scoped, tag = 'input window, operand 6, single buffered']
    #allocation12 [shape = 's32[1]{0}', space=sflag, size = 0x4, scoped, tag = 'scoped memory for tpu_custom_call.1']
    #allocation13 [shape = 'u8[16384]{0}', space=vmem, size = 0x4000, scoped, tag = 'input window, operand 7, single buffered']
    #allocation14 [shape = 'u8[512]{0}', space=vmem, size = 0x400, scoped, tag = 'input window, operand 8, single buffered']
    #allocation15 [shape = 's32[1]{0}', space=sflag, size = 0x4, scoped, tag = 'scoped memory for tpu_custom_call.1']
    #allocation16 [shape = 'u8[4096]{0}', space=vmem, size = 0x1000, scoped, tag = 'output window, operand 0, single buffered']
    %14 = vsyncpa [#allocation3], 0
    %15 = vsyncpa [#allocation6], 0
    %16 = vsyncpa [#allocation9], 0
    %17 = vsyncpa [#allocation12], 0
    %18 = vsyncpa [#allocation15], 0
    %19 = vsyncpa [#allocation4], 0
    // Predicated region
    $region2: #{tpu_custom_call.1} parent=1 // pred_check
      _
    $region3: #{tpu_custom_call.1} parent=1 // pred_check_branch
      %21 = sbr.rel (0) target = $region5
    $region4: #{tpu_custom_call.1} parent=1 // pred_region
      %s23 = ssub.s32 3776, 3776
      %24 = vsyncadd [#allocation3], %s23
      %s26 = sshll.u32 [#allocation2], 4
      %s27 = int_to_ptr.vmem [resolvable:$true] %s26
      %29 = dma.hbm_to_vmem [thread:$0]  %s0, 3776, %s27, [#allocation3]
    $region5: #{tpu_custom_call.1} parent=1 // pred_fallthru
      _
    // Predicated region
    $region6: #{tpu_custom_call.1} parent=1 // pred_check
      _
    $region7: #{tpu_custom_call.1} parent=1 // pred_check_branch
      %31 = sbr.rel (0) target = $region9
    $region8: #{tpu_custom_call.1} parent=1 // pred_region
      %s33 = ssub.s32 120832, 120832
      %34 = vsyncadd [#allocation6], %s33
      %s35 = sshll.u32 [#allocation5], 4
      %s36 = int_to_ptr.vmem [resolvable:$true] %s35
      %41 = dma.hbm_to_vmem [thread:$0]  %s1, 120832, %s36, [#allocation6], 128, 128, 8
    $region9: #{tpu_custom_call.1} parent=1 // pred_fallthru
      _
    // Predicated region
    $region10: #{tpu_custom_call.1} parent=1 // pred_check
      _
    $region11: #{tpu_custom_call.1} parent=1 // pred_check_branch
      %43 = sbr.rel (0) target = $region13
    $region12: #{tpu_custom_call.1} parent=1 // pred_region
      %s45 = ssub.s32 32, 32
      %46 = vsyncadd [#allocation6], %s45
      %s48 = sshll.u32 [#allocation7], 4
      %s49 = int_to_ptr.vmem [resolvable:$true] %s48
      %51 = dma.hbm_to_vmem [thread:$0]  %s2, 32, %s49, [#allocation6]
    $region13: #{tpu_custom_call.1} parent=1 // pred_fallthru
      _
    // Predicated region
    $region14: #{tpu_custom_call.1} parent=1 // pred_check
      _
    $region15: #{tpu_custom_call.1} parent=1 // pred_check_branch
      %53 = sbr.rel (0) target = $region17
    $region16: #{tpu_custom_call.1} parent=1 // pred_region
      %s55 = ssub.s32 2048, 2048
      %56 = vsyncadd [#allocation9], %s55
      %s57 = sshll.u32 [#allocation8], 4
      %s58 = int_to_ptr.vmem [resolvable:$true] %s57
      %63 = dma.hbm_to_vmem [thread:$0]  %s3, 2048, %s58, [#allocation9], 64, 64, 4
    $region17: #{tpu_custom_call.1} parent=1 // pred_fallthru
      _
    // Predicated region
    $region18: #{tpu_custom_call.1} parent=1 // pred_check
      _
    $region19: #{tpu_custom_call.1} parent=1 // pred_check_branch
      %65 = sbr.rel (0) target = $region21
    $region20: #{tpu_custom_call.1} parent=1 // pred_region
      %s67 = ssub.s32 16, 16
      %68 = vsyncadd [#allocation9], %s67
      %s70 = sshll.u32 [#allocation10], 4
      %s71 = int_to_ptr.vmem [resolvable:$true] %s70
      %73 = dma.hbm_to_vmem [thread:$0]  %s4, 16, %s71, [#allocation9]
    $region21: #{tpu_custom_call.1} parent=1 // pred_fallthru
      _
    // Predicated region
    $region22: #{tpu_custom_call.1} parent=1 // pred_check
      _
    $region23: #{tpu_custom_call.1} parent=1 // pred_check_branch
      %75 = sbr.rel (0) target = $region25
    $region24: #{tpu_custom_call.1} parent=1 // pred_region
      _
    $region25: #{tpu_custom_call.1} parent=1 // pred_fallthru
      _
    // Predicated region
    $region26: #{tpu_custom_call.1} parent=1 // pred_check
      _
    $region27: #{tpu_custom_call.1} parent=1 // pred_check_branch
      %77 = sbr.rel (0) target = $region29
    $region28: #{tpu_custom_call.1} parent=1 // pred_region
      %s79 = ssub.s32 16, 16
      %80 = vsyncadd [#allocation12], %s79
      %s82 = sshll.u32 [#allocation11], 4
      %s83 = int_to_ptr.vmem [resolvable:$true] %s82
      %85 = dma.hbm_to_vmem [thread:$0]  %s6, 16, %s83, [#allocation12]
    $region29: #{tpu_custom_call.1} parent=1 // pred_fallthru
      _
    // Predicated region
    $region30: #{tpu_custom_call.1} parent=1 // pred_check
      _
    $region31: #{tpu_custom_call.1} parent=1 // pred_check_branch
      %87 = sbr.rel (0) target = $region33
    $region32: #{tpu_custom_call.1} parent=1 // pred_region
      %s89 = ssub.s32 512, 512
      %90 = vsyncadd [#allocation12], %s89
      %s91 = sshll.u32 [#allocation13], 4
      %s92 = int_to_ptr.vmem [resolvable:$true] %s91
      %97 = dma.hbm_to_vmem [thread:$0]  %s7, 512, %s92, [#allocation12], 64, 64, 4
    $region33: #{tpu_custom_call.1} parent=1 // pred_fallthru
      _
    // Predicated region
    $region34: #{tpu_custom_call.1} parent=1 // pred_check
      _
    $region35: #{tpu_custom_call.1} parent=1 // pred_check_branch
      %99 = sbr.rel (0) target = $region37
    $region36: #{tpu_custom_call.1} parent=1 // pred_region
      %s101 = ssub.s32 16, 16
      %102 = vsyncadd [#allocation15], %s101
      %s104 = sshll.u32 [#allocation14], 4
      %s105 = int_to_ptr.vmem [resolvable:$true] %s104
      %107 = dma.hbm_to_vmem [thread:$0]  %s8, 16, %s105, [#allocation15]
    $region37: #{tpu_custom_call.1} parent=1 // pred_fallthru
      _
    // Predicated region
    $region38: #{tpu_custom_call.1} parent=1 // pred_check
      _
    $region39: #{tpu_custom_call.1} parent=1 // pred_check_branch
      %109 = sbr.rel (0) target = $region41
    $region40: #{tpu_custom_call.1} parent=1 // pred_region
      %110 = dma.done [#allocation3], 3776
    $region41: #{tpu_custom_call.1} parent=1 // pred_fallthru
      _
    // Predicated region
    $region42: #{tpu_custom_call.1} parent=1 // pred_check
      _
    $region43: #{tpu_custom_call.1} parent=1 // pred_check_branch
      %112 = sbr.rel (0) target = $region45
    $region44: #{tpu_custom_call.1} parent=1 // pred_region
      %113 = dma.done [#allocation6], 120832
    $region45: #{tpu_custom_call.1} parent=1 // pred_fallthru
      _
    // Predicated region
    $region46: #{tpu_custom_call.1} parent=1 // pred_check
      _
    $region47: #{tpu_custom_call.1} parent=1 // pred_check_branch
      %115 = sbr.rel (0) target = $region49
    $region48: #{tpu_custom_call.1} parent=1 // pred_region
      %116 = dma.done [#allocation6], 32
    $region49: #{tpu_custom_call.1} parent=1 // pred_fallthru
      _
    // Predicated region
    $region50: #{tpu_custom_call.1} parent=1 // pred_check
      _
    $region51: #{tpu_custom_call.1} parent=1 // pred_check_branch
      %118 = sbr.rel (0) target = $region53
    $region52: #{tpu_custom_call.1} parent=1 // pred_region
      %119 = dma.done [#allocation9], 2048
    $region53: #{tpu_custom_call.1} parent=1 // pred_fallthru
      _
    // Predicated region
    $region54: #{tpu_custom_call.1} parent=1 // pred_check
      _
    $region55: #{tpu_custom_call.1} parent=1 // pred_check_branch
      %121 = sbr.rel (0) target = $region57
    $region56: #{tpu_custom_call.1} parent=1 // pred_region
      %122 = dma.done [#allocation9], 16
    $region57: #{tpu_custom_call.1} parent=1 // pred_fallthru
      _
    // Predicated region
    $region58: #{tpu_custom_call.1} parent=1 // pred_check
      _
    $region59: #{tpu_custom_call.1} parent=1 // pred_check_branch
      %124 = sbr.rel (0) target = $region61
    $region60: #{tpu_custom_call.1} parent=1 // pred_region
      %125 = dma.done [#allocation12], 16
    $region61: #{tpu_custom_call.1} parent=1 // pred_fallthru
      _
    // Predicated region
    $region62: #{tpu_custom_call.1} parent=1 // pred_check
      _
    $region63: #{tpu_custom_call.1} parent=1 // pred_check_branch
      %127 = sbr.rel (0) target = $region65
    $region64: #{tpu_custom_call.1} parent=1 // pred_region
      %128 = dma.done [#allocation12], 512
    $region65: #{tpu_custom_call.1} parent=1 // pred_fallthru
      _
    // Predicated region
    $region66: #{tpu_custom_call.1} parent=1 // pred_check
      _
    $region67: #{tpu_custom_call.1} parent=1 // pred_check_branch
      %130 = sbr.rel (0) target = $region69
    $region68: #{tpu_custom_call.1} parent=1 // pred_region
      %131 = dma.done [#allocation15], 16
    $region69: #{tpu_custom_call.1} parent=1 // pred_fallthru
      _
    %v133 = vld [vmem:[#allocation2] sm:$0xff]
    %v134 = vld [vmem:[#allocation2 + $0x8] sm:$0xff]
    %v135 = vld [vmem:[#allocation2 + $0x10] sm:$0xff]
    %v136 = vld [vmem:[#allocation2 + $0x18] sm:$0xff]
    %v137 = vld [vmem:[#allocation2 + $0x20] sm:$0xff]
    %v138 = vld [vmem:[#allocation2 + $0x28] sm:$0xff]
    %v139 = vld [vmem:[#allocation2 + $0x30] sm:$0xff]
    %v140 = vld [vmem:[#allocation2 + $0x38] sm:$0xff]
    %v141 = vld [vmem:[#allocation2 + $0x40] sm:$0xff]
    %v142 = vld [vmem:[#allocation2 + $0x48] sm:$0xff]
    %v143 = vld [vmem:[#allocation2 + $0x50] sm:$0xff]
    %v144 = vld [vmem:[#allocation2 + $0x58] sm:$0xff]
    %v145 = vld [vmem:[#allocation2 + $0x60] sm:$0xff]
    %v146 = vld [vmem:[#allocation2 + $0x68] sm:$0xff]
    %v147 = vld [vmem:[#allocation2 + $0x70] sm:$0xff]
    %v148 = vld [vmem:[#allocation2 + $0x78] sm:$0xff]
    %v149 = vld [vmem:[#allocation2 + $0x80] sm:$0xff]
    %v150 = vld [vmem:[#allocation2 + $0x88] sm:$0xff]
    %v151 = vld [vmem:[#allocation2 + $0x90] sm:$0xff]
    %v152 = vld [vmem:[#allocation2 + $0x98] sm:$0xff]
    %v153 = vld [vmem:[#allocation2 + $0xa0] sm:$0xff]
    %v154 = vld [vmem:[#allocation2 + $0xa8] sm:$0xff]
    %v155 = vld [vmem:[#allocation2 + $0xb0] sm:$0xff]
    %v156 = vld [vmem:[#allocation2 + $0xb8] sm:$0xff]
    %v157 = vld [vmem:[#allocation2 + $0xc0] sm:$0xff]
    %v158 = vld [vmem:[#allocation2 + $0xc8] sm:$0xff]
    %v159 = vld [vmem:[#allocation2 + $0xd0] sm:$0xff]
    %v160 = vld [vmem:[#allocation2 + $0xd8] sm:$0xff]
    %v161 = vld [vmem:[#allocation2 + $0xe0] sm:$0xff]
    %v162 = vld [vmem:[#allocation2 + $0xe8] sm:$0xf]
    %v163 = vld [vmem:[#allocation5] sm:$0xff]
    %v164 = vld [vmem:[#allocation5 + $0x8] sm:$0xff]
    %v165 = vld [vmem:[#allocation5 + $0x10] sm:$0xff]
    %v166 = vld [vmem:[#allocation5 + $0x18] sm:$0xff]
    %v167 = vld [vmem:[#allocation5 + $0x20] sm:$0xff]
    %v168 = vld [vmem:[#allocation5 + $0x28] sm:$0xff]
    %v169 = vld [vmem:[#allocation5 + $0x30] sm:$0xff]
    %v170 = vld [vmem:[#allocation5 + $0x38] sm:$0xff]
    %v171 = vld [vmem:[#allocation5 + $0x40] sm:$0xff]
    %v172 = vld [vmem:[#allocation5 + $0x48] sm:$0xff]
    %v173 = vld [vmem:[#allocation5 + $0x50] sm:$0xff]
    %v174 = vld [vmem:[#allocation5 + $0x58] sm:$0xff]
    %v175 = vld [vmem:[#allocation5 + $0x60] sm:$0xff]
    %v176 = vld [vmem:[#allocation5 + $0x68] sm:$0xff]
    %v177 = vld [vmem:[#allocation5 + $0x70] sm:$0xff]
    %v178 = vld [vmem:[#allocation5 + $0x78] sm:$0xff]
    %v179 = vld [vmem:[#allocation5 + $0x80] sm:$0xff]
    %v180 = vld [vmem:[#allocation5 + $0x88] sm:$0xff]
    %v181 = vld [vmem:[#allocation5 + $0x90] sm:$0xff]
    %v182 = vld [vmem:[#allocation5 + $0x98] sm:$0xff]
    %v183 = vld [vmem:[#allocation5 + $0xa0] sm:$0xff]
    %v184 = vld [vmem:[#allocation5 + $0xa8] sm:$0xff]
    %v185 = vld [vmem:[#allocation5 + $0xb0] sm:$0xff]
    %v186 = vld [vmem:[#allocation5 + $0xb8] sm:$0xff]
    %v187 = vld [vmem:[#allocation5 + $0xc0] sm:$0xff]
    %v188 = vld [vmem:[#allocation5 + $0xc8] sm:$0xff]
    %v189 = vld [vmem:[#allocation5 + $0xd0] sm:$0xff]
    %v190 = vld [vmem:[#allocation5 + $0xd8] sm:$0xff]
    %v191 = vld [vmem:[#allocation5 + $0xe0] sm:$0xff]
    %v192 = vld [vmem:[#allocation5 + $0xe8] sm:$0xff]
    %v193 = vld [vmem:[#allocation5 + $0xf0] sm:$0xff]
    %v194 = vld [vmem:[#allocation5 + $0xf8] sm:$0xff]
    %v195 = vld [vmem:[#allocation5 + $0x100] sm:$0xff]
    %v196 = vld [vmem:[#allocation5 + $0x108] sm:$0xff]
    %v197 = vld [vmem:[#allocation5 + $0x110] sm:$0xff]
    %v198 = vld [vmem:[#allocation5 + $0x118] sm:$0xff]
    %v199 = vld [vmem:[#allocation5 + $0x120] sm:$0xff]
    %v200 = vld [vmem:[#allocation5 + $0x128] sm:$0xff]
    %v201 = vld [vmem:[#allocation5 + $0x130] sm:$0xff]
    %v202 = vld [vmem:[#allocation5 + $0x138] sm:$0xff]
    %v203 = vld [vmem:[#allocation5 + $0x140] sm:$0xff]
    %v204 = vld [vmem:[#allocation5 + $0x148] sm:$0xff]
    %v205 = vld [vmem:[#allocation5 + $0x150] sm:$0xff]
    %v206 = vld [vmem:[#allocation5 + $0x158] sm:$0xff]
    %v207 = vld [vmem:[#allocation5 + $0x160] sm:$0xff]
    %v208 = vld [vmem:[#allocation5 + $0x168] sm:$0xff]
    %v209 = vld [vmem:[#allocation5 + $0x170] sm:$0xff]
    %v210 = vld [vmem:[#allocation5 + $0x178] sm:$0xff]
    %v211 = vld [vmem:[#allocation5 + $0x180] sm:$0xff]
    %v212 = vld [vmem:[#allocation5 + $0x188] sm:$0xff]
    %v213 = vld [vmem:[#allocation5 + $0x190] sm:$0xff]
    %v214 = vld [vmem:[#allocation5 + $0x198] sm:$0xff]
    %v215 = vld [vmem:[#allocation5 + $0x1a0] sm:$0xff]
    %v216 = vld [vmem:[#allocation5 + $0x1a8] sm:$0xff]
    %v217 = vld [vmem:[#allocation5 + $0x1b0] sm:$0xff]
    %v218 = vld [vmem:[#allocation5 + $0x1b8] sm:$0xff]
    %v219 = vld [vmem:[#allocation5 + $0x1c0] sm:$0xff]
    %v220 = vld [vmem:[#allocation5 + $0x1c8] sm:$0xff]
    %v221 = vld [vmem:[#allocation5 + $0x1d0] sm:$0xff]
    %v222 = vld [vmem:[#allocation5 + $0x1d8] sm:$0xff]
    %v223 = vld [vmem:[#allocation5 + $0x1e0] sm:$0xff]
    %v224 = vld [vmem:[#allocation5 + $0x1e8] sm:$0xff]
    %v225 = vld [vmem:[#allocation5 + $0x1f0] sm:$0xff]
    %v226 = vld [vmem:[#allocation5 + $0x1f8] sm:$0xff]
    %v227 = vld [vmem:[#allocation5 + $0x200] sm:$0xff]
    %v228 = vld [vmem:[#allocation5 + $0x208] sm:$0xff]
    %v229 = vld [vmem:[#allocation5 + $0x210] sm:$0xff]
    %v230 = vld [vmem:[#allocation5 + $0x218] sm:$0xff]
    %v231 = vld [vmem:[#allocation5 + $0x220] sm:$0xff]
    %v232 = vld [vmem:[#allocation5 + $0x228] sm:$0xff]
    %v233 = vld [vmem:[#allocation5 + $0x230] sm:$0xff]
    %v234 = vld [vmem:[#allocation5 + $0x238] sm:$0xff]
    %v235 = vld [vmem:[#allocation5 + $0x240] sm:$0xff]
    %v236 = vld [vmem:[#allocation5 + $0x248] sm:$0xff]
    %v237 = vld [vmem:[#allocation5 + $0x250] sm:$0xff]
    %v238 = vld [vmem:[#allocation5 + $0x258] sm:$0xff]
    %v239 = vld [vmem:[#allocation5 + $0x260] sm:$0xff]
    %v240 = vld [vmem:[#allocation5 + $0x268] sm:$0xff]
    %v241 = vld [vmem:[#allocation5 + $0x270] sm:$0xff]
    %v242 = vld [vmem:[#allocation5 + $0x278] sm:$0xff]
    %v243 = vld [vmem:[#allocation5 + $0x280] sm:$0xff]
    %v244 = vld [vmem:[#allocation5 + $0x288] sm:$0xff]
    %v245 = vld [vmem:[#allocation5 + $0x290] sm:$0xff]
    %v246 = vld [vmem:[#allocation5 + $0x298] sm:$0xff]
    %v247 = vld [vmem:[#allocation5 + $0x2a0] sm:$0xff]
    %v248 = vld [vmem:[#allocation5 + $0x2a8] sm:$0xff]
    %v249 = vld [vmem:[#allocation5 + $0x2b0] sm:$0xff]
    %v250 = vld [vmem:[#allocation5 + $0x2b8] sm:$0xff]
    %v251 = vld [vmem:[#allocation5 + $0x2c0] sm:$0xff]
    %v252 = vld [vmem:[#allocation5 + $0x2c8] sm:$0xff]
    %v253 = vld [vmem:[#allocation5 + $0x2d0] sm:$0xff]
    %v254 = vld [vmem:[#allocation5 + $0x2d8] sm:$0xff]
    %v255 = vld [vmem:[#allocation5 + $0x2e0] sm:$0xff]
    %v256 = vld [vmem:[#allocation5 + $0x2e8] sm:$0xff]
    %v257 = vld [vmem:[#allocation5 + $0x2f0] sm:$0xff]
    %v258 = vld [vmem:[#allocation5 + $0x2f8] sm:$0xff]
    %v259 = vld [vmem:[#allocation5 + $0x300] sm:$0xff]
    %v260 = vld [vmem:[#allocation5 + $0x308] sm:$0xff]
    %v261 = vld [vmem:[#allocation5 + $0x310] sm:$0xff]
    %v262 = vld [vmem:[#allocation5 + $0x318] sm:$0xff]
    %v263 = vld [vmem:[#allocation5 + $0x320] sm:$0xff]
    %v264 = vld [vmem:[#allocation5 + $0x328] sm:$0xff]
    %v265 = vld [vmem:[#allocation5 + $0x330] sm:$0xff]
    %v266 = vld [vmem:[#allocation5 + $0x338] sm:$0xff]
    %v267 = vld [vmem:[#allocation5 + $0x340] sm:$0xff]
    %v268 = vld [vmem:[#allocation5 + $0x348] sm:$0xff]
    %v269 = vld [vmem:[#allocation5 + $0x350] sm:$0xff]
    %v270 = vld [vmem:[#allocation5 + $0x358] sm:$0xff]
    %v271 = vld [vmem:[#allocation5 + $0x360] sm:$0xff]
    %v272 = vld [vmem:[#allocation5 + $0x368] sm:$0xff]
    %v273 = vld [vmem:[#allocation5 + $0x370] sm:$0xff]
    %v274 = vld [vmem:[#allocation5 + $0x378] sm:$0xff]
    %v275 = vld [vmem:[#allocation5 + $0x380] sm:$0xff]
    %v276 = vld [vmem:[#allocation5 + $0x388] sm:$0xff]
    %v277 = vld [vmem:[#allocation5 + $0x390] sm:$0xff]
    %v278 = vld [vmem:[#allocation5 + $0x398] sm:$0xff]
    %v279 = vld [vmem:[#allocation5 + $0x3a0] sm:$0xff]
    %v280 = vld [vmem:[#allocation5 + $0x3a8] sm:$0xff]
    %v281 = vld [vmem:[#allocation5 + $0x3b0] sm:$0xff]
    %v282 = vld [vmem:[#allocation5 + $0x3b8] sm:$0xff]
    %v283 = vld [vmem:[#allocation5 + $0x3c0] sm:$0xff]
    %v284 = vld [vmem:[#allocation5 + $0x3c8] sm:$0xff]
    %v285 = vld [vmem:[#allocation5 + $0x3d0] sm:$0xff]
    %v286 = vld [vmem:[#allocation5 + $0x3d8] sm:$0xff]
    %v287 = vld [vmem:[#allocation5 + $0x3e0] sm:$0xff]
    %v288 = vld [vmem:[#allocation5 + $0x3e8] sm:$0xff]
    %v289 = vld [vmem:[#allocation5 + $0x3f0] sm:$0xff]
    %v290 = vld [vmem:[#allocation5 + $0x3f8] sm:$0xff]
    %v291 = vld [vmem:[#allocation5 + $0x400] sm:$0xff]
    %v292 = vld [vmem:[#allocation5 + $0x408] sm:$0xff]
    %v293 = vld [vmem:[#allocation5 + $0x410] sm:$0xff]
    %v294 = vld [vmem:[#allocation5 + $0x418] sm:$0xff]
    %v295 = vld [vmem:[#allocation5 + $0x420] sm:$0xff]
    %v296 = vld [vmem:[#allocation5 + $0x428] sm:$0xff]
    %v297 = vld [vmem:[#allocation5 + $0x430] sm:$0xff]
    %v298 = vld [vmem:[#allocation5 + $0x438] sm:$0xff]
    %v299 = vld [vmem:[#allocation5 + $0x440] sm:$0xff]
    %v300 = vld [vmem:[#allocation5 + $0x448] sm:$0xff]
    %v301 = vld [vmem:[#allocation5 + $0x450] sm:$0xff]
    %v302 = vld [vmem:[#allocation5 + $0x458] sm:$0xff]
    %v303 = vld [vmem:[#allocation5 + $0x460] sm:$0xff]
    %v304 = vld [vmem:[#allocation5 + $0x468] sm:$0xff]
    %v305 = vld [vmem:[#allocation5 + $0x470] sm:$0xff]
    %v306 = vld [vmem:[#allocation5 + $0x478] sm:$0xff]
    %v307 = vld [vmem:[#allocation5 + $0x480] sm:$0xff]
    %v308 = vld [vmem:[#allocation5 + $0x488] sm:$0xff]
    %v309 = vld [vmem:[#allocation5 + $0x490] sm:$0xff]
    %v310 = vld [vmem:[#allocation5 + $0x498] sm:$0xff]
    %v311 = vld [vmem:[#allocation5 + $0x4a0] sm:$0xff]
    %v312 = vld [vmem:[#allocation5 + $0x4a8] sm:$0xff]
    %v313 = vld [vmem:[#allocation5 + $0x4b0] sm:$0xff]
    %v314 = vld [vmem:[#allocation5 + $0x4b8] sm:$0xff]
    %v315 = vld [vmem:[#allocation5 + $0x4c0] sm:$0xff]
    %v316 = vld [vmem:[#allocation5 + $0x4c8] sm:$0xff]
    %v317 = vld [vmem:[#allocation5 + $0x4d0] sm:$0xff]
    %v318 = vld [vmem:[#allocation5 + $0x4d8] sm:$0xff]
    %v319 = vld [vmem:[#allocation5 + $0x4e0] sm:$0xff]
    %v320 = vld [vmem:[#allocation5 + $0x4e8] sm:$0xff]
    %v321 = vld [vmem:[#allocation5 + $0x4f0] sm:$0xff]
    %v322 = vld [vmem:[#allocation5 + $0x4f8] sm:$0xff]
    %v323 = vld [vmem:[#allocation5 + $0x500] sm:$0xff]
    %v324 = vld [vmem:[#allocation5 + $0x508] sm:$0xff]
    %v325 = vld [vmem:[#allocation5 + $0x510] sm:$0xff]
    %v326 = vld [vmem:[#allocation5 + $0x518] sm:$0xff]
    %v327 = vld [vmem:[#allocation5 + $0x520] sm:$0xff]
    %v328 = vld [vmem:[#allocation5 + $0x528] sm:$0xff]
    %v329 = vld [vmem:[#allocation5 + $0x530] sm:$0xff]
    %v330 = vld [vmem:[#allocation5 + $0x538] sm:$0xff]
    %v331 = vld [vmem:[#allocation5 + $0x540] sm:$0xff]
    %v332 = vld [vmem:[#allocation5 + $0x548] sm:$0xff]
    %v333 = vld [vmem:[#allocation5 + $0x550] sm:$0xff]
    %v334 = vld [vmem:[#allocation5 + $0x558] sm:$0xff]
    %v335 = vld [vmem:[#allocation5 + $0x560] sm:$0xff]
    %v336 = vld [vmem:[#allocation5 + $0x568] sm:$0xff]
    %v337 = vld [vmem:[#allocation5 + $0x570] sm:$0xff]
    %v338 = vld [vmem:[#allocation5 + $0x578] sm:$0xff]
    %v339 = vld [vmem:[#allocation5 + $0x580] sm:$0xff]
    %v340 = vld [vmem:[#allocation5 + $0x588] sm:$0xff]
    %v341 = vld [vmem:[#allocation5 + $0x590] sm:$0xff]
    %v342 = vld [vmem:[#allocation5 + $0x598] sm:$0xff]
    %v343 = vld [vmem:[#allocation5 + $0x5a0] sm:$0xff]
    %v344 = vld [vmem:[#allocation5 + $0x5a8] sm:$0xff]
    %v345 = vld [vmem:[#allocation5 + $0x5b0] sm:$0xff]
    %v346 = vld [vmem:[#allocation5 + $0x5b8] sm:$0xff]
    %v347 = vld [vmem:[#allocation5 + $0x5c0] sm:$0xff]
    %v348 = vld [vmem:[#allocation5 + $0x5c8] sm:$0xff]
    %v349 = vld [vmem:[#allocation5 + $0x5d0] sm:$0xff]
    %v350 = vld [vmem:[#allocation5 + $0x5d8] sm:$0xff]
    %v351 = vld [vmem:[#allocation5 + $0x5e0] sm:$0xff]
    %v352 = vld [vmem:[#allocation5 + $0x5e8] sm:$0xff]
    %v353 = vld [vmem:[#allocation5 + $0x5f0] sm:$0xff]
    %v354 = vld [vmem:[#allocation5 + $0x5f8] sm:$0xff]
    %v355 = vld [vmem:[#allocation5 + $0x600] sm:$0xff]
    %v356 = vld [vmem:[#allocation5 + $0x608] sm:$0xff]
    %v357 = vld [vmem:[#allocation5 + $0x610] sm:$0xff]
    %v358 = vld [vmem:[#allocation5 + $0x618] sm:$0xff]
    %v359 = vld [vmem:[#allocation5 + $0x620] sm:$0xff]
    %v360 = vld [vmem:[#allocation5 + $0x628] sm:$0xff]
    %v361 = vld [vmem:[#allocation5 + $0x630] sm:$0xff]
    %v362 = vld [vmem:[#allocation5 + $0x638] sm:$0xff]
    %v363 = vld [vmem:[#allocation5 + $0x640] sm:$0xff]
    %v364 = vld [vmem:[#allocation5 + $0x648] sm:$0xff]
    %v365 = vld [vmem:[#allocation5 + $0x650] sm:$0xff]
    %v366 = vld [vmem:[#allocation5 + $0x658] sm:$0xff]
    %v367 = vld [vmem:[#allocation5 + $0x660] sm:$0xff]
    %v368 = vld [vmem:[#allocation5 + $0x668] sm:$0xff]
    %v369 = vld [vmem:[#allocation5 + $0x670] sm:$0xff]
    %v370 = vld [vmem:[#allocation5 + $0x678] sm:$0xff]
    %v371 = vld [vmem:[#allocation5 + $0x680] sm:$0xff]
    %v372 = vld [vmem:[#allocation5 + $0x688] sm:$0xff]
    %v373 = vld [vmem:[#allocation5 + $0x690] sm:$0xff]
    %v374 = vld [vmem:[#allocation5 + $0x698] sm:$0xff]
    %v375 = vld [vmem:[#allocation5 + $0x6a0] sm:$0xff]
    %v376 = vld [vmem:[#allocation5 + $0x6a8] sm:$0xff]
    %v377 = vld [vmem:[#allocation5 + $0x6b0] sm:$0xff]
    %v378 = vld [vmem:[#allocation5 + $0x6b8] sm:$0xff]
    %v379 = vld [vmem:[#allocation5 + $0x6c0] sm:$0xff]
    %v380 = vld [vmem:[#allocation5 + $0x6c8] sm:$0xff]
    %v381 = vld [vmem:[#allocation5 + $0x6d0] sm:$0xff]
    %v382 = vld [vmem:[#allocation5 + $0x6d8] sm:$0xff]
    %v383 = vld [vmem:[#allocation5 + $0x6e0] sm:$0xff]
    %v384 = vld [vmem:[#allocation5 + $0x6e8] sm:$0xff]
    %v385 = vld [vmem:[#allocation5 + $0x6f0] sm:$0xff]
    %v386 = vld [vmem:[#allocation5 + $0x6f8] sm:$0xff]
    %v387 = vld [vmem:[#allocation5 + $0x700] sm:$0xff]
    %v388 = vld [vmem:[#allocation5 + $0x708] sm:$0xff]
    %v389 = vld [vmem:[#allocation5 + $0x710] sm:$0xff]
    %v390 = vld [vmem:[#allocation5 + $0x718] sm:$0xff]
    %v391 = vld [vmem:[#allocation5 + $0x720] sm:$0xff]
    %v392 = vld [vmem:[#allocation5 + $0x728] sm:$0xff]
    %v393 = vld [vmem:[#allocation5 + $0x730] sm:$0xff]
    %v394 = vld [vmem:[#allocation5 + $0x738] sm:$0xff]
    %v395 = vld [vmem:[#allocation5 + $0x740] sm:$0xff]
    %v396 = vld [vmem:[#allocation5 + $0x748] sm:$0xff]
    %v397 = vld [vmem:[#allocation5 + $0x750] sm:$0xff]
    %v398 = vld [vmem:[#allocation5 + $0x758] sm:$0xff]
    %v399 = vld [vmem:[#allocation5 + $0x760] sm:$0xff]
    %v400 = vld [vmem:[#allocation5 + $0x768] sm:$0xff]
    %v401 = vld [vmem:[#allocation5 + $0x770] sm:$0xff]
    %v402 = vld [vmem:[#allocation5 + $0x778] sm:$0xff]
    %v403 = vld [vmem:[#allocation5 + $0x780] sm:$0xff]
    %v404 = vld [vmem:[#allocation5 + $0x788] sm:$0xff]
    %v405 = vld [vmem:[#allocation5 + $0x790] sm:$0xff]
    %v406 = vld [vmem:[#allocation5 + $0x798] sm:$0xff]
    %v407 = vld [vmem:[#allocation5 + $0x7a0] sm:$0xff]
    %v408 = vld [vmem:[#allocation5 + $0x7a8] sm:$0xff]
    %v409 = vld [vmem:[#allocation5 + $0x7b0] sm:$0xff]
    %v410 = vld [vmem:[#allocation5 + $0x7b8] sm:$0xff]
    %v411 = vld [vmem:[#allocation5 + $0x7c0] sm:$0xff]
    %v412 = vld [vmem:[#allocation5 + $0x7c8] sm:$0xff]
    %v413 = vld [vmem:[#allocation5 + $0x7d0] sm:$0xff]
    %v414 = vld [vmem:[#allocation5 + $0x7d8] sm:$0xff]
    %v415 = vld [vmem:[#allocation5 + $0x7e0] sm:$0xff]
    %v416 = vld [vmem:[#allocation5 + $0x7e8] sm:$0xff]
    %v417 = vld [vmem:[#allocation5 + $0x7f0] sm:$0xff]
    %v418 = vld [vmem:[#allocation5 + $0x7f8] sm:$0xff]
    %v419 = vld [vmem:[#allocation5 + $0x800] sm:$0xff]
    %v420 = vld [vmem:[#allocation5 + $0x808] sm:$0xff]
    %v421 = vld [vmem:[#allocation5 + $0x810] sm:$0xff]
    %v422 = vld [vmem:[#allocation5 + $0x818] sm:$0xff]
    %v423 = vld [vmem:[#allocation5 + $0x820] sm:$0xff]
    %v424 = vld [vmem:[#allocation5 + $0x828] sm:$0xff]
    %v425 = vld [vmem:[#allocation5 + $0x830] sm:$0xff]
    %v426 = vld [vmem:[#allocation5 + $0x838] sm:$0xff]
    %v427 = vld [vmem:[#allocation5 + $0x840] sm:$0xff]
    %v428 = vld [vmem:[#allocation5 + $0x848] sm:$0xff]
    %v429 = vld [vmem:[#allocation5 + $0x850] sm:$0xff]
    %v430 = vld [vmem:[#allocation5 + $0x858] sm:$0xff]
    %v431 = vld [vmem:[#allocation5 + $0x860] sm:$0xff]
    %v432 = vld [vmem:[#allocation5 + $0x868] sm:$0xff]
    %v433 = vld [vmem:[#allocation5 + $0x870] sm:$0xff]
    %v434 = vld [vmem:[#allocation5 + $0x878] sm:$0xff]
    %v435 = vld [vmem:[#allocation5 + $0x880] sm:$0xff]
    %v436 = vld [vmem:[#allocation5 + $0x888] sm:$0xff]
    %v437 = vld [vmem:[#allocation5 + $0x890] sm:$0xff]
    %v438 = vld [vmem:[#allocation5 + $0x898] sm:$0xff]
    %v439 = vld [vmem:[#allocation5 + $0x8a0] sm:$0xff]
    %v440 = vld [vmem:[#allocation5 + $0x8a8] sm:$0xff]
    %v441 = vld [vmem:[#allocation5 + $0x8b0] sm:$0xff]
    %v442 = vld [vmem:[#allocation5 + $0x8b8] sm:$0xff]
    %v443 = vld [vmem:[#allocation5 + $0x8c0] sm:$0xff]
    %v444 = vld [vmem:[#allocation5 + $0x8c8] sm:$0xff]
    %v445 = vld [vmem:[#allocation5 + $0x8d0] sm:$0xff]
    %v446 = vld [vmem:[#allocation5 + $0x8d8] sm:$0xff]
    %v447 = vld [vmem:[#allocation5 + $0x8e0] sm:$0xff]
    %v448 = vld [vmem:[#allocation5 + $0x8e8] sm:$0xff]
    %v449 = vld [vmem:[#allocation5 + $0x8f0] sm:$0xff]
    %v450 = vld [vmem:[#allocation5 + $0x8f8] sm:$0xff]
    %v451 = vld [vmem:[#allocation5 + $0x900] sm:$0xff]
    %v452 = vld [vmem:[#allocation5 + $0x908] sm:$0xff]
    %v453 = vld [vmem:[#allocation5 + $0x910] sm:$0xff]
    %v454 = vld [vmem:[#allocation5 + $0x918] sm:$0xff]
    %v455 = vld [vmem:[#allocation5 + $0x920] sm:$0xff]
    %v456 = vld [vmem:[#allocation5 + $0x928] sm:$0xff]
    %v457 = vld [vmem:[#allocation5 + $0x930] sm:$0xff]
    %v458 = vld [vmem:[#allocation5 + $0x938] sm:$0xff]
    %v459 = vld [vmem:[#allocation5 + $0x940] sm:$0xff]
    %v460 = vld [vmem:[#allocation5 + $0x948] sm:$0xff]
    %v461 = vld [vmem:[#allocation5 + $0x950] sm:$0xff]
    %v462 = vld [vmem:[#allocation5 + $0x958] sm:$0xff]
    %v463 = vld [vmem:[#allocation5 + $0x960] sm:$0xff]
    %v464 = vld [vmem:[#allocation5 + $0x968] sm:$0xff]
    %v465 = vld [vmem:[#allocation5 + $0x970] sm:$0xff]
    %v466 = vld [vmem:[#allocation5 + $0x978] sm:$0xff]
    %v467 = vld [vmem:[#allocation5 + $0x980] sm:$0xff]
    %v468 = vld [vmem:[#allocation5 + $0x988] sm:$0xff]
    %v469 = vld [vmem:[#allocation5 + $0x990] sm:$0xff]
    %v470 = vld [vmem:[#allocation5 + $0x998] sm:$0xff]
    %v471 = vld [vmem:[#allocation5 + $0x9a0] sm:$0xff]
    %v472 = vld [vmem:[#allocation5 + $0x9a8] sm:$0xff]
    %v473 = vld [vmem:[#allocation5 + $0x9b0] sm:$0xff]
    %v474 = vld [vmem:[#allocation5 + $0x9b8] sm:$0xff]
    %v475 = vld [vmem:[#allocation5 + $0x9c0] sm:$0xff]
    %v476 = vld [vmem:[#allocation5 + $0x9c8] sm:$0xff]
    %v477 = vld [vmem:[#allocation5 + $0x9d0] sm:$0xff]
    %v478 = vld [vmem:[#allocation5 + $0x9d8] sm:$0xff]
    %v479 = vld [vmem:[#allocation5 + $0x9e0] sm:$0xff]
    %v480 = vld [vmem:[#allocation5 + $0x9e8] sm:$0xff]
    %v481 = vld [vmem:[#allocation5 + $0x9f0] sm:$0xff]
    %v482 = vld [vmem:[#allocation5 + $0x9f8] sm:$0xff]
    %v483 = vld [vmem:[#allocation5 + $0xa00] sm:$0xff]
    %v484 = vld [vmem:[#allocation5 + $0xa08] sm:$0xff]
    %v485 = vld [vmem:[#allocation5 + $0xa10] sm:$0xff]
    %v486 = vld [vmem:[#allocation5 + $0xa18] sm:$0xff]
    %v487 = vld [vmem:[#allocation5 + $0xa20] sm:$0xff]
    %v488 = vld [vmem:[#allocation5 + $0xa28] sm:$0xff]
    %v489 = vld [vmem:[#allocation5 + $0xa30] sm:$0xff]
    %v490 = vld [vmem:[#allocation5 + $0xa38] sm:$0xff]
    %v491 = vld [vmem:[#allocation5 + $0xa40] sm:$0xff]
    %v492 = vld [vmem:[#allocation5 + $0xa48] sm:$0xff]
    %v493 = vld [vmem:[#allocation5 + $0xa50] sm:$0xff]
    %v494 = vld [vmem:[#allocation5 + $0xa58] sm:$0xff]
    %v495 = vld [vmem:[#allocation5 + $0xa60] sm:$0xff]
    %v496 = vld [vmem:[#allocation5 + $0xa68] sm:$0xff]
    %v497 = vld [vmem:[#allocation5 + $0xa70] sm:$0xff]
    %v498 = vld [vmem:[#allocation5 + $0xa78] sm:$0xff]
    %v499 = vld [vmem:[#allocation5 + $0xa80] sm:$0xff]
    %v500 = vld [vmem:[#allocation5 + $0xa88] sm:$0xff]
    %v501 = vld [vmem:[#allocation5 + $0xa90] sm:$0xff]
    %v502 = vld [vmem:[#allocation5 + $0xa98] sm:$0xff]
    %v503 = vld [vmem:[#allocation5 + $0xaa0] sm:$0xff]
    %v504 = vld [vmem:[#allocation5 + $0xaa8] sm:$0xff]
    %v505 = vld [vmem:[#allocation5 + $0xab0] sm:$0xff]
    %v506 = vld [vmem:[#allocation5 + $0xab8] sm:$0xff]
    %v507 = vld [vmem:[#allocation5 + $0xac0] sm:$0xff]
    %v508 = vld [vmem:[#allocation5 + $0xac8] sm:$0xff]
    %v509 = vld [vmem:[#allocation5 + $0xad0] sm:$0xff]
    %v510 = vld [vmem:[#allocation5 + $0xad8] sm:$0xff]
    %v511 = vld [vmem:[#allocation5 + $0xae0] sm:$0xff]
    %v512 = vld [vmem:[#allocation5 + $0xae8] sm:$0xff]
    %v513 = vld [vmem:[#allocation5 + $0xaf0] sm:$0xff]
    %v514 = vld [vmem:[#allocation5 + $0xaf8] sm:$0xff]
    %v515 = vld [vmem:[#allocation5 + $0xb00] sm:$0xff]
    %v516 = vld [vmem:[#allocation5 + $0xb08] sm:$0xff]
    %v517 = vld [vmem:[#allocation5 + $0xb10] sm:$0xff]
    %v518 = vld [vmem:[#allocation5 + $0xb18] sm:$0xff]
    %v519 = vld [vmem:[#allocation5 + $0xb20] sm:$0xff]
    %v520 = vld [vmem:[#allocation5 + $0xb28] sm:$0xff]
    %v521 = vld [vmem:[#allocation5 + $0xb30] sm:$0xff]
    %v522 = vld [vmem:[#allocation5 + $0xb38] sm:$0xff]
    %v523 = vld [vmem:[#allocation5 + $0xb40] sm:$0xff]
    %v524 = vld [vmem:[#allocation5 + $0xb48] sm:$0xff]
    %v525 = vld [vmem:[#allocation5 + $0xb50] sm:$0xff]
    %v526 = vld [vmem:[#allocation5 + $0xb58] sm:$0xff]
    %v527 = vld [vmem:[#allocation5 + $0xb60] sm:$0xff]
    %v528 = vld [vmem:[#allocation5 + $0xb68] sm:$0xff]
    %v529 = vld [vmem:[#allocation5 + $0xb70] sm:$0xff]
    %v530 = vld [vmem:[#allocation5 + $0xb78] sm:$0xff]
    %v531 = vld [vmem:[#allocation5 + $0xb80] sm:$0xff]
    %v532 = vld [vmem:[#allocation5 + $0xb88] sm:$0xff]
    %v533 = vld [vmem:[#allocation5 + $0xb90] sm:$0xff]
    %v534 = vld [vmem:[#allocation5 + $0xb98] sm:$0xff]
    %v535 = vld [vmem:[#allocation5 + $0xba0] sm:$0xff]
    %v536 = vld [vmem:[#allocation5 + $0xba8] sm:$0xff]
    %v537 = vld [vmem:[#allocation5 + $0xbb0] sm:$0xff]
    %v538 = vld [vmem:[#allocation5 + $0xbb8] sm:$0xff]
    %v539 = vld [vmem:[#allocation5 + $0xbc0] sm:$0xff]
    %v540 = vld [vmem:[#allocation5 + $0xbc8] sm:$0xff]
    %v541 = vld [vmem:[#allocation5 + $0xbd0] sm:$0xff]
    %v542 = vld [vmem:[#allocation5 + $0xbd8] sm:$0xff]
    %v543 = vld [vmem:[#allocation5 + $0xbe0] sm:$0xff]
    %v544 = vld [vmem:[#allocation5 + $0xbe8] sm:$0xff]
    %v545 = vld [vmem:[#allocation5 + $0xbf0] sm:$0xff]
    %v546 = vld [vmem:[#allocation5 + $0xbf8] sm:$0xff]
    %v547 = vld [vmem:[#allocation5 + $0xc00] sm:$0xff]
    %v548 = vld [vmem:[#allocation5 + $0xc08] sm:$0xff]
    %v549 = vld [vmem:[#allocation5 + $0xc10] sm:$0xff]
    %v550 = vld [vmem:[#allocation5 + $0xc18] sm:$0xff]
    %v551 = vld [vmem:[#allocation5 + $0xc20] sm:$0xff]
    %v552 = vld [vmem:[#allocation5 + $0xc28] sm:$0xff]
    %v553 = vld [vmem:[#allocation5 + $0xc30] sm:$0xff]
    %v554 = vld [vmem:[#allocation5 + $0xc38] sm:$0xff]
    %v555 = vld [vmem:[#allocation5 + $0xc40] sm:$0xff]
    %v556 = vld [vmem:[#allocation5 + $0xc48] sm:$0xff]
    %v557 = vld [vmem:[#allocation5 + $0xc50] sm:$0xff]
    %v558 = vld [vmem:[#allocation5 + $0xc58] sm:$0xff]
    %v559 = vld [vmem:[#allocation5 + $0xc60] sm:$0xff]
    %v560 = vld [vmem:[#allocation5 + $0xc68] sm:$0xff]
    %v561 = vld [vmem:[#allocation5 + $0xc70] sm:$0xff]
    %v562 = vld [vmem:[#allocation5 + $0xc78] sm:$0xff]
    %v563 = vld [vmem:[#allocation5 + $0xc80] sm:$0xff]
    %v564 = vld [vmem:[#allocation5 + $0xc88] sm:$0xff]
    %v565 = vld [vmem:[#allocation5 + $0xc90] sm:$0xff]
    %v566 = vld [vmem:[#allocation5 + $0xc98] sm:$0xff]
    %v567 = vld [vmem:[#allocation5 + $0xca0] sm:$0xff]
    %v568 = vld [vmem:[#allocation5 + $0xca8] sm:$0xff]
    %v569 = vld [vmem:[#allocation5 + $0xcb0] sm:$0xff]
    %v570 = vld [vmem:[#allocation5 + $0xcb8] sm:$0xff]
    %v571 = vld [vmem:[#allocation5 + $0xcc0] sm:$0xff]
    %v572 = vld [vmem:[#allocation5 + $0xcc8] sm:$0xff]
    %v573 = vld [vmem:[#allocation5 + $0xcd0] sm:$0xff]
    %v574 = vld [vmem:[#allocation5 + $0xcd8] sm:$0xff]
    %v575 = vld [vmem:[#allocation5 + $0xce0] sm:$0xff]
    %v576 = vld [vmem:[#allocation5 + $0xce8] sm:$0xff]
    %v577 = vld [vmem:[#allocation5 + $0xcf0] sm:$0xff]
    %v578 = vld [vmem:[#allocation5 + $0xcf8] sm:$0xff]
    %v579 = vld [vmem:[#allocation5 + $0xd00] sm:$0xff]
    %v580 = vld [vmem:[#allocation5 + $0xd08] sm:$0xff]
    %v581 = vld [vmem:[#allocation5 + $0xd10] sm:$0xff]
    %v582 = vld [vmem:[#allocation5 + $0xd18] sm:$0xff]
    %v583 = vld [vmem:[#allocation5 + $0xd20] sm:$0xff]
    %v584 = vld [vmem:[#allocation5 + $0xd28] sm:$0xff]
    %v585 = vld [vmem:[#allocation5 + $0xd30] sm:$0xff]
    %v586 = vld [vmem:[#allocation5 + $0xd38] sm:$0xff]
    %v587 = vld [vmem:[#allocation5 + $0xd40] sm:$0xff]
    %v588 = vld [vmem:[#allocation5 + $0xd48] sm:$0xff]
    %v589 = vld [vmem:[#allocation5 + $0xd50] sm:$0xff]
    %v590 = vld [vmem:[#allocation5 + $0xd58] sm:$0xff]
    %v591 = vld [vmem:[#allocation5 + $0xd60] sm:$0xff]
    %v592 = vld [vmem:[#allocation5 + $0xd68] sm:$0xff]
    %v593 = vld [vmem:[#allocation5 + $0xd70] sm:$0xff]
    %v594 = vld [vmem:[#allocation5 + $0xd78] sm:$0xff]
    %v595 = vld [vmem:[#allocation5 + $0xd80] sm:$0xff]
    %v596 = vld [vmem:[#allocation5 + $0xd88] sm:$0xff]
    %v597 = vld [vmem:[#allocation5 + $0xd90] sm:$0xff]
    %v598 = vld [vmem:[#allocation5 + $0xd98] sm:$0xff]
    %v599 = vld [vmem:[#allocation5 + $0xda0] sm:$0xff]
    %v600 = vld [vmem:[#allocation5 + $0xda8] sm:$0xff]
    %v601 = vld [vmem:[#allocation5 + $0xdb0] sm:$0xff]
    %v602 = vld [vmem:[#allocation5 + $0xdb8] sm:$0xff]
    %v603 = vld [vmem:[#allocation5 + $0xdc0] sm:$0xff]
    %v604 = vld [vmem:[#allocation5 + $0xdc8] sm:$0xff]
    %v605 = vld [vmem:[#allocation5 + $0xdd0] sm:$0xff]
    %v606 = vld [vmem:[#allocation5 + $0xdd8] sm:$0xff]
    %v607 = vld [vmem:[#allocation5 + $0xde0] sm:$0xff]
    %v608 = vld [vmem:[#allocation5 + $0xde8] sm:$0xff]
    %v609 = vld [vmem:[#allocation5 + $0xdf0] sm:$0xff]
    %v610 = vld [vmem:[#allocation5 + $0xdf8] sm:$0xff]
    %v611 = vld [vmem:[#allocation5 + $0xe00] sm:$0xff]
    %v612 = vld [vmem:[#allocation5 + $0xe08] sm:$0xff]
    %v613 = vld [vmem:[#allocation5 + $0xe10] sm:$0xff]
    %v614 = vld [vmem:[#allocation5 + $0xe18] sm:$0xff]
    %v615 = vld [vmem:[#allocation5 + $0xe20] sm:$0xff]
    %v616 = vld [vmem:[#allocation5 + $0xe28] sm:$0xff]
    %v617 = vld [vmem:[#allocation5 + $0xe30] sm:$0xff]
    %v618 = vld [vmem:[#allocation5 + $0xe38] sm:$0xff]
    %v619 = vld [vmem:[#allocation5 + $0xe40] sm:$0xff]
    %v620 = vld [vmem:[#allocation5 + $0xe48] sm:$0xff]
    %v621 = vld [vmem:[#allocation5 + $0xe50] sm:$0xff]
    %v622 = vld [vmem:[#allocation5 + $0xe58] sm:$0xff]
    %v623 = vld [vmem:[#allocation5 + $0xe60] sm:$0xff]
    %v624 = vld [vmem:[#allocation5 + $0xe68] sm:$0xff]
    %v625 = vld [vmem:[#allocation5 + $0xe70] sm:$0xff]
    %v626 = vld [vmem:[#allocation5 + $0xe78] sm:$0xff]
    %v627 = vld [vmem:[#allocation5 + $0xe80] sm:$0xff]
    %v628 = vld [vmem:[#allocation5 + $0xe88] sm:$0xff]
    %v629 = vld [vmem:[#allocation5 + $0xe90] sm:$0xff]
    %v630 = vld [vmem:[#allocation5 + $0xe98] sm:$0xff]
    %v631 = vld [vmem:[#allocation5 + $0xea0] sm:$0xff]
    %v632 = vld [vmem:[#allocation5 + $0xea8] sm:$0xff]
    %v633 = vld [vmem:[#allocation5 + $0xeb0] sm:$0xff]
    %v634 = vld [vmem:[#allocation5 + $0xeb8] sm:$0xff]
    %v635 = vld [vmem:[#allocation5 + $0xec0] sm:$0xff]
    %v636 = vld [vmem:[#allocation5 + $0xec8] sm:$0xff]
    %v637 = vld [vmem:[#allocation5 + $0xed0] sm:$0xff]
    %v638 = vld [vmem:[#allocation5 + $0xed8] sm:$0xff]
    %v639 = vld [vmem:[#allocation5 + $0xee0] sm:$0xff]
    %v640 = vld [vmem:[#allocation5 + $0xee8] sm:$0xff]
    %v641 = vld [vmem:[#allocation5 + $0xef0] sm:$0xff]
    %v642 = vld [vmem:[#allocation5 + $0xef8] sm:$0xff]
    %v643 = vld [vmem:[#allocation5 + $0xf00] sm:$0xff]
    %v644 = vld [vmem:[#allocation5 + $0xf08] sm:$0xff]
    %v645 = vld [vmem:[#allocation5 + $0xf10] sm:$0xff]
    %v646 = vld [vmem:[#allocation5 + $0xf18] sm:$0xff]
    %v647 = vld [vmem:[#allocation5 + $0xf20] sm:$0xff]
    %v648 = vld [vmem:[#allocation5 + $0xf28] sm:$0xff]
    %v649 = vld [vmem:[#allocation5 + $0xf30] sm:$0xff]
    %v650 = vld [vmem:[#allocation5 + $0xf38] sm:$0xff]
    %v651 = vld [vmem:[#allocation5 + $0xf40] sm:$0xff]
    %v652 = vld [vmem:[#allocation5 + $0xf48] sm:$0xff]
    %v653 = vld [vmem:[#allocation5 + $0xf50] sm:$0xff]
    %v654 = vld [vmem:[#allocation5 + $0xf58] sm:$0xff]
    %v655 = vld [vmem:[#allocation5 + $0xf60] sm:$0xff]
    %v656 = vld [vmem:[#allocation5 + $0xf68] sm:$0xff]
    %v657 = vld [vmem:[#allocation5 + $0xf70] sm:$0xff]
    %v658 = vld [vmem:[#allocation5 + $0xf78] sm:$0xff]
    %v659 = vld [vmem:[#allocation5 + $0xf80] sm:$0xff]
    %v660 = vld [vmem:[#allocation5 + $0xf88] sm:$0xff]
    %v661 = vld [vmem:[#allocation5 + $0xf90] sm:$0xff]
    %v662 = vld [vmem:[#allocation5 + $0xf98] sm:$0xff]
    %v663 = vld [vmem:[#allocation5 + $0xfa0] sm:$0xff]
    %v664 = vld [vmem:[#allocation5 + $0xfa8] sm:$0xff]
    %v665 = vld [vmem:[#allocation5 + $0xfb0] sm:$0xff]
    %v666 = vld [vmem:[#allocation5 + $0xfb8] sm:$0xff]
    %v667 = vld [vmem:[#allocation5 + $0xfc0] sm:$0xff]
    %v668 = vld [vmem:[#allocation5 + $0xfc8] sm:$0xff]
    %v669 = vld [vmem:[#allocation5 + $0xfd0] sm:$0xff]
    %v670 = vld [vmem:[#allocation5 + $0xfd8] sm:$0xff]
    %v671 = vld [vmem:[#allocation5 + $0xfe0] sm:$0xff]
    %v672 = vld [vmem:[#allocation5 + $0xfe8] sm:$0xff]
    %v673 = vld [vmem:[#allocation5 + $0xff0] sm:$0xff]
    %v674 = vld [vmem:[#allocation5 + $0xff8] sm:$0xff]
    %v675 = vld [vmem:[#allocation5 + $0x1000] sm:$0xff]
    %v676 = vld [vmem:[#allocation5 + $0x1008] sm:$0xff]
    %v677 = vld [vmem:[#allocation5 + $0x1010] sm:$0xff]
    %v678 = vld [vmem:[#allocation5 + $0x1018] sm:$0xff]
    %v679 = vld [vmem:[#allocation5 + $0x1020] sm:$0xff]
    %v680 = vld [vmem:[#allocation5 + $0x1028] sm:$0xff]
    %v681 = vld [vmem:[#allocation5 + $0x1030] sm:$0xff]
    %v682 = vld [vmem:[#allocation5 + $0x1038] sm:$0xff]
    %v683 = vld [vmem:[#allocation5 + $0x1040] sm:$0xff]
    %v684 = vld [vmem:[#allocation5 + $0x1048] sm:$0xff]
    %v685 = vld [vmem:[#allocation5 + $0x1050] sm:$0xff]
    %v686 = vld [vmem:[#allocation5 + $0x1058] sm:$0xff]
    %v687 = vld [vmem:[#allocation5 + $0x1060] sm:$0xff]
    %v688 = vld [vmem:[#allocation5 + $0x1068] sm:$0xff]
    %v689 = vld [vmem:[#allocation5 + $0x1070] sm:$0xff]
    %v690 = vld [vmem:[#allocation5 + $0x1078] sm:$0xff]
    %v691 = vld [vmem:[#allocation5 + $0x1080] sm:$0xff]
    %v692 = vld [vmem:[#allocation5 + $0x1088] sm:$0xff]
    %v693 = vld [vmem:[#allocation5 + $0x1090] sm:$0xff]
    %v694 = vld [vmem:[#allocation5 + $0x1098] sm:$0xff]
    %v695 = vld [vmem:[#allocation5 + $0x10a0] sm:$0xff]
    %v696 = vld [vmem:[#allocation5 + $0x10a8] sm:$0xff]
    %v697 = vld [vmem:[#allocation5 + $0x10b0] sm:$0xff]
    %v698 = vld [vmem:[#allocation5 + $0x10b8] sm:$0xff]
    %v699 = vld [vmem:[#allocation5 + $0x10c0] sm:$0xff]
    %v700 = vld [vmem:[#allocation5 + $0x10c8] sm:$0xff]
    %v701 = vld [vmem:[#allocation5 + $0x10d0] sm:$0xff]
    %v702 = vld [vmem:[#allocation5 + $0x10d8] sm:$0xff]
    %v703 = vld [vmem:[#allocation5 + $0x10e0] sm:$0xff]
    %v704 = vld [vmem:[#allocation5 + $0x10e8] sm:$0xff]
    %v705 = vld [vmem:[#allocation5 + $0x10f0] sm:$0xff]
    %v706 = vld [vmem:[#allocation5 + $0x10f8] sm:$0xff]
    %v707 = vld [vmem:[#allocation5 + $0x1100] sm:$0xff]
    %v708 = vld [vmem:[#allocation5 + $0x1108] sm:$0xff]
    %v709 = vld [vmem:[#allocation5 + $0x1110] sm:$0xff]
    %v710 = vld [vmem:[#allocation5 + $0x1118] sm:$0xff]
    %v711 = vld [vmem:[#allocation5 + $0x1120] sm:$0xff]
    %v712 = vld [vmem:[#allocation5 + $0x1128] sm:$0xff]
    %v713 = vld [vmem:[#allocation5 + $0x1130] sm:$0xff]
    %v714 = vld [vmem:[#allocation5 + $0x1138] sm:$0xff]
    %v715 = vld [vmem:[#allocation5 + $0x1140] sm:$0xff]
    %v716 = vld [vmem:[#allocation5 + $0x1148] sm:$0xff]
    %v717 = vld [vmem:[#allocation5 + $0x1150] sm:$0xff]
    %v718 = vld [vmem:[#allocation5 + $0x1158] sm:$0xff]
    %v719 = vld [vmem:[#allocation5 + $0x1160] sm:$0xff]
    %v720 = vld [vmem:[#allocation5 + $0x1168] sm:$0xff]
    %v721 = vld [vmem:[#allocation5 + $0x1170] sm:$0xff]
    %v722 = vld [vmem:[#allocation5 + $0x1178] sm:$0xff]
    %v723 = vld [vmem:[#allocation5 + $0x1180] sm:$0xff]
    %v724 = vld [vmem:[#allocation5 + $0x1188] sm:$0xff]
    %v725 = vld [vmem:[#allocation5 + $0x1190] sm:$0xff]
    %v726 = vld [vmem:[#allocation5 + $0x1198] sm:$0xff]
    %v727 = vld [vmem:[#allocation5 + $0x11a0] sm:$0xff]
    %v728 = vld [vmem:[#allocation5 + $0x11a8] sm:$0xff]
    %v729 = vld [vmem:[#allocation5 + $0x11b0] sm:$0xff]
    %v730 = vld [vmem:[#allocation5 + $0x11b8] sm:$0xff]
    %v731 = vld [vmem:[#allocation5 + $0x11c0] sm:$0xff]
    %v732 = vld [vmem:[#allocation5 + $0x11c8] sm:$0xff]
    %v733 = vld [vmem:[#allocation5 + $0x11d0] sm:$0xff]
    %v734 = vld [vmem:[#allocation5 + $0x11d8] sm:$0xff]
    %v735 = vld [vmem:[#allocation5 + $0x11e0] sm:$0xff]
    %v736 = vld [vmem:[#allocation5 + $0x11e8] sm:$0xff]
    %v737 = vld [vmem:[#allocation5 + $0x11f0] sm:$0xff]
    %v738 = vld [vmem:[#allocation5 + $0x11f8] sm:$0xff]
    %v739 = vld [vmem:[#allocation5 + $0x1200] sm:$0xff]
    %v740 = vld [vmem:[#allocation5 + $0x1208] sm:$0xff]
    %v741 = vld [vmem:[#allocation5 + $0x1210] sm:$0xff]
    %v742 = vld [vmem:[#allocation5 + $0x1218] sm:$0xff]
    %v743 = vld [vmem:[#allocation5 + $0x1220] sm:$0xff]
    %v744 = vld [vmem:[#allocation5 + $0x1228] sm:$0xff]
    %v745 = vld [vmem:[#allocation5 + $0x1230] sm:$0xff]
    %v746 = vld [vmem:[#allocation5 + $0x1238] sm:$0xff]
    %v747 = vld [vmem:[#allocation5 + $0x1240] sm:$0xff]
    %v748 = vld [vmem:[#allocation5 + $0x1248] sm:$0xff]
    %v749 = vld [vmem:[#allocation5 + $0x1250] sm:$0xff]
    %v750 = vld [vmem:[#allocation5 + $0x1258] sm:$0xff]
    %v751 = vld [vmem:[#allocation5 + $0x1260] sm:$0xff]
    %v752 = vld [vmem:[#allocation5 + $0x1268] sm:$0xff]
    %v753 = vld [vmem:[#allocation5 + $0x1270] sm:$0xff]
    %v754 = vld [vmem:[#allocation5 + $0x1278] sm:$0xff]
    %v755 = vld [vmem:[#allocation5 + $0x1280] sm:$0xff]
    %v756 = vld [vmem:[#allocation5 + $0x1288] sm:$0xff]
    %v757 = vld [vmem:[#allocation5 + $0x1290] sm:$0xff]
    %v758 = vld [vmem:[#allocation5 + $0x1298] sm:$0xff]
    %v759 = vld [vmem:[#allocation5 + $0x12a0] sm:$0xff]
    %v760 = vld [vmem:[#allocation5 + $0x12a8] sm:$0xff]
    %v761 = vld [vmem:[#allocation5 + $0x12b0] sm:$0xff]
    %v762 = vld [vmem:[#allocation5 + $0x12b8] sm:$0xff]
    %v763 = vld [vmem:[#allocation5 + $0x12c0] sm:$0xff]
    %v764 = vld [vmem:[#allocation5 + $0x12c8] sm:$0xff]
    %v765 = vld [vmem:[#allocation5 + $0x12d0] sm:$0xff]
    %v766 = vld [vmem:[#allocation5 + $0x12d8] sm:$0xff]
    %v767 = vld [vmem:[#allocation5 + $0x12e0] sm:$0xff]
    %v768 = vld [vmem:[#allocation5 + $0x12e8] sm:$0xff]
    %v769 = vld [vmem:[#allocation5 + $0x12f0] sm:$0xff]
    %v770 = vld [vmem:[#allocation5 + $0x12f8] sm:$0xff]
    %v771 = vld [vmem:[#allocation5 + $0x1300] sm:$0xff]
    %v772 = vld [vmem:[#allocation5 + $0x1308] sm:$0xff]
    %v773 = vld [vmem:[#allocation5 + $0x1310] sm:$0xff]
    %v774 = vld [vmem:[#allocation5 + $0x1318] sm:$0xff]
    %v775 = vld [vmem:[#allocation5 + $0x1320] sm:$0xff]
    %v776 = vld [vmem:[#allocation5 + $0x1328] sm:$0xff]
    %v777 = vld [vmem:[#allocation5 + $0x1330] sm:$0xff]
    %v778 = vld [vmem:[#allocation5 + $0x1338] sm:$0xff]
    %v779 = vld [vmem:[#allocation5 + $0x1340] sm:$0xff]
    %v780 = vld [vmem:[#allocation5 + $0x1348] sm:$0xff]
    %v781 = vld [vmem:[#allocation5 + $0x1350] sm:$0xff]
    %v782 = vld [vmem:[#allocation5 + $0x1358] sm:$0xff]
    %v783 = vld [vmem:[#allocation5 + $0x1360] sm:$0xff]
    %v784 = vld [vmem:[#allocation5 + $0x1368] sm:$0xff]
    %v785 = vld [vmem:[#allocation5 + $0x1370] sm:$0xff]
    %v786 = vld [vmem:[#allocation5 + $0x1378] sm:$0xff]
    %v787 = vld [vmem:[#allocation5 + $0x1380] sm:$0xff]
    %v788 = vld [vmem:[#allocation5 + $0x1388] sm:$0xff]
    %v789 = vld [vmem:[#allocation5 + $0x1390] sm:$0xff]
    %v790 = vld [vmem:[#allocation5 + $0x1398] sm:$0xff]
    %v791 = vld [vmem:[#allocation5 + $0x13a0] sm:$0xff]
    %v792 = vld [vmem:[#allocation5 + $0x13a8] sm:$0xff]
    %v793 = vld [vmem:[#allocation5 + $0x13b0] sm:$0xff]
    %v794 = vld [vmem:[#allocation5 + $0x13b8] sm:$0xff]
    %v795 = vld [vmem:[#allocation5 + $0x13c0] sm:$0xff]
    %v796 = vld [vmem:[#allocation5 + $0x13c8] sm:$0xff]
    %v797 = vld [vmem:[#allocation5 + $0x13d0] sm:$0xff]
    %v798 = vld [vmem:[#allocation5 + $0x13d8] sm:$0xff]
    %v799 = vld [vmem:[#allocation5 + $0x13e0] sm:$0xff]
    %v800 = vld [vmem:[#allocation5 + $0x13e8] sm:$0xff]
    %v801 = vld [vmem:[#allocation5 + $0x13f0] sm:$0xff]
    %v802 = vld [vmem:[#allocation5 + $0x13f8] sm:$0xff]
    %v803 = vld [vmem:[#allocation5 + $0x1400] sm:$0xff]
    %v804 = vld [vmem:[#allocation5 + $0x1408] sm:$0xff]
    %v805 = vld [vmem:[#allocation5 + $0x1410] sm:$0xff]
    %v806 = vld [vmem:[#allocation5 + $0x1418] sm:$0xff]
    %v807 = vld [vmem:[#allocation5 + $0x1420] sm:$0xff]
    %v808 = vld [vmem:[#allocation5 + $0x1428] sm:$0xff]
    %v809 = vld [vmem:[#allocation5 + $0x1430] sm:$0xff]
    %v810 = vld [vmem:[#allocation5 + $0x1438] sm:$0xff]
    %v811 = vld [vmem:[#allocation5 + $0x1440] sm:$0xff]
    %v812 = vld [vmem:[#allocation5 + $0x1448] sm:$0xff]
    %v813 = vld [vmem:[#allocation5 + $0x1450] sm:$0xff]
    %v814 = vld [vmem:[#allocation5 + $0x1458] sm:$0xff]
    %v815 = vld [vmem:[#allocation5 + $0x1460] sm:$0xff]
    %v816 = vld [vmem:[#allocation5 + $0x1468] sm:$0xff]
    %v817 = vld [vmem:[#allocation5 + $0x1470] sm:$0xff]
    %v818 = vld [vmem:[#allocation5 + $0x1478] sm:$0xff]
    %v819 = vld [vmem:[#allocation5 + $0x1480] sm:$0xff]
    %v820 = vld [vmem:[#allocation5 + $0x1488] sm:$0xff]
    %v821 = vld [vmem:[#allocation5 + $0x1490] sm:$0xff]
    %v822 = vld [vmem:[#allocation5 + $0x1498] sm:$0xff]
    %v823 = vld [vmem:[#allocation5 + $0x14a0] sm:$0xff]
    %v824 = vld [vmem:[#allocation5 + $0x14a8] sm:$0xff]
    %v825 = vld [vmem:[#allocation5 + $0x14b0] sm:$0xff]
    %v826 = vld [vmem:[#allocation5 + $0x14b8] sm:$0xff]
    %v827 = vld [vmem:[#allocation5 + $0x14c0] sm:$0xff]
    %v828 = vld [vmem:[#allocation5 + $0x14c8] sm:$0xff]
    %v829 = vld [vmem:[#allocation5 + $0x14d0] sm:$0xff]
    %v830 = vld [vmem:[#allocation5 + $0x14d8] sm:$0xff]
    %v831 = vld [vmem:[#allocation5 + $0x14e0] sm:$0xff]
    %v832 = vld [vmem:[#allocation5 + $0x14e8] sm:$0xff]
    %v833 = vld [vmem:[#allocation5 + $0x14f0] sm:$0xff]
    %v834 = vld [vmem:[#allocation5 + $0x14f8] sm:$0xff]
    %v835 = vld [vmem:[#allocation5 + $0x1500] sm:$0xff]
    %v836 = vld [vmem:[#allocation5 + $0x1508] sm:$0xff]
    %v837 = vld [vmem:[#allocation5 + $0x1510] sm:$0xff]
    %v838 = vld [vmem:[#allocation5 + $0x1518] sm:$0xff]
    %v839 = vld [vmem:[#allocation5 + $0x1520] sm:$0xff]
    %v840 = vld [vmem:[#allocation5 + $0x1528] sm:$0xff]
    %v841 = vld [vmem:[#allocation5 + $0x1530] sm:$0xff]
    %v842 = vld [vmem:[#allocation5 + $0x1538] sm:$0xff]
    %v843 = vld [vmem:[#allocation5 + $0x1540] sm:$0xff]
    %v844 = vld [vmem:[#allocation5 + $0x1548] sm:$0xff]
    %v845 = vld [vmem:[#allocation5 + $0x1550] sm:$0xff]
    %v846 = vld [vmem:[#allocation5 + $0x1558] sm:$0xff]
    %v847 = vld [vmem:[#allocation5 + $0x1560] sm:$0xff]
    %v848 = vld [vmem:[#allocation5 + $0x1568] sm:$0xff]
    %v849 = vld [vmem:[#allocation5 + $0x1570] sm:$0xff]
    %v850 = vld [vmem:[#allocation5 + $0x1578] sm:$0xff]
    %v851 = vld [vmem:[#allocation5 + $0x1580] sm:$0xff]
    %v852 = vld [vmem:[#allocation5 + $0x1588] sm:$0xff]
    %v853 = vld [vmem:[#allocation5 + $0x1590] sm:$0xff]
    %v854 = vld [vmem:[#allocation5 + $0x1598] sm:$0xff]
    %v855 = vld [vmem:[#allocation5 + $0x15a0] sm:$0xff]
    %v856 = vld [vmem:[#allocation5 + $0x15a8] sm:$0xff]
    %v857 = vld [vmem:[#allocation5 + $0x15b0] sm:$0xff]
    %v858 = vld [vmem:[#allocation5 + $0x15b8] sm:$0xff]
    %v859 = vld [vmem:[#allocation5 + $0x15c0] sm:$0xff]
    %v860 = vld [vmem:[#allocation5 + $0x15c8] sm:$0xff]
    %v861 = vld [vmem:[#allocation5 + $0x15d0] sm:$0xff]
    %v862 = vld [vmem:[#allocation5 + $0x15d8] sm:$0xff]
    %v863 = vld [vmem:[#allocation5 + $0x15e0] sm:$0xff]
    %v864 = vld [vmem:[#allocation5 + $0x15e8] sm:$0xff]
    %v865 = vld [vmem:[#allocation5 + $0x15f0] sm:$0xff]
    %v866 = vld [vmem:[#allocation5 + $0x15f8] sm:$0xff]
    %v867 = vld [vmem:[#allocation5 + $0x1600] sm:$0xff]
    %v868 = vld [vmem:[#allocation5 + $0x1608] sm:$0xff]
    %v869 = vld [vmem:[#allocation5 + $0x1610] sm:$0xff]
    %v870 = vld [vmem:[#allocation5 + $0x1618] sm:$0xff]
    %v871 = vld [vmem:[#allocation5 + $0x1620] sm:$0xff]
    %v872 = vld [vmem:[#allocation5 + $0x1628] sm:$0xff]
    %v873 = vld [vmem:[#allocation5 + $0x1630] sm:$0xff]
    %v874 = vld [vmem:[#allocation5 + $0x1638] sm:$0xff]
    %v875 = vld [vmem:[#allocation5 + $0x1640] sm:$0xff]
    %v876 = vld [vmem:[#allocation5 + $0x1648] sm:$0xff]
    %v877 = vld [vmem:[#allocation5 + $0x1650] sm:$0xff]
    %v878 = vld [vmem:[#allocation5 + $0x1658] sm:$0xff]
    %v879 = vld [vmem:[#allocation5 + $0x1660] sm:$0xff]
    %v880 = vld [vmem:[#allocation5 + $0x1668] sm:$0xff]
    %v881 = vld [vmem:[#allocation5 + $0x1670] sm:$0xff]
    %v882 = vld [vmem:[#allocation5 + $0x1678] sm:$0xff]
    %v883 = vld [vmem:[#allocation5 + $0x1680] sm:$0xff]
    %v884 = vld [vmem:[#allocation5 + $0x1688] sm:$0xff]
    %v885 = vld [vmem:[#allocation5 + $0x1690] sm:$0xff]
    %v886 = vld [vmem:[#allocation5 + $0x1698] sm:$0xff]
    %v887 = vld [vmem:[#allocation5 + $0x16a0] sm:$0xff]
    %v888 = vld [vmem:[#allocation5 + $0x16a8] sm:$0xff]
    %v889 = vld [vmem:[#allocation5 + $0x16b0] sm:$0xff]
    %v890 = vld [vmem:[#allocation5 + $0x16b8] sm:$0xff]
    %v891 = vld [vmem:[#allocation5 + $0x16c0] sm:$0xff]
    %v892 = vld [vmem:[#allocation5 + $0x16c8] sm:$0xff]
    %v893 = vld [vmem:[#allocation5 + $0x16d0] sm:$0xff]
    %v894 = vld [vmem:[#allocation5 + $0x16d8] sm:$0xff]
    %v895 = vld [vmem:[#allocation5 + $0x16e0] sm:$0xff]
    %v896 = vld [vmem:[#allocation5 + $0x16e8] sm:$0xff]
    %v897 = vld [vmem:[#allocation5 + $0x16f0] sm:$0xff]
    %v898 = vld [vmem:[#allocation5 + $0x16f8] sm:$0xff]
    %v899 = vld [vmem:[#allocation5 + $0x1700] sm:$0xff]
    %v900 = vld [vmem:[#allocation5 + $0x1708] sm:$0xff]
    %v901 = vld [vmem:[#allocation5 + $0x1710] sm:$0xff]
    %v902 = vld [vmem:[#allocation5 + $0x1718] sm:$0xff]
    %v903 = vld [vmem:[#allocation5 + $0x1720] sm:$0xff]
    %v904 = vld [vmem:[#allocation5 + $0x1728] sm:$0xff]
    %v905 = vld [vmem:[#allocation5 + $0x1730] sm:$0xff]
    %v906 = vld [vmem:[#allocation5 + $0x1738] sm:$0xff]
    %v907 = vld [vmem:[#allocation5 + $0x1740] sm:$0xff]
    %v908 = vld [vmem:[#allocation5 + $0x1748] sm:$0xff]
    %v909 = vld [vmem:[#allocation5 + $0x1750] sm:$0xff]
    %v910 = vld [vmem:[#allocation5 + $0x1758] sm:$0xff]
    %v911 = vld [vmem:[#allocation5 + $0x1760] sm:$0xff]
    %v912 = vld [vmem:[#allocation5 + $0x1768] sm:$0xff]
    %v913 = vld [vmem:[#allocation5 + $0x1770] sm:$0xff]
    %v914 = vld [vmem:[#allocation5 + $0x1778] sm:$0xff]
    %v915 = vld [vmem:[#allocation5 + $0x1780] sm:$0xff]
    %v916 = vld [vmem:[#allocation5 + $0x1788] sm:$0xff]
    %v917 = vld [vmem:[#allocation5 + $0x1790] sm:$0xff]
    %v918 = vld [vmem:[#allocation5 + $0x1798] sm:$0xff]
    %v919 = vld [vmem:[#allocation5 + $0x17a0] sm:$0xff]
    %v920 = vld [vmem:[#allocation5 + $0x17a8] sm:$0xff]
    %v921 = vld [vmem:[#allocation5 + $0x17b0] sm:$0xff]
    %v922 = vld [vmem:[#allocation5 + $0x17b8] sm:$0xff]
    %v923 = vld [vmem:[#allocation5 + $0x17c0] sm:$0xff]
    %v924 = vld [vmem:[#allocation5 + $0x17c8] sm:$0xff]
    %v925 = vld [vmem:[#allocation5 + $0x17d0] sm:$0xff]
    %v926 = vld [vmem:[#allocation5 + $0x17d8] sm:$0xff]
    %v927 = vld [vmem:[#allocation5 + $0x17e0] sm:$0xff]
    %v928 = vld [vmem:[#allocation5 + $0x17e8] sm:$0xff]
    %v929 = vld [vmem:[#allocation5 + $0x17f0] sm:$0xff]
    %v930 = vld [vmem:[#allocation5 + $0x17f8] sm:$0xff]
    %v931 = vld [vmem:[#allocation5 + $0x1800] sm:$0xff]
    %v932 = vld [vmem:[#allocation5 + $0x1808] sm:$0xff]
    %v933 = vld [vmem:[#allocation5 + $0x1810] sm:$0xff]
    %v934 = vld [vmem:[#allocation5 + $0x1818] sm:$0xff]
    %v935 = vld [vmem:[#allocation5 + $0x1820] sm:$0xff]
    %v936 = vld [vmem:[#allocation5 + $0x1828] sm:$0xff]
    %v937 = vld [vmem:[#allocation5 + $0x1830] sm:$0xff]
    %v938 = vld [vmem:[#allocation5 + $0x1838] sm:$0xff]
    %v939 = vld [vmem:[#allocation5 + $0x1840] sm:$0xff]
    %v940 = vld [vmem:[#allocation5 + $0x1848] sm:$0xff]
    %v941 = vld [vmem:[#allocation5 + $0x1850] sm:$0xff]
    %v942 = vld [vmem:[#allocation5 + $0x1858] sm:$0xff]
    %v943 = vld [vmem:[#allocation5 + $0x1860] sm:$0xff]
    %v944 = vld [vmem:[#allocation5 + $0x1868] sm:$0xff]
    %v945 = vld [vmem:[#allocation5 + $0x1870] sm:$0xff]
    %v946 = vld [vmem:[#allocation5 + $0x1878] sm:$0xff]
    %v947 = vld [vmem:[#allocation5 + $0x1880] sm:$0xff]
    %v948 = vld [vmem:[#allocation5 + $0x1888] sm:$0xff]
    %v949 = vld [vmem:[#allocation5 + $0x1890] sm:$0xff]
    %v950 = vld [vmem:[#allocation5 + $0x1898] sm:$0xff]
    %v951 = vld [vmem:[#allocation5 + $0x18a0] sm:$0xff]
    %v952 = vld [vmem:[#allocation5 + $0x18a8] sm:$0xff]
    %v953 = vld [vmem:[#allocation5 + $0x18b0] sm:$0xff]
    %v954 = vld [vmem:[#allocation5 + $0x18b8] sm:$0xff]
    %v955 = vld [vmem:[#allocation5 + $0x18c0] sm:$0xff]
    %v956 = vld [vmem:[#allocation5 + $0x18c8] sm:$0xff]
    %v957 = vld [vmem:[#allocation5 + $0x18d0] sm:$0xff]
    %v958 = vld [vmem:[#allocation5 + $0x18d8] sm:$0xff]
    %v959 = vld [vmem:[#allocation5 + $0x18e0] sm:$0xff]
    %v960 = vld [vmem:[#allocation5 + $0x18e8] sm:$0xff]
    %v961 = vld [vmem:[#allocation5 + $0x18f0] sm:$0xff]
    %v962 = vld [vmem:[#allocation5 + $0x18f8] sm:$0xff]
    %v963 = vld [vmem:[#allocation5 + $0x1900] sm:$0xff]
    %v964 = vld [vmem:[#allocation5 + $0x1908] sm:$0xff]
    %v965 = vld [vmem:[#allocation5 + $0x1910] sm:$0xff]
    %v966 = vld [vmem:[#allocation5 + $0x1918] sm:$0xff]
    %v967 = vld [vmem:[#allocation5 + $0x1920] sm:$0xff]
    %v968 = vld [vmem:[#allocation5 + $0x1928] sm:$0xff]
    %v969 = vld [vmem:[#allocation5 + $0x1930] sm:$0xff]
    %v970 = vld [vmem:[#allocation5 + $0x1938] sm:$0xff]
    %v971 = vld [vmem:[#allocation5 + $0x1940] sm:$0xff]
    %v972 = vld [vmem:[#allocation5 + $0x1948] sm:$0xff]
    %v973 = vld [vmem:[#allocation5 + $0x1950] sm:$0xff]
    %v974 = vld [vmem:[#allocation5 + $0x1958] sm:$0xff]
    %v975 = vld [vmem:[#allocation5 + $0x1960] sm:$0xff]
    %v976 = vld [vmem:[#allocation5 + $0x1968] sm:$0xff]
    %v977 = vld [vmem:[#allocation5 + $0x1970] sm:$0xff]
    %v978 = vld [vmem:[#allocation5 + $0x1978] sm:$0xff]
    %v979 = vld [vmem:[#allocation5 + $0x1980] sm:$0xff]
    %v980 = vld [vmem:[#allocation5 + $0x1988] sm:$0xff]
    %v981 = vld [vmem:[#allocation5 + $0x1990] sm:$0xff]
    %v982 = vld [vmem:[#allocation5 + $0x1998] sm:$0xff]
    %v983 = vld [vmem:[#allocation5 + $0x19a0] sm:$0xff]
    %v984 = vld [vmem:[#allocation5 + $0x19a8] sm:$0xff]
    %v985 = vld [vmem:[#allocation5 + $0x19b0] sm:$0xff]
    %v986 = vld [vmem:[#allocation5 + $0x19b8] sm:$0xff]
    %v987 = vld [vmem:[#allocation5 + $0x19c0] sm:$0xff]
    %v988 = vld [vmem:[#allocation5 + $0x19c8] sm:$0xff]
    %v989 = vld [vmem:[#allocation5 + $0x19d0] sm:$0xff]
    %v990 = vld [vmem:[#allocation5 + $0x19d8] sm:$0xff]
    %v991 = vld [vmem:[#allocation5 + $0x19e0] sm:$0xff]
    %v992 = vld [vmem:[#allocation5 + $0x19e8] sm:$0xff]
    %v993 = vld [vmem:[#allocation5 + $0x19f0] sm:$0xff]
    %v994 = vld [vmem:[#allocation5 + $0x19f8] sm:$0xff]
    %v995 = vld [vmem:[#allocation5 + $0x1a00] sm:$0xff]
    %v996 = vld [vmem:[#allocation5 + $0x1a08] sm:$0xff]
    %v997 = vld [vmem:[#allocation5 + $0x1a10] sm:$0xff]
    %v998 = vld [vmem:[#allocation5 + $0x1a18] sm:$0xff]
    %v999 = vld [vmem:[#allocation5 + $0x1a20] sm:$0xff]
    %v1000 = vld [vmem:[#allocation5 + $0x1a28] sm:$0xff]
    %v1001 = vld [vmem:[#allocation5 + $0x1a30] sm:$0xff]
    %v1002 = vld [vmem:[#allocation5 + $0x1a38] sm:$0xff]
    %v1003 = vld [vmem:[#allocation5 + $0x1a40] sm:$0xff]
    %v1004 = vld [vmem:[#allocation5 + $0x1a48] sm:$0xff]
    %v1005 = vld [vmem:[#allocation5 + $0x1a50] sm:$0xff]
    %v1006 = vld [vmem:[#allocation5 + $0x1a58] sm:$0xff]
    %v1007 = vld [vmem:[#allocation5 + $0x1a60] sm:$0xff]
    %v1008 = vld [vmem:[#allocation5 + $0x1a68] sm:$0xff]
    %v1009 = vld [vmem:[#allocation5 + $0x1a70] sm:$0xff]
    %v1010 = vld [vmem:[#allocation5 + $0x1a78] sm:$0xff]
    %v1011 = vld [vmem:[#allocation5 + $0x1a80] sm:$0xff]
    %v1012 = vld [vmem:[#allocation5 + $0x1a88] sm:$0xff]
    %v1013 = vld [vmem:[#allocation5 + $0x1a90] sm:$0xff]
    %v1014 = vld [vmem:[#allocation5 + $0x1a98] sm:$0xff]
    %v1015 = vld [vmem:[#allocation5 + $0x1aa0] sm:$0xff]
    %v1016 = vld [vmem:[#allocation5 + $0x1aa8] sm:$0xff]
    %v1017 = vld [vmem:[#allocation5 + $0x1ab0] sm:$0xff]
    %v1018 = vld [vmem:[#allocation5 + $0x1ab8] sm:$0xff]
    %v1019 = vld [vmem:[#allocation5 + $0x1ac0] sm:$0xff]
    %v1020 = vld [vmem:[#allocation5 + $0x1ac8] sm:$0xff]
    %v1021 = vld [vmem:[#allocation5 + $0x1ad0] sm:$0xff]
    %v1022 = vld [vmem:[#allocation5 + $0x1ad8] sm:$0xff]
    %v1023 = vld [vmem:[#allocation5 + $0x1ae0] sm:$0xff]
    %v1024 = vld [vmem:[#allocation5 + $0x1ae8] sm:$0xff]
    %v1025 = vld [vmem:[#allocation5 + $0x1af0] sm:$0xff]
    %v1026 = vld [vmem:[#allocation5 + $0x1af8] sm:$0xff]
    %v1027 = vld [vmem:[#allocation5 + $0x1b00] sm:$0xff]
    %v1028 = vld [vmem:[#allocation5 + $0x1b08] sm:$0xff]
    %v1029 = vld [vmem:[#allocation5 + $0x1b10] sm:$0xff]
    %v1030 = vld [vmem:[#allocation5 + $0x1b18] sm:$0xff]
    %v1031 = vld [vmem:[#allocation5 + $0x1b20] sm:$0xff]
    %v1032 = vld [vmem:[#allocation5 + $0x1b28] sm:$0xff]
    %v1033 = vld [vmem:[#allocation5 + $0x1b30] sm:$0xff]
    %v1034 = vld [vmem:[#allocation5 + $0x1b38] sm:$0xff]
    %v1035 = vld [vmem:[#allocation5 + $0x1b40] sm:$0xff]
    %v1036 = vld [vmem:[#allocation5 + $0x1b48] sm:$0xff]
    %v1037 = vld [vmem:[#allocation5 + $0x1b50] sm:$0xff]
    %v1038 = vld [vmem:[#allocation5 + $0x1b58] sm:$0xff]
    %v1039 = vld [vmem:[#allocation5 + $0x1b60] sm:$0xff]
    %v1040 = vld [vmem:[#allocation5 + $0x1b68] sm:$0xff]
    %v1041 = vld [vmem:[#allocation5 + $0x1b70] sm:$0xff]
    %v1042 = vld [vmem:[#allocation5 + $0x1b78] sm:$0xff]
    %v1043 = vld [vmem:[#allocation5 + $0x1b80] sm:$0xff]
    %v1044 = vld [vmem:[#allocation5 + $0x1b88] sm:$0xff]
    %v1045 = vld [vmem:[#allocation5 + $0x1b90] sm:$0xff]
    %v1046 = vld [vmem:[#allocation5 + $0x1b98] sm:$0xff]
    %v1047 = vld [vmem:[#allocation5 + $0x1ba0] sm:$0xff]
    %v1048 = vld [vmem:[#allocation5 + $0x1ba8] sm:$0xff]
    %v1049 = vld [vmem:[#allocation5 + $0x1bb0] sm:$0xff]
    %v1050 = vld [vmem:[#allocation5 + $0x1bb8] sm:$0xff]
    %v1051 = vld [vmem:[#allocation5 + $0x1bc0] sm:$0xff]
    %v1052 = vld [vmem:[#allocation5 + $0x1bc8] sm:$0xff]
    %v1053 = vld [vmem:[#allocation5 + $0x1bd0] sm:$0xff]
    %v1054 = vld [vmem:[#allocation5 + $0x1bd8] sm:$0xff]
    %v1055 = vld [vmem:[#allocation5 + $0x1be0] sm:$0xff]
    %v1056 = vld [vmem:[#allocation5 + $0x1be8] sm:$0xff]
    %v1057 = vld [vmem:[#allocation5 + $0x1bf0] sm:$0xff]
    %v1058 = vld [vmem:[#allocation5 + $0x1bf8] sm:$0xff]
    %v1059 = vld [vmem:[#allocation5 + $0x1c00] sm:$0xff]
    %v1060 = vld [vmem:[#allocation5 + $0x1c08] sm:$0xff]
    %v1061 = vld [vmem:[#allocation5 + $0x1c10] sm:$0xff]
    %v1062 = vld [vmem:[#allocation5 + $0x1c18] sm:$0xff]
    %v1063 = vld [vmem:[#allocation5 + $0x1c20] sm:$0xff]
    %v1064 = vld [vmem:[#allocation5 + $0x1c28] sm:$0xff]
    %v1065 = vld [vmem:[#allocation5 + $0x1c30] sm:$0xff]
    %v1066 = vld [vmem:[#allocation5 + $0x1c38] sm:$0xff]
    %v1067 = vld [vmem:[#allocation5 + $0x1c40] sm:$0xff]
    %v1068 = vld [vmem:[#allocation5 + $0x1c48] sm:$0xff]
    %v1069 = vld [vmem:[#allocation5 + $0x1c50] sm:$0xff]
    %v1070 = vld [vmem:[#allocation5 + $0x1c58] sm:$0xff]
    %v1071 = vld [vmem:[#allocation5 + $0x1c60] sm:$0xff]
    %v1072 = vld [vmem:[#allocation5 + $0x1c68] sm:$0xff]
    %v1073 = vld [vmem:[#allocation5 + $0x1c70] sm:$0xff]
    %v1074 = vld [vmem:[#allocation5 + $0x1c78] sm:$0xff]
    %v1075 = vld [vmem:[#allocation5 + $0x1c80] sm:$0xff]
    %v1076 = vld [vmem:[#allocation5 + $0x1c88] sm:$0xff]
    %v1077 = vld [vmem:[#allocation5 + $0x1c90] sm:$0xff]
    %v1078 = vld [vmem:[#allocation5 + $0x1c98] sm:$0xff]
    %v1079 = vld [vmem:[#allocation5 + $0x1ca0] sm:$0xff]
    %v1080 = vld [vmem:[#allocation5 + $0x1ca8] sm:$0xff]
    %v1081 = vld [vmem:[#allocation5 + $0x1cb0] sm:$0xff]
    %v1082 = vld [vmem:[#allocation5 + $0x1cb8] sm:$0xff]
    %v1083 = vld [vmem:[#allocation5 + $0x1cc0] sm:$0xff]
    %v1084 = vld [vmem:[#allocation5 + $0x1cc8] sm:$0xff]
    %v1085 = vld [vmem:[#allocation5 + $0x1cd0] sm:$0xff]
    %v1086 = vld [vmem:[#allocation5 + $0x1cd8] sm:$0xff]
    %v1087 = vld [vmem:[#allocation5 + $0x1ce0] sm:$0xff]
    %v1088 = vld [vmem:[#allocation5 + $0x1ce8] sm:$0xff]
    %v1089 = vld [vmem:[#allocation5 + $0x1cf0] sm:$0xff]
    %v1090 = vld [vmem:[#allocation5 + $0x1cf8] sm:$0xff]
    %v1091 = vld [vmem:[#allocation5 + $0x1d00] sm:$0xff]
    %v1092 = vld [vmem:[#allocation5 + $0x1d08] sm:$0xff]
    %v1093 = vld [vmem:[#allocation5 + $0x1d10] sm:$0xff]
    %v1094 = vld [vmem:[#allocation5 + $0x1d18] sm:$0xff]
    %v1095 = vld [vmem:[#allocation5 + $0x1d20] sm:$0xff]
    %v1096 = vld [vmem:[#allocation5 + $0x1d28] sm:$0xff]
    %v1097 = vld [vmem:[#allocation5 + $0x1d30] sm:$0xff]
    %v1098 = vld [vmem:[#allocation5 + $0x1d38] sm:$0xff]
    %v1099 = vld [vmem:[#allocation5 + $0x1d40] sm:$0xff]
    %v1100 = vld [vmem:[#allocation5 + $0x1d48] sm:$0xff]
    %v1101 = vld [vmem:[#allocation5 + $0x1d50] sm:$0xff]
    %v1102 = vld [vmem:[#allocation5 + $0x1d58] sm:$0xff]
    %v1103 = vld [vmem:[#allocation5 + $0x1d60] sm:$0xff]
    %v1104 = vld [vmem:[#allocation5 + $0x1d68] sm:$0xff]
    %v1105 = vld [vmem:[#allocation5 + $0x1d70] sm:$0xff]
    %v1106 = vld [vmem:[#allocation5 + $0x1d78] sm:$0xff]
    %v1107 = vld [vmem:[#allocation7] sm:$0x3]
    %v1109 = vlaneseq
    %v1110 = vshrl.u32 %v1109, 7
    %v1111 = vsub.s32 0, %v1110
    %v1112 = vrot.slane %v1107, %v1111
    %v1113 = vlaneseq
    %v1114 = vshrl.u32 %v1113, 7
    %v1115 = vsub.s32 1, %v1114
    %v1116 = vrot.slane %v1107, %v1115
    %v1149 = vunpack.c.l.b16 %v133
    %v1150 = vunpack.c.h.b16 %v133
    %v1151 = vunpack.c.l.b16 %v134
    %v1152 = vunpack.c.h.b16 %v134
    %v1153 = vunpack.c.l.b16 %v135
    %v1154 = vunpack.c.h.b16 %v135
    %v1155 = vunpack.c.l.b16 %v136
    %v1156 = vunpack.c.h.b16 %v136
    %v1157 = vunpack.c.l.b16 %v137
    %v1158 = vunpack.c.h.b16 %v137
    %v1159 = vunpack.c.l.b16 %v138
    %v1160 = vunpack.c.h.b16 %v138
    %v1161 = vunpack.c.l.b16 %v139
    %v1162 = vunpack.c.h.b16 %v139
    %v1163 = vunpack.c.l.b16 %v140
    %v1164 = vunpack.c.h.b16 %v140
    %v1165 = vunpack.c.l.b16 %v141
    %v1166 = vunpack.c.h.b16 %v141
    %v1167 = vunpack.c.l.b16 %v142
    %v1168 = vunpack.c.h.b16 %v142
    %v1169 = vunpack.c.l.b16 %v143
    %v1170 = vunpack.c.h.b16 %v143
    %v1171 = vunpack.c.l.b16 %v144
    %v1172 = vunpack.c.h.b16 %v144
    %v1173 = vunpack.c.l.b16 %v145
    %v1174 = vunpack.c.h.b16 %v145
    %v1175 = vunpack.c.l.b16 %v146
    %v1176 = vunpack.c.h.b16 %v146
    %v1177 = vunpack.c.l.b16 %v147
    %v1178 = vunpack.c.h.b16 %v147
    %v1179 = vunpack.c.l.b16 %v148
    %v1180 = vunpack.c.h.b16 %v148
    %v1181 = vunpack.c.l.b16 %v149
    %v1182 = vunpack.c.h.b16 %v149
    %v1183 = vunpack.c.l.b16 %v150
    %v1184 = vunpack.c.h.b16 %v150
    %v1185 = vunpack.c.l.b16 %v151
    %v1186 = vunpack.c.h.b16 %v151
    %v1187 = vunpack.c.l.b16 %v152
    %v1188 = vunpack.c.h.b16 %v152
    %v1189 = vunpack.c.l.b16 %v153
    %v1190 = vunpack.c.h.b16 %v153
    %v1191 = vunpack.c.l.b16 %v154
    %v1192 = vunpack.c.h.b16 %v154
    %v1193 = vunpack.c.l.b16 %v155
    %v1194 = vunpack.c.h.b16 %v155
    %v1195 = vunpack.c.l.b16 %v156
    %v1196 = vunpack.c.h.b16 %v156
    %v1197 = vunpack.c.l.b16 %v157
    %v1198 = vunpack.c.h.b16 %v157
    %v1199 = vunpack.c.l.b16 %v158
    %v1200 = vunpack.c.h.b16 %v158
    %v1201 = vunpack.c.l.b16 %v159
    %v1202 = vunpack.c.h.b16 %v159
    %v1203 = vunpack.c.l.b16 %v160
    %v1204 = vunpack.c.h.b16 %v160
    %v1205 = vunpack.c.l.b16 %v161
    %v1206 = vunpack.c.h.b16 %v161
    %v1207 = vunpack.c.l.b16 %v162
    %v1208 = vpack.c.b16 %v1149, %v1149
    %v1209 = vpack.c.b16 %v1150, %v1150
    %v1210 = vpack.c.b16 %v1151, %v1151
    %v1211 = vpack.c.b16 %v1152, %v1152
    %v1212 = vpack.c.b16 %v1153, %v1153
    %v1213 = vpack.c.b16 %v1154, %v1154
    %v1214 = vpack.c.b16 %v1155, %v1155
    %v1215 = vpack.c.b16 %v1156, %v1156
    %v1216 = vpack.c.b16 %v1157, %v1157
    %v1217 = vpack.c.b16 %v1158, %v1158
    %v1218 = vpack.c.b16 %v1159, %v1159
    %v1219 = vpack.c.b16 %v1160, %v1160
    %v1220 = vpack.c.b16 %v1161, %v1161
    %v1221 = vpack.c.b16 %v1162, %v1162
    %v1222 = vpack.c.b16 %v1163, %v1163
    %v1223 = vpack.c.b16 %v1164, %v1164
    %v1224 = vpack.c.b16 %v1165, %v1165
    %v1225 = vpack.c.b16 %v1166, %v1166
    %v1226 = vpack.c.b16 %v1167, %v1167
    %v1227 = vpack.c.b16 %v1168, %v1168
    %v1228 = vpack.c.b16 %v1169, %v1169
    %v1229 = vpack.c.b16 %v1170, %v1170
    %v1230 = vpack.c.b16 %v1171, %v1171
    %v1231 = vpack.c.b16 %v1172, %v1172
    %v1232 = vpack.c.b16 %v1173, %v1173
    %v1233 = vpack.c.b16 %v1174, %v1174
    %v1234 = vpack.c.b16 %v1175, %v1175
    %v1235 = vpack.c.b16 %v1176, %v1176
    %v1236 = vpack.c.b16 %v1177, %v1177
    %v1237 = vpack.c.b16 %v1178, %v1178
    %v1238 = vpack.c.b16 %v1179, %v1179
    %v1239 = vpack.c.b16 %v1180, %v1180
    %v1240 = vpack.c.b16 %v1181, %v1181
    %v1241 = vpack.c.b16 %v1182, %v1182
    %v1242 = vpack.c.b16 %v1183, %v1183
    %v1243 = vpack.c.b16 %v1184, %v1184
    %v1244 = vpack.c.b16 %v1185, %v1185
    %v1245 = vpack.c.b16 %v1186, %v1186
    %v1246 = vpack.c.b16 %v1187, %v1187
    %v1247 = vpack.c.b16 %v1188, %v1188
    %v1248 = vpack.c.b16 %v1189, %v1189
    %v1249 = vpack.c.b16 %v1190, %v1190
    %v1250 = vpack.c.b16 %v1191, %v1191
    %v1251 = vpack.c.b16 %v1192, %v1192
    %v1252 = vpack.c.b16 %v1193, %v1193
    %v1253 = vpack.c.b16 %v1194, %v1194
    %v1254 = vpack.c.b16 %v1195, %v1195
    %v1255 = vpack.c.b16 %v1196, %v1196
    %v1256 = vpack.c.b16 %v1197, %v1197
    %v1257 = vpack.c.b16 %v1198, %v1198
    %v1258 = vpack.c.b16 %v1199, %v1199
    %v1259 = vpack.c.b16 %v1200, %v1200
    %v1260 = vpack.c.b16 %v1201, %v1201
    %v1261 = vpack.c.b16 %v1202, %v1202
    %v1262 = vpack.c.b16 %v1203, %v1203
    %v1263 = vpack.c.b16 %v1204, %v1204
    %v1264 = vpack.c.b16 %v1205, %v1205
    %v1265 = vpack.c.b16 %v1206, %v1206
    %v1266 = vpack.c.b16 %v1207, %v1207
    %v2270 = vunpack.c.l.b16 %v163
    %v2271 = vunpack.c.h.b16 %v163
    %v2272 = vunpack.c.l.b16 %v164
    %v2273 = vunpack.c.h.b16 %v164
    %v2274 = vunpack.c.l.b16 %v165
    %v2275 = vunpack.c.h.b16 %v165
    %v2276 = vunpack.c.l.b16 %v166
    %v2277 = vunpack.c.h.b16 %v166
    %v2278 = vunpack.c.l.b16 %v167
    %v2279 = vunpack.c.h.b16 %v167
    %v2280 = vunpack.c.l.b16 %v168
    %v2281 = vunpack.c.h.b16 %v168
    %v2282 = vunpack.c.l.b16 %v169
    %v2283 = vunpack.c.h.b16 %v169
    %v2284 = vunpack.c.l.b16 %v170
    %v2285 = vunpack.c.h.b16 %v170
    %v2286 = vunpack.c.l.b16 %v171
    %v2287 = vunpack.c.h.b16 %v171
    %v2288 = vunpack.c.l.b16 %v172
    %v2289 = vunpack.c.h.b16 %v172
    %v2290 = vunpack.c.l.b16 %v173
    %v2291 = vunpack.c.h.b16 %v173
    %v2292 = vunpack.c.l.b16 %v174
    %v2293 = vunpack.c.h.b16 %v174
    %v2294 = vunpack.c.l.b16 %v175
    %v2295 = vunpack.c.h.b16 %v175
    %v2296 = vunpack.c.l.b16 %v176
    %v2297 = vunpack.c.h.b16 %v176
    %v2298 = vunpack.c.l.b16 %v177
    %v2299 = vunpack.c.h.b16 %v177
    %v2300 = vunpack.c.l.b16 %v178
    %v2301 = vunpack.c.h.b16 %v178
    %v2302 = vunpack.c.l.b16 %v179
    %v2303 = vunpack.c.h.b16 %v179
    %v2304 = vunpack.c.l.b16 %v180
    %v2305 = vunpack.c.h.b16 %v180
    %v2306 = vunpack.c.l.b16 %v181
    %v2307 = vunpack.c.h.b16 %v181
    %v2308 = vunpack.c.l.b16 %v182
    %v2309 = vunpack.c.h.b16 %v182
    %v2310 = vunpack.c.l.b16 %v183
    %v2311 = vunpack.c.h.b16 %v183
    %v2312 = vunpack.c.l.b16 %v184
    %v2313 = vunpack.c.h.b16 %v184
    %v2314 = vunpack.c.l.b16 %v185
    %v2315 = vunpack.c.h.b16 %v185
    %v2316 = vunpack.c.l.b16 %v186
    %v2317 = vunpack.c.h.b16 %v186
    %v2318 = vunpack.c.l.b16 %v187
    %v2319 = vunpack.c.h.b16 %v187
    %v2320 = vunpack.c.l.b16 %v188
    %v2321 = vunpack.c.h.b16 %v188
    %v2322 = vunpack.c.l.b16 %v189
    %v2323 = vunpack.c.h.b16 %v189
    %v2324 = vunpack.c.l.b16 %v190
    %v2325 = vunpack.c.h.b16 %v190
    %v2326 = vunpack.c.l.b16 %v191
    %v2327 = vunpack.c.h.b16 %v191
    %v2328 = vunpack.c.l.b16 %v192
    %v2329 = vunpack.c.h.b16 %v192
    %v2330 = vunpack.c.l.b16 %v193
    %v2331 = vunpack.c.h.b16 %v193
    %v2332 = vunpack.c.l.b16 %v194
    %v2333 = vunpack.c.h.b16 %v194
    %v2334 = vunpack.c.l.b16 %v195
    %v2335 = vunpack.c.h.b16 %v195
    %v2336 = vunpack.c.l.b16 %v196
    %v2337 = vunpack.c.h.b16 %v196
    %v2338 = vunpack.c.l.b16 %v197
    %v2339 = vunpack.c.h.b16 %v197
    %v2340 = vunpack.c.l.b16 %v198
    %v2341 = vunpack.c.h.b16 %v198
    %v2342 = vunpack.c.l.b16 %v199
    %v2343 = vunpack.c.h.b16 %v199
    %v2344 = vunpack.c.l.b16 %v200
    %v2345 = vunpack.c.h.b16 %v200
    %v2346 = vunpack.c.l.b16 %v201
    %v2347 = vunpack.c.h.b16 %v201
    %v2348 = vunpack.c.l.b16 %v202
    %v2349 = vunpack.c.h.b16 %v202
    %v2350 = vunpack.c.l.b16 %v203
    %v2351 = vunpack.c.h.b16 %v203
    %v2352 = vunpack.c.l.b16 %v204
    %v2353 = vunpack.c.h.b16 %v204
    %v2354 = vunpack.c.l.b16 %v205
    %v2355 = vunpack.c.h.b16 %v205
    %v2356 = vunpack.c.l.b16 %v206
    %v2357 = vunpack.c.h.b16 %v206
    %v2358 = vunpack.c.l.b16 %v207
    %v2359 = vunpack.c.h.b16 %v207
    %v2360 = vunpack.c.l.b16 %v208
    %v2361 = vunpack.c.h.b16 %v208
    %v2362 = vunpack.c.l.b16 %v209
    %v2363 = vunpack.c.h.b16 %v209
    %v2364 = vunpack.c.l.b16 %v210
    %v2365 = vunpack.c.h.b16 %v210
    %v2366 = vunpack.c.l.b16 %v211
    %v2367 = vunpack.c.h.b16 %v211
    %v2368 = vunpack.c.l.b16 %v212
    %v2369 = vunpack.c.h.b16 %v212
    %v2370 = vunpack.c.l.b16 %v213
    %v2371 = vunpack.c.h.b16 %v213
    %v2372 = vunpack.c.l.b16 %v214
    %v2373 = vunpack.c.h.b16 %v214
    %v2374 = vunpack.c.l.b16 %v215
    %v2375 = vunpack.c.h.b16 %v215
    %v2376 = vunpack.c.l.b16 %v216
    %v2377 = vunpack.c.h.b16 %v216
    %v2378 = vunpack.c.l.b16 %v217
    %v2379 = vunpack.c.h.b16 %v217
    %v2380 = vunpack.c.l.b16 %v218
    %v2381 = vunpack.c.h.b16 %v218
    %v2382 = vunpack.c.l.b16 %v219
    %v2383 = vunpack.c.h.b16 %v219
    %v2384 = vunpack.c.l.b16 %v220
    %v2385 = vunpack.c.h.b16 %v220
    %v2386 = vunpack.c.l.b16 %v221
    %v2387 = vunpack.c.h.b16 %v221
    %v2388 = vunpack.c.l.b16 %v222
    %v2389 = vunpack.c.h.b16 %v222
    %v2390 = vunpack.c.l.b16 %v223
    %v2391 = vunpack.c.h.b16 %v223
    %v2392 = vunpack.c.l.b16 %v224
    %v2393 = vunpack.c.h.b16 %v224
    %v2394 = vunpack.c.l.b16 %v225
    %v2395 = vunpack.c.h.b16 %v225
    %v2396 = vunpack.c.l.b16 %v226
    %v2397 = vunpack.c.h.b16 %v226
    %v2398 = vunpack.c.l.b16 %v227
    %v2399 = vunpack.c.h.b16 %v227
    %v2400 = vunpack.c.l.b16 %v228
    %v2401 = vunpack.c.h.b16 %v228
    %v2402 = vunpack.c.l.b16 %v229
    %v2403 = vunpack.c.h.b16 %v229
    %v2404 = vunpack.c.l.b16 %v230
    %v2405 = vunpack.c.h.b16 %v230
    %v2406 = vunpack.c.l.b16 %v231
    %v2407 = vunpack.c.h.b16 %v231
    %v2408 = vunpack.c.l.b16 %v232
    %v2409 = vunpack.c.h.b16 %v232
    %v2410 = vunpack.c.l.b16 %v233
    %v2411 = vunpack.c.h.b16 %v233
    %v2412 = vunpack.c.l.b16 %v234
    %v2413 = vunpack.c.h.b16 %v234
    %v2414 = vunpack.c.l.b16 %v235
    %v2415 = vunpack.c.h.b16 %v235
    %v2416 = vunpack.c.l.b16 %v236
    %v2417 = vunpack.c.h.b16 %v236
    %v2418 = vunpack.c.l.b16 %v237
    %v2419 = vunpack.c.h.b16 %v237
    %v2420 = vunpack.c.l.b16 %v238
    %v2421 = vunpack.c.h.b16 %v238
    %v2422 = vunpack.c.l.b16 %v239
    %v2423 = vunpack.c.h.b16 %v239
    %v2424 = vunpack.c.l.b16 %v240
    %v2425 = vunpack.c.h.b16 %v240
    %v2426 = vunpack.c.l.b16 %v241
    %v2427 = vunpack.c.h.b16 %v241
    %v2428 = vunpack.c.l.b16 %v242
    %v2429 = vunpack.c.h.b16 %v242
    %v2430 = vunpack.c.l.b16 %v243
    %v2431 = vunpack.c.h.b16 %v243
    %v2432 = vunpack.c.l.b16 %v244
    %v2433 = vunpack.c.h.b16 %v244
    %v2434 = vunpack.c.l.b16 %v245
    %v2435 = vunpack.c.h.b16 %v245
    %v2436 = vunpack.c.l.b16 %v246
    %v2437 = vunpack.c.h.b16 %v246
    %v2438 = vunpack.c.l.b16 %v247
    %v2439 = vunpack.c.h.b16 %v247
    %v2440 = vunpack.c.l.b16 %v248
    %v2441 = vunpack.c.h.b16 %v248
    %v2442 = vunpack.c.l.b16 %v249
    %v2443 = vunpack.c.h.b16 %v249
    %v2444 = vunpack.c.l.b16 %v250
    %v2445 = vunpack.c.h.b16 %v250
    %v2446 = vunpack.c.l.b16 %v251
    %v2447 = vunpack.c.h.b16 %v251
    %v2448 = vunpack.c.l.b16 %v252
    %v2449 = vunpack.c.h.b16 %v252
    %v2450 = vunpack.c.l.b16 %v253
    %v2451 = vunpack.c.h.b16 %v253
    %v2452 = vunpack.c.l.b16 %v254
    %v2453 = vunpack.c.h.b16 %v254
    %v2454 = vunpack.c.l.b16 %v255
    %v2455 = vunpack.c.h.b16 %v255
    %v2456 = vunpack.c.l.b16 %v256
    %v2457 = vunpack.c.h.b16 %v256
    %v2458 = vunpack.c.l.b16 %v257
    %v2459 = vunpack.c.h.b16 %v257
    %v2460 = vunpack.c.l.b16 %v258
    %v2461 = vunpack.c.h.b16 %v258
    %v2462 = vunpack.c.l.b16 %v259
    %v2463 = vunpack.c.h.b16 %v259
    %v2464 = vunpack.c.l.b16 %v260
    %v2465 = vunpack.c.h.b16 %v260
    %v2466 = vunpack.c.l.b16 %v261
    %v2467 = vunpack.c.h.b16 %v261
    %v2468 = vunpack.c.l.b16 %v262
    %v2469 = vunpack.c.h.b16 %v262
    %v2470 = vunpack.c.l.b16 %v263
    %v2471 = vunpack.c.h.b16 %v263
    %v2472 = vunpack.c.l.b16 %v264
    %v2473 = vunpack.c.h.b16 %v264
    %v2474 = vunpack.c.l.b16 %v265
    %v2475 = vunpack.c.h.b16 %v265
    %v2476 = vunpack.c.l.b16 %v266
    %v2477 = vunpack.c.h.b16 %v266
    %v2478 = vunpack.c.l.b16 %v267
    %v2479 = vunpack.c.h.b16 %v267
    %v2480 = vunpack.c.l.b16 %v268
    %v2481 = vunpack.c.h.b16 %v268
    %v2482 = vunpack.c.l.b16 %v269
    %v2483 = vunpack.c.h.b16 %v269
    %v2484 = vunpack.c.l.b16 %v270
    %v2485 = vunpack.c.h.b16 %v270
    %v2486 = vunpack.c.l.b16 %v271
    %v2487 = vunpack.c.h.b16 %v271
    %v2488 = vunpack.c.l.b16 %v272
    %v2489 = vunpack.c.h.b16 %v272
    %v2490 = vunpack.c.l.b16 %v273
    %v2491 = vunpack.c.h.b16 %v273
    %v2492 = vunpack.c.l.b16 %v274
    %v2493 = vunpack.c.h.b16 %v274
    %v2494 = vunpack.c.l.b16 %v275
    %v2495 = vunpack.c.h.b16 %v275
    %v2496 = vunpack.c.l.b16 %v276
    %v2497 = vunpack.c.h.b16 %v276
    %v2498 = vunpack.c.l.b16 %v277
    %v2499 = vunpack.c.h.b16 %v277
    %v2500 = vunpack.c.l.b16 %v278
    %v2501 = vunpack.c.h.b16 %v278
    %v2502 = vunpack.c.l.b16 %v279
    %v2503 = vunpack.c.h.b16 %v279
    %v2504 = vunpack.c.l.b16 %v280
    %v2505 = vunpack.c.h.b16 %v280
    %v2506 = vunpack.c.l.b16 %v281
    %v2507 = vunpack.c.h.b16 %v281
    %v2508 = vunpack.c.l.b16 %v282
    %v2509 = vunpack.c.h.b16 %v282
    %v2510 = vunpack.c.l.b16 %v283
    %v2511 = vunpack.c.h.b16 %v283
    %v2512 = vunpack.c.l.b16 %v284
    %v2513 = vunpack.c.h.b16 %v284
    %v2514 = vunpack.c.l.b16 %v285
    %v2515 = vunpack.c.h.b16 %v285
    %v2516 = vunpack.c.l.b16 %v286
    %v2517 = vunpack.c.h.b16 %v286
    %v2518 = vunpack.c.l.b16 %v287
    %v2519 = vunpack.c.h.b16 %v287
    %v2520 = vunpack.c.l.b16 %v288
    %v2521 = vunpack.c.h.b16 %v288
    %v2522 = vunpack.c.l.b16 %v289
    %v2523 = vunpack.c.h.b16 %v289
    %v2524 = vunpack.c.l.b16 %v290
    %v2525 = vunpack.c.h.b16 %v290
    %v2526 = vunpack.c.l.b16 %v291
    %v2527 = vunpack.c.h.b16 %v291
    %v2528 = vunpack.c.l.b16 %v292
    %v2529 = vunpack.c.h.b16 %v292
    %v2530 = vunpack.c.l.b16 %v293
    %v2531 = vunpack.c.h.b16 %v293
    %v2532 = vunpack.c.l.b16 %v294
    %v2533 = vunpack.c.h.b16 %v294
    %v2534 = vunpack.c.l.b16 %v295
    %v2535 = vunpack.c.h.b16 %v295
    %v2536 = vunpack.c.l.b16 %v296
    %v2537 = vunpack.c.h.b16 %v296
    %v2538 = vunpack.c.l.b16 %v297
    %v2539 = vunpack.c.h.b16 %v297
    %v2540 = vunpack.c.l.b16 %v298
    %v2541 = vunpack.c.h.b16 %v298
    %v2542 = vunpack.c.l.b16 %v299
    %v2543 = vunpack.c.h.b16 %v299
    %v2544 = vunpack.c.l.b16 %v300
    %v2545 = vunpack.c.h.b16 %v300
    %v2546 = vunpack.c.l.b16 %v301
    %v2547 = vunpack.c.h.b16 %v301
    %v2548 = vunpack.c.l.b16 %v302
    %v2549 = vunpack.c.h.b16 %v302
    %v2550 = vunpack.c.l.b16 %v303
    %v2551 = vunpack.c.h.b16 %v303
    %v2552 = vunpack.c.l.b16 %v304
    %v2553 = vunpack.c.h.b16 %v304
    %v2554 = vunpack.c.l.b16 %v305
    %v2555 = vunpack.c.h.b16 %v305
    %v2556 = vunpack.c.l.b16 %v306
    %v2557 = vunpack.c.h.b16 %v306
    %v2558 = vunpack.c.l.b16 %v307
    %v2559 = vunpack.c.h.b16 %v307
    %v2560 = vunpack.c.l.b16 %v308
    %v2561 = vunpack.c.h.b16 %v308
    %v2562 = vunpack.c.l.b16 %v309
    %v2563 = vunpack.c.h.b16 %v309
    %v2564 = vunpack.c.l.b16 %v310
    %v2565 = vunpack.c.h.b16 %v310
    %v2566 = vunpack.c.l.b16 %v311
    %v2567 = vunpack.c.h.b16 %v311
    %v2568 = vunpack.c.l.b16 %v312
    %v2569 = vunpack.c.h.b16 %v312
    %v2570 = vunpack.c.l.b16 %v313
    %v2571 = vunpack.c.h.b16 %v313
    %v2572 = vunpack.c.l.b16 %v314
    %v2573 = vunpack.c.h.b16 %v314
    %v2574 = vunpack.c.l.b16 %v315
    %v2575 = vunpack.c.h.b16 %v315
    %v2576 = vunpack.c.l.b16 %v316
    %v2577 = vunpack.c.h.b16 %v316
    %v2578 = vunpack.c.l.b16 %v317
    %v2579 = vunpack.c.h.b16 %v317
    %v2580 = vunpack.c.l.b16 %v318
    %v2581 = vunpack.c.h.b16 %v318
    %v2582 = vunpack.c.l.b16 %v319
    %v2583 = vunpack.c.h.b16 %v319
    %v2584 = vunpack.c.l.b16 %v320
    %v2585 = vunpack.c.h.b16 %v320
    %v2586 = vunpack.c.l.b16 %v321
    %v2587 = vunpack.c.h.b16 %v321
    %v2588 = vunpack.c.l.b16 %v322
    %v2589 = vunpack.c.h.b16 %v322
    %v2590 = vunpack.c.l.b16 %v323
    %v2591 = vunpack.c.h.b16 %v323
    %v2592 = vunpack.c.l.b16 %v324
    %v2593 = vunpack.c.h.b16 %v324
    %v2594 = vunpack.c.l.b16 %v325
    %v2595 = vunpack.c.h.b16 %v325
    %v2596 = vunpack.c.l.b16 %v326
    %v2597 = vunpack.c.h.b16 %v326
    %v2598 = vunpack.c.l.b16 %v327
    %v2599 = vunpack.c.h.b16 %v327
    %v2600 = vunpack.c.l.b16 %v328
    %v2601 = vunpack.c.h.b16 %v328
    %v2602 = vunpack.c.l.b16 %v329
    %v2603 = vunpack.c.h.b16 %v329
    %v2604 = vunpack.c.l.b16 %v330
    %v2605 = vunpack.c.h.b16 %v330
    %v2606 = vunpack.c.l.b16 %v331
    %v2607 = vunpack.c.h.b16 %v331
    %v2608 = vunpack.c.l.b16 %v332
    %v2609 = vunpack.c.h.b16 %v332
    %v2610 = vunpack.c.l.b16 %v333
    %v2611 = vunpack.c.h.b16 %v333
    %v2612 = vunpack.c.l.b16 %v334
    %v2613 = vunpack.c.h.b16 %v334
    %v2614 = vunpack.c.l.b16 %v335
    %v2615 = vunpack.c.h.b16 %v335
    %v2616 = vunpack.c.l.b16 %v336
    %v2617 = vunpack.c.h.b16 %v336
    %v2618 = vunpack.c.l.b16 %v337
    %v2619 = vunpack.c.h.b16 %v337
    %v2620 = vunpack.c.l.b16 %v338
    %v2621 = vunpack.c.h.b16 %v338
    %v2622 = vunpack.c.l.b16 %v339
    %v2623 = vunpack.c.h.b16 %v339
    %v2624 = vunpack.c.l.b16 %v340
    %v2625 = vunpack.c.h.b16 %v340
    %v2626 = vunpack.c.l.b16 %v341
    %v2627 = vunpack.c.h.b16 %v341
    %v2628 = vunpack.c.l.b16 %v342
    %v2629 = vunpack.c.h.b16 %v342
    %v2630 = vunpack.c.l.b16 %v343
    %v2631 = vunpack.c.h.b16 %v343
    %v2632 = vunpack.c.l.b16 %v344
    %v2633 = vunpack.c.h.b16 %v344
    %v2634 = vunpack.c.l.b16 %v345
    %v2635 = vunpack.c.h.b16 %v345
    %v2636 = vunpack.c.l.b16 %v346
    %v2637 = vunpack.c.h.b16 %v346
    %v2638 = vunpack.c.l.b16 %v347
    %v2639 = vunpack.c.h.b16 %v347
    %v2640 = vunpack.c.l.b16 %v348
    %v2641 = vunpack.c.h.b16 %v348
    %v2642 = vunpack.c.l.b16 %v349
    %v2643 = vunpack.c.h.b16 %v349
    %v2644 = vunpack.c.l.b16 %v350
    %v2645 = vunpack.c.h.b16 %v350
    %v2646 = vunpack.c.l.b16 %v351
    %v2647 = vunpack.c.h.b16 %v351
    %v2648 = vunpack.c.l.b16 %v352
    %v2649 = vunpack.c.h.b16 %v352
    %v2650 = vunpack.c.l.b16 %v353
    %v2651 = vunpack.c.h.b16 %v353
    %v2652 = vunpack.c.l.b16 %v354
    %v2653 = vunpack.c.h.b16 %v354
    %v2654 = vunpack.c.l.b16 %v355
    %v2655 = vunpack.c.h.b16 %v355
    %v2656 = vunpack.c.l.b16 %v356
    %v2657 = vunpack.c.h.b16 %v356
    %v2658 = vunpack.c.l.b16 %v357
    %v2659 = vunpack.c.h.b16 %v357
    %v2660 = vunpack.c.l.b16 %v358
    %v2661 = vunpack.c.h.b16 %v358
    %v2662 = vunpack.c.l.b16 %v359
    %v2663 = vunpack.c.h.b16 %v359
    %v2664 = vunpack.c.l.b16 %v360
    %v2665 = vunpack.c.h.b16 %v360
    %v2666 = vunpack.c.l.b16 %v361
    %v2667 = vunpack.c.h.b16 %v361
    %v2668 = vunpack.c.l.b16 %v362
    %v2669 = vunpack.c.h.b16 %v362
    %v2670 = vunpack.c.l.b16 %v363
    %v2671 = vunpack.c.h.b16 %v363
    %v2672 = vunpack.c.l.b16 %v364
    %v2673 = vunpack.c.h.b16 %v364
    %v2674 = vunpack.c.l.b16 %v365
    %v2675 = vunpack.c.h.b16 %v365
    %v2676 = vunpack.c.l.b16 %v366
    %v2677 = vunpack.c.h.b16 %v366
    %v2678 = vunpack.c.l.b16 %v367
    %v2679 = vunpack.c.h.b16 %v367
    %v2680 = vunpack.c.l.b16 %v368
    %v2681 = vunpack.c.h.b16 %v368
    %v2682 = vunpack.c.l.b16 %v369
    %v2683 = vunpack.c.h.b16 %v369
    %v2684 = vunpack.c.l.b16 %v370
    %v2685 = vunpack.c.h.b16 %v370
    %v2686 = vunpack.c.l.b16 %v371
    %v2687 = vunpack.c.h.b16 %v371
    %v2688 = vunpack.c.l.b16 %v372
    %v2689 = vunpack.c.h.b16 %v372
    %v2690 = vunpack.c.l.b16 %v373
    %v2691 = vunpack.c.h.b16 %v373
    %v2692 = vunpack.c.l.b16 %v374
    %v2693 = vunpack.c.h.b16 %v374
    %v2694 = vunpack.c.l.b16 %v375
    %v2695 = vunpack.c.h.b16 %v375
    %v2696 = vunpack.c.l.b16 %v376
    %v2697 = vunpack.c.h.b16 %v376
    %v2698 = vunpack.c.l.b16 %v377
    %v2699 = vunpack.c.h.b16 %v377
    %v2700 = vunpack.c.l.b16 %v378
    %v2701 = vunpack.c.h.b16 %v378
    %v2702 = vunpack.c.l.b16 %v379
    %v2703 = vunpack.c.h.b16 %v379
    %v2704 = vunpack.c.l.b16 %v380
    %v2705 = vunpack.c.h.b16 %v380
    %v2706 = vunpack.c.l.b16 %v381
    %v2707 = vunpack.c.h.b16 %v381
    %v2708 = vunpack.c.l.b16 %v382
    %v2709 = vunpack.c.h.b16 %v382
    %v2710 = vunpack.c.l.b16 %v383
    %v2711 = vunpack.c.h.b16 %v383
    %v2712 = vunpack.c.l.b16 %v384
    %v2713 = vunpack.c.h.b16 %v384
    %v2714 = vunpack.c.l.b16 %v385
    %v2715 = vunpack.c.h.b16 %v385
    %v2716 = vunpack.c.l.b16 %v386
    %v2717 = vunpack.c.h.b16 %v386
    %v2718 = vunpack.c.l.b16 %v387
    %v2719 = vunpack.c.h.b16 %v387
    %v2720 = vunpack.c.l.b16 %v388
    %v2721 = vunpack.c.h.b16 %v388
    %v2722 = vunpack.c.l.b16 %v389
    %v2723 = vunpack.c.h.b16 %v389
    %v2724 = vunpack.c.l.b16 %v390
    %v2725 = vunpack.c.h.b16 %v390
    %v2726 = vunpack.c.l.b16 %v391
    %v2727 = vunpack.c.h.b16 %v391
    %v2728 = vunpack.c.l.b16 %v392
    %v2729 = vunpack.c.h.b16 %v392
    %v2730 = vunpack.c.l.b16 %v393
    %v2731 = vunpack.c.h.b16 %v393
    %v2732 = vunpack.c.l.b16 %v394
    %v2733 = vunpack.c.h.b16 %v394
    %v2734 = vunpack.c.l.b16 %v395
    %v2735 = vunpack.c.h.b16 %v395
    %v2736 = vunpack.c.l.b16 %v396
    %v2737 = vunpack.c.h.b16 %v396
    %v2738 = vunpack.c.l.b16 %v397
    %v2739 = vunpack.c.h.b16 %v397
    %v2740 = vunpack.c.l.b16 %v398
    %v2741 = vunpack.c.h.b16 %v398
    %v2742 = vunpack.c.l.b16 %v399
    %v2743 = vunpack.c.h.b16 %v399
    %v2744 = vunpack.c.l.b16 %v400
    %v2745 = vunpack.c.h.b16 %v400
    %v2746 = vunpack.c.l.b16 %v401
    %v2747 = vunpack.c.h.b16 %v401
    %v2748 = vunpack.c.l.b16 %v402
    %v2749 = vunpack.c.h.b16 %v402
    %v2750 = vunpack.c.l.b16 %v403
    %v2751 = vunpack.c.h.b16 %v403
    %v2752 = vunpack.c.l.b16 %v404
    %v2753 = vunpack.c.h.b16 %v404
    %v2754 = vunpack.c.l.b16 %v405
    %v2755 = vunpack.c.h.b16 %v405
    %v2756 = vunpack.c.l.b16 %v406
    %v2757 = vunpack.c.h.b16 %v406
    %v2758 = vunpack.c.l.b16 %v407
    %v2759 = vunpack.c.h.b16 %v407
    %v2760 = vunpack.c.l.b16 %v408
    %v2761 = vunpack.c.h.b16 %v408
    %v2762 = vunpack.c.l.b16 %v409
    %v2763 = vunpack.c.h.b16 %v409
    %v2764 = vunpack.c.l.b16 %v410
    %v2765 = vunpack.c.h.b16 %v410
    %v2766 = vunpack.c.l.b16 %v411
    %v2767 = vunpack.c.h.b16 %v411
    %v2768 = vunpack.c.l.b16 %v412
    %v2769 = vunpack.c.h.b16 %v412
    %v2770 = vunpack.c.l.b16 %v413
    %v2771 = vunpack.c.h.b16 %v413
    %v2772 = vunpack.c.l.b16 %v414
    %v2773 = vunpack.c.h.b16 %v414
    %v2774 = vunpack.c.l.b16 %v415
    %v2775 = vunpack.c.h.b16 %v415
    %v2776 = vunpack.c.l.b16 %v416
    %v2777 = vunpack.c.h.b16 %v416
    %v2778 = vunpack.c.l.b16 %v417
    %v2779 = vunpack.c.h.b16 %v417
    %v2780 = vunpack.c.l.b16 %v418
    %v2781 = vunpack.c.h.b16 %v418
    %v2782 = vunpack.c.l.b16 %v419
    %v2783 = vunpack.c.h.b16 %v419
    %v2784 = vunpack.c.l.b16 %v420
    %v2785 = vunpack.c.h.b16 %v420
    %v2786 = vunpack.c.l.b16 %v421
    %v2787 = vunpack.c.h.b16 %v421
    %v2788 = vunpack.c.l.b16 %v422
    %v2789 = vunpack.c.h.b16 %v422
    %v2790 = vunpack.c.l.b16 %v423
    %v2791 = vunpack.c.h.b16 %v423
    %v2792 = vunpack.c.l.b16 %v424
    %v2793 = vunpack.c.h.b16 %v424
    %v2794 = vunpack.c.l.b16 %v425
    %v2795 = vunpack.c.h.b16 %v425
    %v2796 = vunpack.c.l.b16 %v426
    %v2797 = vunpack.c.h.b16 %v426
    %v2798 = vunpack.c.l.b16 %v427
    %v2799 = vunpack.c.h.b16 %v427
    %v2800 = vunpack.c.l.b16 %v428
    %v2801 = vunpack.c.h.b16 %v428
    %v2802 = vunpack.c.l.b16 %v429
    %v2803 = vunpack.c.h.b16 %v429
    %v2804 = vunpack.c.l.b16 %v430
    %v2805 = vunpack.c.h.b16 %v430
    %v2806 = vunpack.c.l.b16 %v431
    %v2807 = vunpack.c.h.b16 %v431
    %v2808 = vunpack.c.l.b16 %v432
    %v2809 = vunpack.c.h.b16 %v432
    %v2810 = vunpack.c.l.b16 %v433
    %v2811 = vunpack.c.h.b16 %v433
    %v2812 = vunpack.c.l.b16 %v434
    %v2813 = vunpack.c.h.b16 %v434
    %v2814 = vunpack.c.l.b16 %v435
    %v2815 = vunpack.c.h.b16 %v435
    %v2816 = vunpack.c.l.b16 %v436
    %v2817 = vunpack.c.h.b16 %v436
    %v2818 = vunpack.c.l.b16 %v437
    %v2819 = vunpack.c.h.b16 %v437
    %v2820 = vunpack.c.l.b16 %v438
    %v2821 = vunpack.c.h.b16 %v438
    %v2822 = vunpack.c.l.b16 %v439
    %v2823 = vunpack.c.h.b16 %v439
    %v2824 = vunpack.c.l.b16 %v440
    %v2825 = vunpack.c.h.b16 %v440
    %v2826 = vunpack.c.l.b16 %v441
    %v2827 = vunpack.c.h.b16 %v441
    %v2828 = vunpack.c.l.b16 %v442
    %v2829 = vunpack.c.h.b16 %v442
    %v2830 = vunpack.c.l.b16 %v443
    %v2831 = vunpack.c.h.b16 %v443
    %v2832 = vunpack.c.l.b16 %v444
    %v2833 = vunpack.c.h.b16 %v444
    %v2834 = vunpack.c.l.b16 %v445
    %v2835 = vunpack.c.h.b16 %v445
    %v2836 = vunpack.c.l.b16 %v446
    %v2837 = vunpack.c.h.b16 %v446
    %v2838 = vunpack.c.l.b16 %v447
    %v2839 = vunpack.c.h.b16 %v447
    %v2840 = vunpack.c.l.b16 %v448
    %v2841 = vunpack.c.h.b16 %v448
    %v2842 = vunpack.c.l.b16 %v449
    %v2843 = vunpack.c.h.b16 %v449
    %v2844 = vunpack.c.l.b16 %v450
    %v2845 = vunpack.c.h.b16 %v450
    %v2846 = vunpack.c.l.b16 %v451
    %v2847 = vunpack.c.h.b16 %v451
    %v2848 = vunpack.c.l.b16 %v452
    %v2849 = vunpack.c.h.b16 %v452
    %v2850 = vunpack.c.l.b16 %v453
    %v2851 = vunpack.c.h.b16 %v453
    %v2852 = vunpack.c.l.b16 %v454
    %v2853 = vunpack.c.h.b16 %v454
    %v2854 = vunpack.c.l.b16 %v455
    %v2855 = vunpack.c.h.b16 %v455
    %v2856 = vunpack.c.l.b16 %v456
    %v2857 = vunpack.c.h.b16 %v456
    %v2858 = vunpack.c.l.b16 %v457
    %v2859 = vunpack.c.h.b16 %v457
    %v2860 = vunpack.c.l.b16 %v458
    %v2861 = vunpack.c.h.b16 %v458
    %v2862 = vunpack.c.l.b16 %v459
    %v2863 = vunpack.c.h.b16 %v459
    %v2864 = vunpack.c.l.b16 %v460
    %v2865 = vunpack.c.h.b16 %v460
    %v2866 = vunpack.c.l.b16 %v461
    %v2867 = vunpack.c.h.b16 %v461
    %v2868 = vunpack.c.l.b16 %v462
    %v2869 = vunpack.c.h.b16 %v462
    %v2870 = vunpack.c.l.b16 %v463
    %v2871 = vunpack.c.h.b16 %v463
    %v2872 = vunpack.c.l.b16 %v464
    %v2873 = vunpack.c.h.b16 %v464
    %v2874 = vunpack.c.l.b16 %v465
    %v2875 = vunpack.c.h.b16 %v465
    %v2876 = vunpack.c.l.b16 %v466
    %v2877 = vunpack.c.h.b16 %v466
    %v2878 = vunpack.c.l.b16 %v467
    %v2879 = vunpack.c.h.b16 %v467
    %v2880 = vunpack.c.l.b16 %v468
    %v2881 = vunpack.c.h.b16 %v468
    %v2882 = vunpack.c.l.b16 %v469
    %v2883 = vunpack.c.h.b16 %v469
    %v2884 = vunpack.c.l.b16 %v470
    %v2885 = vunpack.c.h.b16 %v470
    %v2886 = vunpack.c.l.b16 %v471
    %v2887 = vunpack.c.h.b16 %v471
    %v2888 = vunpack.c.l.b16 %v472
    %v2889 = vunpack.c.h.b16 %v472
    %v2890 = vunpack.c.l.b16 %v473
    %v2891 = vunpack.c.h.b16 %v473
    %v2892 = vunpack.c.l.b16 %v474
    %v2893 = vunpack.c.h.b16 %v474
    %v2894 = vunpack.c.l.b16 %v475
    %v2895 = vunpack.c.h.b16 %v475
    %v2896 = vunpack.c.l.b16 %v476
    %v2897 = vunpack.c.h.b16 %v476
    %v2898 = vunpack.c.l.b16 %v477
    %v2899 = vunpack.c.h.b16 %v477
    %v2900 = vunpack.c.l.b16 %v478
    %v2901 = vunpack.c.h.b16 %v478
    %v2902 = vunpack.c.l.b16 %v479
    %v2903 = vunpack.c.h.b16 %v479
    %v2904 = vunpack.c.l.b16 %v480
    %v2905 = vunpack.c.h.b16 %v480
    %v2906 = vunpack.c.l.b16 %v481
    %v2907 = vunpack.c.h.b16 %v481
    %v2908 = vunpack.c.l.b16 %v482
    %v2909 = vunpack.c.h.b16 %v482
    %v2910 = vunpack.c.l.b16 %v483
    %v2911 = vunpack.c.h.b16 %v483
    %v2912 = vunpack.c.l.b16 %v484
    %v2913 = vunpack.c.h.b16 %v484
    %v2914 = vunpack.c.l.b16 %v485
    %v2915 = vunpack.c.h.b16 %v485
    %v2916 = vunpack.c.l.b16 %v486
    %v2917 = vunpack.c.h.b16 %v486
    %v2918 = vunpack.c.l.b16 %v487
    %v2919 = vunpack.c.h.b16 %v487
    %v2920 = vunpack.c.l.b16 %v488
    %v2921 = vunpack.c.h.b16 %v488
    %v2922 = vunpack.c.l.b16 %v489
    %v2923 = vunpack.c.h.b16 %v489
    %v2924 = vunpack.c.l.b16 %v490
    %v2925 = vunpack.c.h.b16 %v490
    %v2926 = vunpack.c.l.b16 %v491
    %v2927 = vunpack.c.h.b16 %v491
    %v2928 = vunpack.c.l.b16 %v492
    %v2929 = vunpack.c.h.b16 %v492
    %v2930 = vunpack.c.l.b16 %v493
    %v2931 = vunpack.c.h.b16 %v493
    %v2932 = vunpack.c.l.b16 %v494
    %v2933 = vunpack.c.h.b16 %v494
    %v2934 = vunpack.c.l.b16 %v495
    %v2935 = vunpack.c.h.b16 %v495
    %v2936 = vunpack.c.l.b16 %v496
    %v2937 = vunpack.c.h.b16 %v496
    %v2938 = vunpack.c.l.b16 %v497
    %v2939 = vunpack.c.h.b16 %v497
    %v2940 = vunpack.c.l.b16 %v498
    %v2941 = vunpack.c.h.b16 %v498
    %v2942 = vunpack.c.l.b16 %v499
    %v2943 = vunpack.c.h.b16 %v499
    %v2944 = vunpack.c.l.b16 %v500
    %v2945 = vunpack.c.h.b16 %v500
    %v2946 = vunpack.c.l.b16 %v501
    %v2947 = vunpack.c.h.b16 %v501
    %v2948 = vunpack.c.l.b16 %v502
    %v2949 = vunpack.c.h.b16 %v502
    %v2950 = vunpack.c.l.b16 %v503
    %v2951 = vunpack.c.h.b16 %v503
    %v2952 = vunpack.c.l.b16 %v504
    %v2953 = vunpack.c.h.b16 %v504
    %v2954 = vunpack.c.l.b16 %v505
    %v2955 = vunpack.c.h.b16 %v505
    %v2956 = vunpack.c.l.b16 %v506
    %v2957 = vunpack.c.h.b16 %v506
    %v2958 = vunpack.c.l.b16 %v507
    %v2959 = vunpack.c.h.b16 %v507
    %v2960 = vunpack.c.l.b16 %v508
    %v2961 = vunpack.c.h.b16 %v508
    %v2962 = vunpack.c.l.b16 %v509
    %v2963 = vunpack.c.h.b16 %v509
    %v2964 = vunpack.c.l.b16 %v510
    %v2965 = vunpack.c.h.b16 %v510
    %v2966 = vunpack.c.l.b16 %v511
    %v2967 = vunpack.c.h.b16 %v511
    %v2968 = vunpack.c.l.b16 %v512
    %v2969 = vunpack.c.h.b16 %v512
    %v2970 = vunpack.c.l.b16 %v513
    %v2971 = vunpack.c.h.b16 %v513
    %v2972 = vunpack.c.l.b16 %v514
    %v2973 = vunpack.c.h.b16 %v514
    %v2974 = vunpack.c.l.b16 %v515
    %v2975 = vunpack.c.h.b16 %v515
    %v2976 = vunpack.c.l.b16 %v516
    %v2977 = vunpack.c.h.b16 %v516
    %v2978 = vunpack.c.l.b16 %v517
    %v2979 = vunpack.c.h.b16 %v517
    %v2980 = vunpack.c.l.b16 %v518
    %v2981 = vunpack.c.h.b16 %v518
    %v2982 = vunpack.c.l.b16 %v519
    %v2983 = vunpack.c.h.b16 %v519
    %v2984 = vunpack.c.l.b16 %v520
    %v2985 = vunpack.c.h.b16 %v520
    %v2986 = vunpack.c.l.b16 %v521
    %v2987 = vunpack.c.h.b16 %v521
    %v2988 = vunpack.c.l.b16 %v522
    %v2989 = vunpack.c.h.b16 %v522
    %v2990 = vunpack.c.l.b16 %v523
    %v2991 = vunpack.c.h.b16 %v523
    %v2992 = vunpack.c.l.b16 %v524
    %v2993 = vunpack.c.h.b16 %v524
    %v2994 = vunpack.c.l.b16 %v525
    %v2995 = vunpack.c.h.b16 %v525
    %v2996 = vunpack.c.l.b16 %v526
    %v2997 = vunpack.c.h.b16 %v526
    %v2998 = vunpack.c.l.b16 %v527
    %v2999 = vunpack.c.h.b16 %v527
    %v3000 = vunpack.c.l.b16 %v528
    %v3001 = vunpack.c.h.b16 %v528
    %v3002 = vunpack.c.l.b16 %v529
    %v3003 = vunpack.c.h.b16 %v529
    %v3004 = vunpack.c.l.b16 %v530
    %v3005 = vunpack.c.h.b16 %v530
    %v3006 = vunpack.c.l.b16 %v531
    %v3007 = vunpack.c.h.b16 %v531
    %v3008 = vunpack.c.l.b16 %v532
    %v3009 = vunpack.c.h.b16 %v532
    %v3010 = vunpack.c.l.b16 %v533
    %v3011 = vunpack.c.h.b16 %v533
    %v3012 = vunpack.c.l.b16 %v534
    %v3013 = vunpack.c.h.b16 %v534
    %v3014 = vunpack.c.l.b16 %v535
    %v3015 = vunpack.c.h.b16 %v535
    %v3016 = vunpack.c.l.b16 %v536
    %v3017 = vunpack.c.h.b16 %v536
    %v3018 = vunpack.c.l.b16 %v537
    %v3019 = vunpack.c.h.b16 %v537
    %v3020 = vunpack.c.l.b16 %v538
    %v3021 = vunpack.c.h.b16 %v538
    %v3022 = vunpack.c.l.b16 %v539
    %v3023 = vunpack.c.h.b16 %v539
    %v3024 = vunpack.c.l.b16 %v540
    %v3025 = vunpack.c.h.b16 %v540
    %v3026 = vunpack.c.l.b16 %v541
    %v3027 = vunpack.c.h.b16 %v541
    %v3028 = vunpack.c.l.b16 %v542
    %v3029 = vunpack.c.h.b16 %v542
    %v3030 = vunpack.c.l.b16 %v543
    %v3031 = vunpack.c.h.b16 %v543
    %v3032 = vunpack.c.l.b16 %v544
    %v3033 = vunpack.c.h.b16 %v544
    %v3034 = vunpack.c.l.b16 %v545
    %v3035 = vunpack.c.h.b16 %v545
    %v3036 = vunpack.c.l.b16 %v546
    %v3037 = vunpack.c.h.b16 %v546
    %v3038 = vunpack.c.l.b16 %v547
    %v3039 = vunpack.c.h.b16 %v547
    %v3040 = vunpack.c.l.b16 %v548
    %v3041 = vunpack.c.h.b16 %v548
    %v3042 = vunpack.c.l.b16 %v549
    %v3043 = vunpack.c.h.b16 %v549
    %v3044 = vunpack.c.l.b16 %v550
    %v3045 = vunpack.c.h.b16 %v550
    %v3046 = vunpack.c.l.b16 %v551
    %v3047 = vunpack.c.h.b16 %v551
    %v3048 = vunpack.c.l.b16 %v552
    %v3049 = vunpack.c.h.b16 %v552
    %v3050 = vunpack.c.l.b16 %v553
    %v3051 = vunpack.c.h.b16 %v553
    %v3052 = vunpack.c.l.b16 %v554
    %v3053 = vunpack.c.h.b16 %v554
    %v3054 = vunpack.c.l.b16 %v555
    %v3055 = vunpack.c.h.b16 %v555
    %v3056 = vunpack.c.l.b16 %v556
    %v3057 = vunpack.c.h.b16 %v556
    %v3058 = vunpack.c.l.b16 %v557
    %v3059 = vunpack.c.h.b16 %v557
    %v3060 = vunpack.c.l.b16 %v558
    %v3061 = vunpack.c.h.b16 %v558
    %v3062 = vunpack.c.l.b16 %v559
    %v3063 = vunpack.c.h.b16 %v559
    %v3064 = vunpack.c.l.b16 %v560
    %v3065 = vunpack.c.h.b16 %v560
    %v3066 = vunpack.c.l.b16 %v561
    %v3067 = vunpack.c.h.b16 %v561
    %v3068 = vunpack.c.l.b16 %v562
    %v3069 = vunpack.c.h.b16 %v562
    %v3070 = vunpack.c.l.b16 %v563
    %v3071 = vunpack.c.h.b16 %v563
    %v3072 = vunpack.c.l.b16 %v564
    %v3073 = vunpack.c.h.b16 %v564
    %v3074 = vunpack.c.l.b16 %v565
    %v3075 = vunpack.c.h.b16 %v565
    %v3076 = vunpack.c.l.b16 %v566
    %v3077 = vunpack.c.h.b16 %v566
    %v3078 = vunpack.c.l.b16 %v567
    %v3079 = vunpack.c.h.b16 %v567
    %v3080 = vunpack.c.l.b16 %v568
    %v3081 = vunpack.c.h.b16 %v568
    %v3082 = vunpack.c.l.b16 %v569
    %v3083 = vunpack.c.h.b16 %v569
    %v3084 = vunpack.c.l.b16 %v570
    %v3085 = vunpack.c.h.b16 %v570
    %v3086 = vunpack.c.l.b16 %v571
    %v3087 = vunpack.c.h.b16 %v571
    %v3088 = vunpack.c.l.b16 %v572
    %v3089 = vunpack.c.h.b16 %v572
    %v3090 = vunpack.c.l.b16 %v573
    %v3091 = vunpack.c.h.b16 %v573
    %v3092 = vunpack.c.l.b16 %v574
    %v3093 = vunpack.c.h.b16 %v574
    %v3094 = vunpack.c.l.b16 %v575
    %v3095 = vunpack.c.h.b16 %v575
    %v3096 = vunpack.c.l.b16 %v576
    %v3097 = vunpack.c.h.b16 %v576
    %v3098 = vunpack.c.l.b16 %v577
    %v3099 = vunpack.c.h.b16 %v577
    %v3100 = vunpack.c.l.b16 %v578
    %v3101 = vunpack.c.h.b16 %v578
    %v3102 = vunpack.c.l.b16 %v579
    %v3103 = vunpack.c.h.b16 %v579
    %v3104 = vunpack.c.l.b16 %v580
    %v3105 = vunpack.c.h.b16 %v580
    %v3106 = vunpack.c.l.b16 %v581
    %v3107 = vunpack.c.h.b16 %v581
    %v3108 = vunpack.c.l.b16 %v582
    %v3109 = vunpack.c.h.b16 %v582
    %v3110 = vunpack.c.l.b16 %v583
    %v3111 = vunpack.c.h.b16 %v583
    %v3112 = vunpack.c.l.b16 %v584
    %v3113 = vunpack.c.h.b16 %v584
    %v3114 = vunpack.c.l.b16 %v585
    %v3115 = vunpack.c.h.b16 %v585
    %v3116 = vunpack.c.l.b16 %v586
    %v3117 = vunpack.c.h.b16 %v586
    %v3118 = vunpack.c.l.b16 %v587
    %v3119 = vunpack.c.h.b16 %v587
    %v3120 = vunpack.c.l.b16 %v588
    %v3121 = vunpack.c.h.b16 %v588
    %v3122 = vunpack.c.l.b16 %v589
    %v3123 = vunpack.c.h.b16 %v589
    %v3124 = vunpack.c.l.b16 %v590
    %v3125 = vunpack.c.h.b16 %v590
    %v3126 = vunpack.c.l.b16 %v591
    %v3127 = vunpack.c.h.b16 %v591
    %v3128 = vunpack.c.l.b16 %v592
    %v3129 = vunpack.c.h.b16 %v592
    %v3130 = vunpack.c.l.b16 %v593
    %v3131 = vunpack.c.h.b16 %v593
    %v3132 = vunpack.c.l.b16 %v594
    %v3133 = vunpack.c.h.b16 %v594
    %v3134 = vunpack.c.l.b16 %v595
    %v3135 = vunpack.c.h.b16 %v595
    %v3136 = vunpack.c.l.b16 %v596
    %v3137 = vunpack.c.h.b16 %v596
    %v3138 = vunpack.c.l.b16 %v597
    %v3139 = vunpack.c.h.b16 %v597
    %v3140 = vunpack.c.l.b16 %v598
    %v3141 = vunpack.c.h.b16 %v598
    %v3142 = vunpack.c.l.b16 %v599
    %v3143 = vunpack.c.h.b16 %v599
    %v3144 = vunpack.c.l.b16 %v600
    %v3145 = vunpack.c.h.b16 %v600
    %v3146 = vunpack.c.l.b16 %v601
    %v3147 = vunpack.c.h.b16 %v601
    %v3148 = vunpack.c.l.b16 %v602
    %v3149 = vunpack.c.h.b16 %v602
    %v3150 = vunpack.c.l.b16 %v603
    %v3151 = vunpack.c.h.b16 %v603
    %v3152 = vunpack.c.l.b16 %v604
    %v3153 = vunpack.c.h.b16 %v604
    %v3154 = vunpack.c.l.b16 %v605
    %v3155 = vunpack.c.h.b16 %v605
    %v3156 = vunpack.c.l.b16 %v606
    %v3157 = vunpack.c.h.b16 %v606
    %v3158 = vunpack.c.l.b16 %v607
    %v3159 = vunpack.c.h.b16 %v607
    %v3160 = vunpack.c.l.b16 %v608
    %v3161 = vunpack.c.h.b16 %v608
    %v3162 = vunpack.c.l.b16 %v609
    %v3163 = vunpack.c.h.b16 %v609
    %v3164 = vunpack.c.l.b16 %v610
    %v3165 = vunpack.c.h.b16 %v610
    %v3166 = vunpack.c.l.b16 %v611
    %v3167 = vunpack.c.h.b16 %v611
    %v3168 = vunpack.c.l.b16 %v612
    %v3169 = vunpack.c.h.b16 %v612
    %v3170 = vunpack.c.l.b16 %v613
    %v3171 = vunpack.c.h.b16 %v613
    %v3172 = vunpack.c.l.b16 %v614
    %v3173 = vunpack.c.h.b16 %v614
    %v3174 = vunpack.c.l.b16 %v615
    %v3175 = vunpack.c.h.b16 %v615
    %v3176 = vunpack.c.l.b16 %v616
    %v3177 = vunpack.c.h.b16 %v616
    %v3178 = vunpack.c.l.b16 %v617
    %v3179 = vunpack.c.h.b16 %v617
    %v3180 = vunpack.c.l.b16 %v618
    %v3181 = vunpack.c.h.b16 %v618
    %v3182 = vunpack.c.l.b16 %v619
    %v3183 = vunpack.c.h.b16 %v619
    %v3184 = vunpack.c.l.b16 %v620
    %v3185 = vunpack.c.h.b16 %v620
    %v3186 = vunpack.c.l.b16 %v621
    %v3187 = vunpack.c.h.b16 %v621
    %v3188 = vunpack.c.l.b16 %v622
    %v3189 = vunpack.c.h.b16 %v622
    %v3190 = vunpack.c.l.b16 %v623
    %v3191 = vunpack.c.h.b16 %v623
    %v3192 = vunpack.c.l.b16 %v624
    %v3193 = vunpack.c.h.b16 %v624
    %v3194 = vunpack.c.l.b16 %v625
    %v3195 = vunpack.c.h.b16 %v625
    %v3196 = vunpack.c.l.b16 %v626
    %v3197 = vunpack.c.h.b16 %v626
    %v3198 = vunpack.c.l.b16 %v627
    %v3199 = vunpack.c.h.b16 %v627
    %v3200 = vunpack.c.l.b16 %v628
    %v3201 = vunpack.c.h.b16 %v628
    %v3202 = vunpack.c.l.b16 %v629
    %v3203 = vunpack.c.h.b16 %v629
    %v3204 = vunpack.c.l.b16 %v630
    %v3205 = vunpack.c.h.b16 %v630
    %v3206 = vunpack.c.l.b16 %v631
    %v3207 = vunpack.c.h.b16 %v631
    %v3208 = vunpack.c.l.b16 %v632
    %v3209 = vunpack.c.h.b16 %v632
    %v3210 = vunpack.c.l.b16 %v633
    %v3211 = vunpack.c.h.b16 %v633
    %v3212 = vunpack.c.l.b16 %v634
    %v3213 = vunpack.c.h.b16 %v634
    %v3214 = vunpack.c.l.b16 %v635
    %v3215 = vunpack.c.h.b16 %v635
    %v3216 = vunpack.c.l.b16 %v636
    %v3217 = vunpack.c.h.b16 %v636
    %v3218 = vunpack.c.l.b16 %v637
    %v3219 = vunpack.c.h.b16 %v637
    %v3220 = vunpack.c.l.b16 %v638
    %v3221 = vunpack.c.h.b16 %v638
    %v3222 = vunpack.c.l.b16 %v639
    %v3223 = vunpack.c.h.b16 %v639
    %v3224 = vunpack.c.l.b16 %v640
    %v3225 = vunpack.c.h.b16 %v640
    %v3226 = vunpack.c.l.b16 %v641
    %v3227 = vunpack.c.h.b16 %v641
    %v3228 = vunpack.c.l.b16 %v642
    %v3229 = vunpack.c.h.b16 %v642
    %v3230 = vunpack.c.l.b16 %v643
    %v3231 = vunpack.c.h.b16 %v643
    %v3232 = vunpack.c.l.b16 %v644
    %v3233 = vunpack.c.h.b16 %v644
    %v3234 = vunpack.c.l.b16 %v645
    %v3235 = vunpack.c.h.b16 %v645
    %v3236 = vunpack.c.l.b16 %v646
    %v3237 = vunpack.c.h.b16 %v646
    %v3238 = vunpack.c.l.b16 %v647
    %v3239 = vunpack.c.h.b16 %v647
    %v3240 = vunpack.c.l.b16 %v648
    %v3241 = vunpack.c.h.b16 %v648
    %v3242 = vunpack.c.l.b16 %v649
    %v3243 = vunpack.c.h.b16 %v649
    %v3244 = vunpack.c.l.b16 %v650
    %v3245 = vunpack.c.h.b16 %v650
    %v3246 = vunpack.c.l.b16 %v651
    %v3247 = vunpack.c.h.b16 %v651
    %v3248 = vunpack.c.l.b16 %v652
    %v3249 = vunpack.c.h.b16 %v652
    %v3250 = vunpack.c.l.b16 %v653
    %v3251 = vunpack.c.h.b16 %v653
    %v3252 = vunpack.c.l.b16 %v654
    %v3253 = vunpack.c.h.b16 %v654
    %v3254 = vunpack.c.l.b16 %v655
    %v3255 = vunpack.c.h.b16 %v655
    %v3256 = vunpack.c.l.b16 %v656
    %v3257 = vunpack.c.h.b16 %v656
    %v3258 = vunpack.c.l.b16 %v657
    %v3259 = vunpack.c.h.b16 %v657
    %v3260 = vunpack.c.l.b16 %v658
    %v3261 = vunpack.c.h.b16 %v658
    %v3262 = vunpack.c.l.b16 %v659
    %v3263 = vunpack.c.h.b16 %v659
    %v3264 = vunpack.c.l.b16 %v660
    %v3265 = vunpack.c.h.b16 %v660
    %v3266 = vunpack.c.l.b16 %v661
    %v3267 = vunpack.c.h.b16 %v661
    %v3268 = vunpack.c.l.b16 %v662
    %v3269 = vunpack.c.h.b16 %v662
    %v3270 = vunpack.c.l.b16 %v663
    %v3271 = vunpack.c.h.b16 %v663
    %v3272 = vunpack.c.l.b16 %v664
    %v3273 = vunpack.c.h.b16 %v664
    %v3274 = vunpack.c.l.b16 %v665
    %v3275 = vunpack.c.h.b16 %v665
    %v3276 = vunpack.c.l.b16 %v666
    %v3277 = vunpack.c.h.b16 %v666
    %v3278 = vunpack.c.l.b16 %v667
    %v3279 = vunpack.c.h.b16 %v667
    %v3280 = vunpack.c.l.b16 %v668
    %v3281 = vunpack.c.h.b16 %v668
    %v3282 = vunpack.c.l.b16 %v669
    %v3283 = vunpack.c.h.b16 %v669
    %v3284 = vunpack.c.l.b16 %v670
    %v3285 = vunpack.c.h.b16 %v670
    %v3286 = vunpack.c.l.b16 %v671
    %v3287 = vunpack.c.h.b16 %v671
    %v3288 = vunpack.c.l.b16 %v672
    %v3289 = vunpack.c.h.b16 %v672
    %v3290 = vunpack.c.l.b16 %v673
    %v3291 = vunpack.c.h.b16 %v673
    %v3292 = vunpack.c.l.b16 %v674
    %v3293 = vunpack.c.h.b16 %v674
    %v3294 = vunpack.c.l.b16 %v675
    %v3295 = vunpack.c.h.b16 %v675
    %v3296 = vunpack.c.l.b16 %v676
    %v3297 = vunpack.c.h.b16 %v676
    %v3298 = vunpack.c.l.b16 %v677
    %v3299 = vunpack.c.h.b16 %v677
    %v3300 = vunpack.c.l.b16 %v678
    %v3301 = vunpack.c.h.b16 %v678
    %v3302 = vunpack.c.l.b16 %v679
    %v3303 = vunpack.c.h.b16 %v679
    %v3304 = vunpack.c.l.b16 %v680
    %v3305 = vunpack.c.h.b16 %v680
    %v3306 = vunpack.c.l.b16 %v681
    %v3307 = vunpack.c.h.b16 %v681
    %v3308 = vunpack.c.l.b16 %v682
    %v3309 = vunpack.c.h.b16 %v682
    %v3310 = vunpack.c.l.b16 %v683
    %v3311 = vunpack.c.h.b16 %v683
    %v3312 = vunpack.c.l.b16 %v684
    %v3313 = vunpack.c.h.b16 %v684
    %v3314 = vunpack.c.l.b16 %v685
    %v3315 = vunpack.c.h.b16 %v685
    %v3316 = vunpack.c.l.b16 %v686
    %v3317 = vunpack.c.h.b16 %v686
    %v3318 = vunpack.c.l.b16 %v687
    %v3319 = vunpack.c.h.b16 %v687
    %v3320 = vunpack.c.l.b16 %v688
    %v3321 = vunpack.c.h.b16 %v688
    %v3322 = vunpack.c.l.b16 %v689
    %v3323 = vunpack.c.h.b16 %v689
    %v3324 = vunpack.c.l.b16 %v690
    %v3325 = vunpack.c.h.b16 %v690
    %v3326 = vunpack.c.l.b16 %v691
    %v3327 = vunpack.c.h.b16 %v691
    %v3328 = vunpack.c.l.b16 %v692
    %v3329 = vunpack.c.h.b16 %v692
    %v3330 = vunpack.c.l.b16 %v693
    %v3331 = vunpack.c.h.b16 %v693
    %v3332 = vunpack.c.l.b16 %v694
    %v3333 = vunpack.c.h.b16 %v694
    %v3334 = vunpack.c.l.b16 %v695
    %v3335 = vunpack.c.h.b16 %v695
    %v3336 = vunpack.c.l.b16 %v696
    %v3337 = vunpack.c.h.b16 %v696
    %v3338 = vunpack.c.l.b16 %v697
    %v3339 = vunpack.c.h.b16 %v697
    %v3340 = vunpack.c.l.b16 %v698
    %v3341 = vunpack.c.h.b16 %v698
    %v3342 = vunpack.c.l.b16 %v699
    %v3343 = vunpack.c.h.b16 %v699
    %v3344 = vunpack.c.l.b16 %v700
    %v3345 = vunpack.c.h.b16 %v700
    %v3346 = vunpack.c.l.b16 %v701
    %v3347 = vunpack.c.h.b16 %v701
    %v3348 = vunpack.c.l.b16 %v702
    %v3349 = vunpack.c.h.b16 %v702
    %v3350 = vunpack.c.l.b16 %v703
    %v3351 = vunpack.c.h.b16 %v703
    %v3352 = vunpack.c.l.b16 %v704
    %v3353 = vunpack.c.h.b16 %v704
    %v3354 = vunpack.c.l.b16 %v705
    %v3355 = vunpack.c.h.b16 %v705
    %v3356 = vunpack.c.l.b16 %v706
    %v3357 = vunpack.c.h.b16 %v706
    %v3358 = vunpack.c.l.b16 %v707
    %v3359 = vunpack.c.h.b16 %v707
    %v3360 = vunpack.c.l.b16 %v708
    %v3361 = vunpack.c.h.b16 %v708
    %v3362 = vunpack.c.l.b16 %v709
    %v3363 = vunpack.c.h.b16 %v709
    %v3364 = vunpack.c.l.b16 %v710
    %v3365 = vunpack.c.h.b16 %v710
    %v3366 = vunpack.c.l.b16 %v711
    %v3367 = vunpack.c.h.b16 %v711
    %v3368 = vunpack.c.l.b16 %v712
    %v3369 = vunpack.c.h.b16 %v712
    %v3370 = vunpack.c.l.b16 %v713
    %v3371 = vunpack.c.h.b16 %v713
    %v3372 = vunpack.c.l.b16 %v714
    %v3373 = vunpack.c.h.b16 %v714
    %v3374 = vunpack.c.l.b16 %v715
    %v3375 = vunpack.c.h.b16 %v715
    %v3376 = vunpack.c.l.b16 %v716
    %v3377 = vunpack.c.h.b16 %v716
    %v3378 = vunpack.c.l.b16 %v717
    %v3379 = vunpack.c.h.b16 %v717
    %v3380 = vunpack.c.l.b16 %v718
    %v3381 = vunpack.c.h.b16 %v718
    %v3382 = vunpack.c.l.b16 %v719
    %v3383 = vunpack.c.h.b16 %v719
    %v3384 = vunpack.c.l.b16 %v720
    %v3385 = vunpack.c.h.b16 %v720
    %v3386 = vunpack.c.l.b16 %v721
    %v3387 = vunpack.c.h.b16 %v721
    %v3388 = vunpack.c.l.b16 %v722
    %v3389 = vunpack.c.h.b16 %v722
    %v3390 = vunpack.c.l.b16 %v723
    %v3391 = vunpack.c.h.b16 %v723
    %v3392 = vunpack.c.l.b16 %v724
    %v3393 = vunpack.c.h.b16 %v724
    %v3394 = vunpack.c.l.b16 %v725
    %v3395 = vunpack.c.h.b16 %v725
    %v3396 = vunpack.c.l.b16 %v726
    %v3397 = vunpack.c.h.b16 %v726
    %v3398 = vunpack.c.l.b16 %v727
    %v3399 = vunpack.c.h.b16 %v727
    %v3400 = vunpack.c.l.b16 %v728
    %v3401 = vunpack.c.h.b16 %v728
    %v3402 = vunpack.c.l.b16 %v729
    %v3403 = vunpack.c.h.b16 %v729
    %v3404 = vunpack.c.l.b16 %v730
    %v3405 = vunpack.c.h.b16 %v730
    %v3406 = vunpack.c.l.b16 %v731
    %v3407 = vunpack.c.h.b16 %v731
    %v3408 = vunpack.c.l.b16 %v732
    %v3409 = vunpack.c.h.b16 %v732
    %v3410 = vunpack.c.l.b16 %v733
    %v3411 = vunpack.c.h.b16 %v733
    %v3412 = vunpack.c.l.b16 %v734
    %v3413 = vunpack.c.h.b16 %v734
    %v3414 = vunpack.c.l.b16 %v735
    %v3415 = vunpack.c.h.b16 %v735
    %v3416 = vunpack.c.l.b16 %v736
    %v3417 = vunpack.c.h.b16 %v736
    %v3418 = vunpack.c.l.b16 %v737
    %v3419 = vunpack.c.h.b16 %v737
    %v3420 = vunpack.c.l.b16 %v738
    %v3421 = vunpack.c.h.b16 %v738
    %v3422 = vunpack.c.l.b16 %v739
    %v3423 = vunpack.c.h.b16 %v739
    %v3424 = vunpack.c.l.b16 %v740
    %v3425 = vunpack.c.h.b16 %v740
    %v3426 = vunpack.c.l.b16 %v741
    %v3427 = vunpack.c.h.b16 %v741
    %v3428 = vunpack.c.l.b16 %v742
    %v3429 = vunpack.c.h.b16 %v742
    %v3430 = vunpack.c.l.b16 %v743
    %v3431 = vunpack.c.h.b16 %v743
    %v3432 = vunpack.c.l.b16 %v744
    %v3433 = vunpack.c.h.b16 %v744
    %v3434 = vunpack.c.l.b16 %v745
    %v3435 = vunpack.c.h.b16 %v745
    %v3436 = vunpack.c.l.b16 %v746
    %v3437 = vunpack.c.h.b16 %v746
    %v3438 = vunpack.c.l.b16 %v747
    %v3439 = vunpack.c.h.b16 %v747
    %v3440 = vunpack.c.l.b16 %v748
    %v3441 = vunpack.c.h.b16 %v748
    %v3442 = vunpack.c.l.b16 %v749
    %v3443 = vunpack.c.h.b16 %v749
    %v3444 = vunpack.c.l.b16 %v750
    %v3445 = vunpack.c.h.b16 %v750
    %v3446 = vunpack.c.l.b16 %v751
    %v3447 = vunpack.c.h.b16 %v751
    %v3448 = vunpack.c.l.b16 %v752
    %v3449 = vunpack.c.h.b16 %v752
    %v3450 = vunpack.c.l.b16 %v753
    %v3451 = vunpack.c.h.b16 %v753
    %v3452 = vunpack.c.l.b16 %v754
    %v3453 = vunpack.c.h.b16 %v754
    %v3454 = vunpack.c.l.b16 %v755
    %v3455 = vunpack.c.h.b16 %v755
    %v3456 = vunpack.c.l.b16 %v756
    %v3457 = vunpack.c.h.b16 %v756
    %v3458 = vunpack.c.l.b16 %v757
    %v3459 = vunpack.c.h.b16 %v757
    %v3460 = vunpack.c.l.b16 %v758
    %v3461 = vunpack.c.h.b16 %v758
    %v3462 = vunpack.c.l.b16 %v759
    %v3463 = vunpack.c.h.b16 %v759
    %v3464 = vunpack.c.l.b16 %v760
    %v3465 = vunpack.c.h.b16 %v760
    %v3466 = vunpack.c.l.b16 %v761
    %v3467 = vunpack.c.h.b16 %v761
    %v3468 = vunpack.c.l.b16 %v762
    %v3469 = vunpack.c.h.b16 %v762
    %v3470 = vunpack.c.l.b16 %v763
    %v3471 = vunpack.c.h.b16 %v763
    %v3472 = vunpack.c.l.b16 %v764
    %v3473 = vunpack.c.h.b16 %v764
    %v3474 = vunpack.c.l.b16 %v765
    %v3475 = vunpack.c.h.b16 %v765
    %v3476 = vunpack.c.l.b16 %v766
    %v3477 = vunpack.c.h.b16 %v766
    %v3478 = vunpack.c.l.b16 %v767
    %v3479 = vunpack.c.h.b16 %v767
    %v3480 = vunpack.c.l.b16 %v768
    %v3481 = vunpack.c.h.b16 %v768
    %v3482 = vunpack.c.l.b16 %v769
    %v3483 = vunpack.c.h.b16 %v769
    %v3484 = vunpack.c.l.b16 %v770
    %v3485 = vunpack.c.h.b16 %v770
    %v3486 = vunpack.c.l.b16 %v771
    %v3487 = vunpack.c.h.b16 %v771
    %v3488 = vunpack.c.l.b16 %v772
    %v3489 = vunpack.c.h.b16 %v772
    %v3490 = vunpack.c.l.b16 %v773
    %v3491 = vunpack.c.h.b16 %v773
    %v3492 = vunpack.c.l.b16 %v774
    %v3493 = vunpack.c.h.b16 %v774
    %v3494 = vunpack.c.l.b16 %v775
    %v3495 = vunpack.c.h.b16 %v775
    %v3496 = vunpack.c.l.b16 %v776
    %v3497 = vunpack.c.h.b16 %v776
    %v3498 = vunpack.c.l.b16 %v777
    %v3499 = vunpack.c.h.b16 %v777
    %v3500 = vunpack.c.l.b16 %v778
    %v3501 = vunpack.c.h.b16 %v778
    %v3502 = vunpack.c.l.b16 %v779
    %v3503 = vunpack.c.h.b16 %v779
    %v3504 = vunpack.c.l.b16 %v780
    %v3505 = vunpack.c.h.b16 %v780
    %v3506 = vunpack.c.l.b16 %v781
    %v3507 = vunpack.c.h.b16 %v781
    %v3508 = vunpack.c.l.b16 %v782
    %v3509 = vunpack.c.h.b16 %v782
    %v3510 = vunpack.c.l.b16 %v783
    %v3511 = vunpack.c.h.b16 %v783
    %v3512 = vunpack.c.l.b16 %v784
    %v3513 = vunpack.c.h.b16 %v784
    %v3514 = vunpack.c.l.b16 %v785
    %v3515 = vunpack.c.h.b16 %v785
    %v3516 = vunpack.c.l.b16 %v786
    %v3517 = vunpack.c.h.b16 %v786
    %v3518 = vunpack.c.l.b16 %v787
    %v3519 = vunpack.c.h.b16 %v787
    %v3520 = vunpack.c.l.b16 %v788
    %v3521 = vunpack.c.h.b16 %v788
    %v3522 = vunpack.c.l.b16 %v789
    %v3523 = vunpack.c.h.b16 %v789
    %v3524 = vunpack.c.l.b16 %v790
    %v3525 = vunpack.c.h.b16 %v790
    %v3526 = vunpack.c.l.b16 %v791
    %v3527 = vunpack.c.h.b16 %v791
    %v3528 = vunpack.c.l.b16 %v792
    %v3529 = vunpack.c.h.b16 %v792
    %v3530 = vunpack.c.l.b16 %v793
    %v3531 = vunpack.c.h.b16 %v793
    %v3532 = vunpack.c.l.b16 %v794
    %v3533 = vunpack.c.h.b16 %v794
    %v3534 = vunpack.c.l.b16 %v795
    %v3535 = vunpack.c.h.b16 %v795
    %v3536 = vunpack.c.l.b16 %v796
    %v3537 = vunpack.c.h.b16 %v796
    %v3538 = vunpack.c.l.b16 %v797
    %v3539 = vunpack.c.h.b16 %v797
    %v3540 = vunpack.c.l.b16 %v798
    %v3541 = vunpack.c.h.b16 %v798
    %v3542 = vunpack.c.l.b16 %v799
    %v3543 = vunpack.c.h.b16 %v799
    %v3544 = vunpack.c.l.b16 %v800
    %v3545 = vunpack.c.h.b16 %v800
    %v3546 = vunpack.c.l.b16 %v801
    %v3547 = vunpack.c.h.b16 %v801
    %v3548 = vunpack.c.l.b16 %v802
    %v3549 = vunpack.c.h.b16 %v802
    %v3550 = vunpack.c.l.b16 %v803
    %v3551 = vunpack.c.h.b16 %v803
    %v3552 = vunpack.c.l.b16 %v804
    %v3553 = vunpack.c.h.b16 %v804
    %v3554 = vunpack.c.l.b16 %v805
    %v3555 = vunpack.c.h.b16 %v805
    %v3556 = vunpack.c.l.b16 %v806
    %v3557 = vunpack.c.h.b16 %v806
    %v3558 = vunpack.c.l.b16 %v807
    %v3559 = vunpack.c.h.b16 %v807
    %v3560 = vunpack.c.l.b16 %v808
    %v3561 = vunpack.c.h.b16 %v808
    %v3562 = vunpack.c.l.b16 %v809
    %v3563 = vunpack.c.h.b16 %v809
    %v3564 = vunpack.c.l.b16 %v810
    %v3565 = vunpack.c.h.b16 %v810
    %v3566 = vunpack.c.l.b16 %v811
    %v3567 = vunpack.c.h.b16 %v811
    %v3568 = vunpack.c.l.b16 %v812
    %v3569 = vunpack.c.h.b16 %v812
    %v3570 = vunpack.c.l.b16 %v813
    %v3571 = vunpack.c.h.b16 %v813
    %v3572 = vunpack.c.l.b16 %v814
    %v3573 = vunpack.c.h.b16 %v814
    %v3574 = vunpack.c.l.b16 %v815
    %v3575 = vunpack.c.h.b16 %v815
    %v3576 = vunpack.c.l.b16 %v816
    %v3577 = vunpack.c.h.b16 %v816
    %v3578 = vunpack.c.l.b16 %v817
    %v3579 = vunpack.c.h.b16 %v817
    %v3580 = vunpack.c.l.b16 %v818
    %v3581 = vunpack.c.h.b16 %v818
    %v3582 = vunpack.c.l.b16 %v819
    %v3583 = vunpack.c.h.b16 %v819
    %v3584 = vunpack.c.l.b16 %v820
    %v3585 = vunpack.c.h.b16 %v820
    %v3586 = vunpack.c.l.b16 %v821
    %v3587 = vunpack.c.h.b16 %v821
    %v3588 = vunpack.c.l.b16 %v822
    %v3589 = vunpack.c.h.b16 %v822
    %v3590 = vunpack.c.l.b16 %v823
    %v3591 = vunpack.c.h.b16 %v823
    %v3592 = vunpack.c.l.b16 %v824
    %v3593 = vunpack.c.h.b16 %v824
    %v3594 = vunpack.c.l.b16 %v825
    %v3595 = vunpack.c.h.b16 %v825
    %v3596 = vunpack.c.l.b16 %v826
    %v3597 = vunpack.c.h.b16 %v826
    %v3598 = vunpack.c.l.b16 %v827
    %v3599 = vunpack.c.h.b16 %v827
    %v3600 = vunpack.c.l.b16 %v828
    %v3601 = vunpack.c.h.b16 %v828
    %v3602 = vunpack.c.l.b16 %v829
    %v3603 = vunpack.c.h.b16 %v829
    %v3604 = vunpack.c.l.b16 %v830
    %v3605 = vunpack.c.h.b16 %v830
    %v3606 = vunpack.c.l.b16 %v831
    %v3607 = vunpack.c.h.b16 %v831
    %v3608 = vunpack.c.l.b16 %v832
    %v3609 = vunpack.c.h.b16 %v832
    %v3610 = vunpack.c.l.b16 %v833
    %v3611 = vunpack.c.h.b16 %v833
    %v3612 = vunpack.c.l.b16 %v834
    %v3613 = vunpack.c.h.b16 %v834
    %v3614 = vunpack.c.l.b16 %v835
    %v3615 = vunpack.c.h.b16 %v835
    %v3616 = vunpack.c.l.b16 %v836
    %v3617 = vunpack.c.h.b16 %v836
    %v3618 = vunpack.c.l.b16 %v837
    %v3619 = vunpack.c.h.b16 %v837
    %v3620 = vunpack.c.l.b16 %v838
    %v3621 = vunpack.c.h.b16 %v838
    %v3622 = vunpack.c.l.b16 %v839
    %v3623 = vunpack.c.h.b16 %v839
    %v3624 = vunpack.c.l.b16 %v840
    %v3625 = vunpack.c.h.b16 %v840
    %v3626 = vunpack.c.l.b16 %v841
    %v3627 = vunpack.c.h.b16 %v841
    %v3628 = vunpack.c.l.b16 %v842
    %v3629 = vunpack.c.h.b16 %v842
    %v3630 = vunpack.c.l.b16 %v843
    %v3631 = vunpack.c.h.b16 %v843
    %v3632 = vunpack.c.l.b16 %v844
    %v3633 = vunpack.c.h.b16 %v844
    %v3634 = vunpack.c.l.b16 %v845
    %v3635 = vunpack.c.h.b16 %v845
    %v3636 = vunpack.c.l.b16 %v846
    %v3637 = vunpack.c.h.b16 %v846
    %v3638 = vunpack.c.l.b16 %v847
    %v3639 = vunpack.c.h.b16 %v847
    %v3640 = vunpack.c.l.b16 %v848
    %v3641 = vunpack.c.h.b16 %v848
    %v3642 = vunpack.c.l.b16 %v849
    %v3643 = vunpack.c.h.b16 %v849
    %v3644 = vunpack.c.l.b16 %v850
    %v3645 = vunpack.c.h.b16 %v850
    %v3646 = vunpack.c.l.b16 %v851
    %v3647 = vunpack.c.h.b16 %v851
    %v3648 = vunpack.c.l.b16 %v852
    %v3649 = vunpack.c.h.b16 %v852
    %v3650 = vunpack.c.l.b16 %v853
    %v3651 = vunpack.c.h.b16 %v853
    %v3652 = vunpack.c.l.b16 %v854
    %v3653 = vunpack.c.h.b16 %v854
    %v3654 = vunpack.c.l.b16 %v855
    %v3655 = vunpack.c.h.b16 %v855
    %v3656 = vunpack.c.l.b16 %v856
    %v3657 = vunpack.c.h.b16 %v856
    %v3658 = vunpack.c.l.b16 %v857
    %v3659 = vunpack.c.h.b16 %v857
    %v3660 = vunpack.c.l.b16 %v858
    %v3661 = vunpack.c.h.b16 %v858
    %v3662 = vunpack.c.l.b16 %v859
    %v3663 = vunpack.c.h.b16 %v859
    %v3664 = vunpack.c.l.b16 %v860
    %v3665 = vunpack.c.h.b16 %v860
    %v3666 = vunpack.c.l.b16 %v861
    %v3667 = vunpack.c.h.b16 %v861
    %v3668 = vunpack.c.l.b16 %v862
    %v3669 = vunpack.c.h.b16 %v862
    %v3670 = vunpack.c.l.b16 %v863
    %v3671 = vunpack.c.h.b16 %v863
    %v3672 = vunpack.c.l.b16 %v864
    %v3673 = vunpack.c.h.b16 %v864
    %v3674 = vunpack.c.l.b16 %v865
    %v3675 = vunpack.c.h.b16 %v865
    %v3676 = vunpack.c.l.b16 %v866
    %v3677 = vunpack.c.h.b16 %v866
    %v3678 = vunpack.c.l.b16 %v867
    %v3679 = vunpack.c.h.b16 %v867
    %v3680 = vunpack.c.l.b16 %v868
    %v3681 = vunpack.c.h.b16 %v868
    %v3682 = vunpack.c.l.b16 %v869
    %v3683 = vunpack.c.h.b16 %v869
    %v3684 = vunpack.c.l.b16 %v870
    %v3685 = vunpack.c.h.b16 %v870
    %v3686 = vunpack.c.l.b16 %v871
    %v3687 = vunpack.c.h.b16 %v871
    %v3688 = vunpack.c.l.b16 %v872
    %v3689 = vunpack.c.h.b16 %v872
    %v3690 = vunpack.c.l.b16 %v873
    %v3691 = vunpack.c.h.b16 %v873
    %v3692 = vunpack.c.l.b16 %v874
    %v3693 = vunpack.c.h.b16 %v874
    %v3694 = vunpack.c.l.b16 %v875
    %v3695 = vunpack.c.h.b16 %v875
    %v3696 = vunpack.c.l.b16 %v876
    %v3697 = vunpack.c.h.b16 %v876
    %v3698 = vunpack.c.l.b16 %v877
    %v3699 = vunpack.c.h.b16 %v877
    %v3700 = vunpack.c.l.b16 %v878
    %v3701 = vunpack.c.h.b16 %v878
    %v3702 = vunpack.c.l.b16 %v879
    %v3703 = vunpack.c.h.b16 %v879
    %v3704 = vunpack.c.l.b16 %v880
    %v3705 = vunpack.c.h.b16 %v880
    %v3706 = vunpack.c.l.b16 %v881
    %v3707 = vunpack.c.h.b16 %v881
    %v3708 = vunpack.c.l.b16 %v882
    %v3709 = vunpack.c.h.b16 %v882
    %v3710 = vunpack.c.l.b16 %v883
    %v3711 = vunpack.c.h.b16 %v883
    %v3712 = vunpack.c.l.b16 %v884
    %v3713 = vunpack.c.h.b16 %v884
    %v3714 = vunpack.c.l.b16 %v885
    %v3715 = vunpack.c.h.b16 %v885
    %v3716 = vunpack.c.l.b16 %v886
    %v3717 = vunpack.c.h.b16 %v886
    %v3718 = vunpack.c.l.b16 %v887
    %v3719 = vunpack.c.h.b16 %v887
    %v3720 = vunpack.c.l.b16 %v888
    %v3721 = vunpack.c.h.b16 %v888
    %v3722 = vunpack.c.l.b16 %v889
    %v3723 = vunpack.c.h.b16 %v889
    %v3724 = vunpack.c.l.b16 %v890
    %v3725 = vunpack.c.h.b16 %v890
    %v3726 = vunpack.c.l.b16 %v891
    %v3727 = vunpack.c.h.b16 %v891
    %v3728 = vunpack.c.l.b16 %v892
    %v3729 = vunpack.c.h.b16 %v892
    %v3730 = vunpack.c.l.b16 %v893
    %v3731 = vunpack.c.h.b16 %v893
    %v3732 = vunpack.c.l.b16 %v894
    %v3733 = vunpack.c.h.b16 %v894
    %v3734 = vunpack.c.l.b16 %v895
    %v3735 = vunpack.c.h.b16 %v895
    %v3736 = vunpack.c.l.b16 %v896
    %v3737 = vunpack.c.h.b16 %v896
    %v3738 = vunpack.c.l.b16 %v897
    %v3739 = vunpack.c.h.b16 %v897
    %v3740 = vunpack.c.l.b16 %v898
    %v3741 = vunpack.c.h.b16 %v898
    %v3742 = vunpack.c.l.b16 %v899
    %v3743 = vunpack.c.h.b16 %v899
    %v3744 = vunpack.c.l.b16 %v900
    %v3745 = vunpack.c.h.b16 %v900
    %v3746 = vunpack.c.l.b16 %v901
    %v3747 = vunpack.c.h.b16 %v901
    %v3748 = vunpack.c.l.b16 %v902
    %v3749 = vunpack.c.h.b16 %v902
    %v3750 = vunpack.c.l.b16 %v903
    %v3751 = vunpack.c.h.b16 %v903
    %v3752 = vunpack.c.l.b16 %v904
    %v3753 = vunpack.c.h.b16 %v904
    %v3754 = vunpack.c.l.b16 %v905
    %v3755 = vunpack.c.h.b16 %v905
    %v3756 = vunpack.c.l.b16 %v906
    %v3757 = vunpack.c.h.b16 %v906
    %v3758 = vunpack.c.l.b16 %v907
    %v3759 = vunpack.c.h.b16 %v907
    %v3760 = vunpack.c.l.b16 %v908
    %v3761 = vunpack.c.h.b16 %v908
    %v3762 = vunpack.c.l.b16 %v909
    %v3763 = vunpack.c.h.b16 %v909
    %v3764 = vunpack.c.l.b16 %v910
    %v3765 = vunpack.c.h.b16 %v910
    %v3766 = vunpack.c.l.b16 %v911
    %v3767 = vunpack.c.h.b16 %v911
    %v3768 = vunpack.c.l.b16 %v912
    %v3769 = vunpack.c.h.b16 %v912
    %v3770 = vunpack.c.l.b16 %v913
    %v3771 = vunpack.c.h.b16 %v913
    %v3772 = vunpack.c.l.b16 %v914
    %v3773 = vunpack.c.h.b16 %v914
    %v3774 = vunpack.c.l.b16 %v915
    %v3775 = vunpack.c.h.b16 %v915
    %v3776 = vunpack.c.l.b16 %v916
    %v3777 = vunpack.c.h.b16 %v916
    %v3778 = vunpack.c.l.b16 %v917
    %v3779 = vunpack.c.h.b16 %v917
    %v3780 = vunpack.c.l.b16 %v918
    %v3781 = vunpack.c.h.b16 %v918
    %v3782 = vunpack.c.l.b16 %v919
    %v3783 = vunpack.c.h.b16 %v919
    %v3784 = vunpack.c.l.b16 %v920
    %v3785 = vunpack.c.h.b16 %v920
    %v3786 = vunpack.c.l.b16 %v921
    %v3787 = vunpack.c.h.b16 %v921
    %v3788 = vunpack.c.l.b16 %v922
    %v3789 = vunpack.c.h.b16 %v922
    %v3790 = vunpack.c.l.b16 %v923
    %v3791 = vunpack.c.h.b16 %v923
    %v3792 = vunpack.c.l.b16 %v924
    %v3793 = vunpack.c.h.b16 %v924
    %v3794 = vunpack.c.l.b16 %v925
    %v3795 = vunpack.c.h.b16 %v925
    %v3796 = vunpack.c.l.b16 %v926
    %v3797 = vunpack.c.h.b16 %v926
    %v3798 = vunpack.c.l.b16 %v927
    %v3799 = vunpack.c.h.b16 %v927
    %v3800 = vunpack.c.l.b16 %v928
    %v3801 = vunpack.c.h.b16 %v928
    %v3802 = vunpack.c.l.b16 %v929
    %v3803 = vunpack.c.h.b16 %v929
    %v3804 = vunpack.c.l.b16 %v930
    %v3805 = vunpack.c.h.b16 %v930
    %v3806 = vunpack.c.l.b16 %v931
    %v3807 = vunpack.c.h.b16 %v931
    %v3808 = vunpack.c.l.b16 %v932
    %v3809 = vunpack.c.h.b16 %v932
    %v3810 = vunpack.c.l.b16 %v933
    %v3811 = vunpack.c.h.b16 %v933
    %v3812 = vunpack.c.l.b16 %v934
    %v3813 = vunpack.c.h.b16 %v934
    %v3814 = vunpack.c.l.b16 %v935
    %v3815 = vunpack.c.h.b16 %v935
    %v3816 = vunpack.c.l.b16 %v936
    %v3817 = vunpack.c.h.b16 %v936
    %v3818 = vunpack.c.l.b16 %v937
    %v3819 = vunpack.c.h.b16 %v937
    %v3820 = vunpack.c.l.b16 %v938
    %v3821 = vunpack.c.h.b16 %v938
    %v3822 = vunpack.c.l.b16 %v939
    %v3823 = vunpack.c.h.b16 %v939
    %v3824 = vunpack.c.l.b16 %v940
    %v3825 = vunpack.c.h.b16 %v940
    %v3826 = vunpack.c.l.b16 %v941
    %v3827 = vunpack.c.h.b16 %v941
    %v3828 = vunpack.c.l.b16 %v942
    %v3829 = vunpack.c.h.b16 %v942
    %v3830 = vunpack.c.l.b16 %v943
    %v3831 = vunpack.c.h.b16 %v943
    %v3832 = vunpack.c.l.b16 %v944
    %v3833 = vunpack.c.h.b16 %v944
    %v3834 = vunpack.c.l.b16 %v945
    %v3835 = vunpack.c.h.b16 %v945
    %v3836 = vunpack.c.l.b16 %v946
    %v3837 = vunpack.c.h.b16 %v946
    %v3838 = vunpack.c.l.b16 %v947
    %v3839 = vunpack.c.h.b16 %v947
    %v3840 = vunpack.c.l.b16 %v948
    %v3841 = vunpack.c.h.b16 %v948
    %v3842 = vunpack.c.l.b16 %v949
    %v3843 = vunpack.c.h.b16 %v949
    %v3844 = vunpack.c.l.b16 %v950
    %v3845 = vunpack.c.h.b16 %v950
    %v3846 = vunpack.c.l.b16 %v951
    %v3847 = vunpack.c.h.b16 %v951
    %v3848 = vunpack.c.l.b16 %v952
    %v3849 = vunpack.c.h.b16 %v952
    %v3850 = vunpack.c.l.b16 %v953
    %v3851 = vunpack.c.h.b16 %v953
    %v3852 = vunpack.c.l.b16 %v954
    %v3853 = vunpack.c.h.b16 %v954
    %v3854 = vunpack.c.l.b16 %v955
    %v3855 = vunpack.c.h.b16 %v955
    %v3856 = vunpack.c.l.b16 %v956
    %v3857 = vunpack.c.h.b16 %v956
    %v3858 = vunpack.c.l.b16 %v957
    %v3859 = vunpack.c.h.b16 %v957
    %v3860 = vunpack.c.l.b16 %v958
    %v3861 = vunpack.c.h.b16 %v958
    %v3862 = vunpack.c.l.b16 %v959
    %v3863 = vunpack.c.h.b16 %v959
    %v3864 = vunpack.c.l.b16 %v960
    %v3865 = vunpack.c.h.b16 %v960
    %v3866 = vunpack.c.l.b16 %v961
    %v3867 = vunpack.c.h.b16 %v961
    %v3868 = vunpack.c.l.b16 %v962
    %v3869 = vunpack.c.h.b16 %v962
    %v3870 = vunpack.c.l.b16 %v963
    %v3871 = vunpack.c.h.b16 %v963
    %v3872 = vunpack.c.l.b16 %v964
    %v3873 = vunpack.c.h.b16 %v964
    %v3874 = vunpack.c.l.b16 %v965
    %v3875 = vunpack.c.h.b16 %v965
    %v3876 = vunpack.c.l.b16 %v966
    %v3877 = vunpack.c.h.b16 %v966
    %v3878 = vunpack.c.l.b16 %v967
    %v3879 = vunpack.c.h.b16 %v967
    %v3880 = vunpack.c.l.b16 %v968
    %v3881 = vunpack.c.h.b16 %v968
    %v3882 = vunpack.c.l.b16 %v969
    %v3883 = vunpack.c.h.b16 %v969
    %v3884 = vunpack.c.l.b16 %v970
    %v3885 = vunpack.c.h.b16 %v970
    %v3886 = vunpack.c.l.b16 %v971
    %v3887 = vunpack.c.h.b16 %v971
    %v3888 = vunpack.c.l.b16 %v972
    %v3889 = vunpack.c.h.b16 %v972
    %v3890 = vunpack.c.l.b16 %v973
    %v3891 = vunpack.c.h.b16 %v973
    %v3892 = vunpack.c.l.b16 %v974
    %v3893 = vunpack.c.h.b16 %v974
    %v3894 = vunpack.c.l.b16 %v975
    %v3895 = vunpack.c.h.b16 %v975
    %v3896 = vunpack.c.l.b16 %v976
    %v3897 = vunpack.c.h.b16 %v976
    %v3898 = vunpack.c.l.b16 %v977
    %v3899 = vunpack.c.h.b16 %v977
    %v3900 = vunpack.c.l.b16 %v978
    %v3901 = vunpack.c.h.b16 %v978
    %v3902 = vunpack.c.l.b16 %v979
    %v3903 = vunpack.c.h.b16 %v979
    %v3904 = vunpack.c.l.b16 %v980
    %v3905 = vunpack.c.h.b16 %v980
    %v3906 = vunpack.c.l.b16 %v981
    %v3907 = vunpack.c.h.b16 %v981
    %v3908 = vunpack.c.l.b16 %v982
    %v3909 = vunpack.c.h.b16 %v982
    %v3910 = vunpack.c.l.b16 %v983
    %v3911 = vunpack.c.h.b16 %v983
    %v3912 = vunpack.c.l.b16 %v984
    %v3913 = vunpack.c.h.b16 %v984
    %v3914 = vunpack.c.l.b16 %v985
    %v3915 = vunpack.c.h.b16 %v985
    %v3916 = vunpack.c.l.b16 %v986
    %v3917 = vunpack.c.h.b16 %v986
    %v3918 = vunpack.c.l.b16 %v987
    %v3919 = vunpack.c.h.b16 %v987
    %v3920 = vunpack.c.l.b16 %v988
    %v3921 = vunpack.c.h.b16 %v988
    %v3922 = vunpack.c.l.b16 %v989
    %v3923 = vunpack.c.h.b16 %v989
    %v3924 = vunpack.c.l.b16 %v990
    %v3925 = vunpack.c.h.b16 %v990
    %v3926 = vunpack.c.l.b16 %v991
    %v3927 = vunpack.c.h.b16 %v991
    %v3928 = vunpack.c.l.b16 %v992
    %v3929 = vunpack.c.h.b16 %v992
    %v3930 = vunpack.c.l.b16 %v993
    %v3931 = vunpack.c.h.b16 %v993
    %v3932 = vunpack.c.l.b16 %v994
    %v3933 = vunpack.c.h.b16 %v994
    %v3934 = vunpack.c.l.b16 %v995
    %v3935 = vunpack.c.h.b16 %v995
    %v3936 = vunpack.c.l.b16 %v996
    %v3937 = vunpack.c.h.b16 %v996
    %v3938 = vunpack.c.l.b16 %v997
    %v3939 = vunpack.c.h.b16 %v997
    %v3940 = vunpack.c.l.b16 %v998
    %v3941 = vunpack.c.h.b16 %v998
    %v3942 = vunpack.c.l.b16 %v999
    %v3943 = vunpack.c.h.b16 %v999
    %v3944 = vunpack.c.l.b16 %v1000
    %v3945 = vunpack.c.h.b16 %v1000
    %v3946 = vunpack.c.l.b16 %v1001
    %v3947 = vunpack.c.h.b16 %v1001
    %v3948 = vunpack.c.l.b16 %v1002
    %v3949 = vunpack.c.h.b16 %v1002
    %v3950 = vunpack.c.l.b16 %v1003
    %v3951 = vunpack.c.h.b16 %v1003
    %v3952 = vunpack.c.l.b16 %v1004
    %v3953 = vunpack.c.h.b16 %v1004
    %v3954 = vunpack.c.l.b16 %v1005
    %v3955 = vunpack.c.h.b16 %v1005
    %v3956 = vunpack.c.l.b16 %v1006
    %v3957 = vunpack.c.h.b16 %v1006
    %v3958 = vunpack.c.l.b16 %v1007
    %v3959 = vunpack.c.h.b16 %v1007
    %v3960 = vunpack.c.l.b16 %v1008
    %v3961 = vunpack.c.h.b16 %v1008
    %v3962 = vunpack.c.l.b16 %v1009
    %v3963 = vunpack.c.h.b16 %v1009
    %v3964 = vunpack.c.l.b16 %v1010
    %v3965 = vunpack.c.h.b16 %v1010
    %v3966 = vunpack.c.l.b16 %v1011
    %v3967 = vunpack.c.h.b16 %v1011
    %v3968 = vunpack.c.l.b16 %v1012
    %v3969 = vunpack.c.h.b16 %v1012
    %v3970 = vunpack.c.l.b16 %v1013
    %v3971 = vunpack.c.h.b16 %v1013
    %v3972 = vunpack.c.l.b16 %v1014
    %v3973 = vunpack.c.h.b16 %v1014
    %v3974 = vunpack.c.l.b16 %v1015
    %v3975 = vunpack.c.h.b16 %v1015
    %v3976 = vunpack.c.l.b16 %v1016
    %v3977 = vunpack.c.h.b16 %v1016
    %v3978 = vunpack.c.l.b16 %v1017
    %v3979 = vunpack.c.h.b16 %v1017
    %v3980 = vunpack.c.l.b16 %v1018
    %v3981 = vunpack.c.h.b16 %v1018
    %v3982 = vunpack.c.l.b16 %v1019
    %v3983 = vunpack.c.h.b16 %v1019
    %v3984 = vunpack.c.l.b16 %v1020
    %v3985 = vunpack.c.h.b16 %v1020
    %v3986 = vunpack.c.l.b16 %v1021
    %v3987 = vunpack.c.h.b16 %v1021
    %v3988 = vunpack.c.l.b16 %v1022
    %v3989 = vunpack.c.h.b16 %v1022
    %v3990 = vunpack.c.l.b16 %v1023
    %v3991 = vunpack.c.h.b16 %v1023
    %v3992 = vunpack.c.l.b16 %v1024
    %v3993 = vunpack.c.h.b16 %v1024
    %v3994 = vunpack.c.l.b16 %v1025
    %v3995 = vunpack.c.h.b16 %v1025
    %v3996 = vunpack.c.l.b16 %v1026
    %v3997 = vunpack.c.h.b16 %v1026
    %v3998 = vunpack.c.l.b16 %v1027
    %v3999 = vunpack.c.h.b16 %v1027
    %v4000 = vunpack.c.l.b16 %v1028
    %v4001 = vunpack.c.h.b16 %v1028
    %v4002 = vunpack.c.l.b16 %v1029
    %v4003 = vunpack.c.h.b16 %v1029
    %v4004 = vunpack.c.l.b16 %v1030
    %v4005 = vunpack.c.h.b16 %v1030
    %v4006 = vunpack.c.l.b16 %v1031
    %v4007 = vunpack.c.h.b16 %v1031
    %v4008 = vunpack.c.l.b16 %v1032
    %v4009 = vunpack.c.h.b16 %v1032
    %v4010 = vunpack.c.l.b16 %v1033
    %v4011 = vunpack.c.h.b16 %v1033
    %v4012 = vunpack.c.l.b16 %v1034
    %v4013 = vunpack.c.h.b16 %v1034
    %v4014 = vunpack.c.l.b16 %v1035
    %v4015 = vunpack.c.h.b16 %v1035
    %v4016 = vunpack.c.l.b16 %v1036
    %v4017 = vunpack.c.h.b16 %v1036
    %v4018 = vunpack.c.l.b16 %v1037
    %v4019 = vunpack.c.h.b16 %v1037
    %v4020 = vunpack.c.l.b16 %v1038
    %v4021 = vunpack.c.h.b16 %v1038
    %v4022 = vunpack.c.l.b16 %v1039
    %v4023 = vunpack.c.h.b16 %v1039
    %v4024 = vunpack.c.l.b16 %v1040
    %v4025 = vunpack.c.h.b16 %v1040
    %v4026 = vunpack.c.l.b16 %v1041
    %v4027 = vunpack.c.h.b16 %v1041
    %v4028 = vunpack.c.l.b16 %v1042
    %v4029 = vunpack.c.h.b16 %v1042
    %v4030 = vunpack.c.l.b16 %v1043
    %v4031 = vunpack.c.h.b16 %v1043
    %v4032 = vunpack.c.l.b16 %v1044
    %v4033 = vunpack.c.h.b16 %v1044
    %v4034 = vunpack.c.l.b16 %v1045
    %v4035 = vunpack.c.h.b16 %v1045
    %v4036 = vunpack.c.l.b16 %v1046
    %v4037 = vunpack.c.h.b16 %v1046
    %v4038 = vunpack.c.l.b16 %v1047
    %v4039 = vunpack.c.h.b16 %v1047
    %v4040 = vunpack.c.l.b16 %v1048
    %v4041 = vunpack.c.h.b16 %v1048
    %v4042 = vunpack.c.l.b16 %v1049
    %v4043 = vunpack.c.h.b16 %v1049
    %v4044 = vunpack.c.l.b16 %v1050
    %v4045 = vunpack.c.h.b16 %v1050
    %v4046 = vunpack.c.l.b16 %v1051
    %v4047 = vunpack.c.h.b16 %v1051
    %v4048 = vunpack.c.l.b16 %v1052
    %v4049 = vunpack.c.h.b16 %v1052
    %v4050 = vunpack.c.l.b16 %v1053
    %v4051 = vunpack.c.h.b16 %v1053
    %v4052 = vunpack.c.l.b16 %v1054
    %v4053 = vunpack.c.h.b16 %v1054
    %v4054 = vunpack.c.l.b16 %v1055
    %v4055 = vunpack.c.h.b16 %v1055
    %v4056 = vunpack.c.l.b16 %v1056
    %v4057 = vunpack.c.h.b16 %v1056
    %v4058 = vunpack.c.l.b16 %v1057
    %v4059 = vunpack.c.h.b16 %v1057
    %v4060 = vunpack.c.l.b16 %v1058
    %v4061 = vunpack.c.h.b16 %v1058
    %v4062 = vunpack.c.l.b16 %v1059
    %v4063 = vunpack.c.h.b16 %v1059
    %v4064 = vunpack.c.l.b16 %v1060
    %v4065 = vunpack.c.h.b16 %v1060
    %v4066 = vunpack.c.l.b16 %v1061
    %v4067 = vunpack.c.h.b16 %v1061
    %v4068 = vunpack.c.l.b16 %v1062
    %v4069 = vunpack.c.h.b16 %v1062
    %v4070 = vunpack.c.l.b16 %v1063
    %v4071 = vunpack.c.h.b16 %v1063
    %v4072 = vunpack.c.l.b16 %v1064
    %v4073 = vunpack.c.h.b16 %v1064
    %v4074 = vunpack.c.l.b16 %v1065
    %v4075 = vunpack.c.h.b16 %v1065
    %v4076 = vunpack.c.l.b16 %v1066
    %v4077 = vunpack.c.h.b16 %v1066
    %v4078 = vunpack.c.l.b16 %v1067
    %v4079 = vunpack.c.h.b16 %v1067
    %v4080 = vunpack.c.l.b16 %v1068
    %v4081 = vunpack.c.h.b16 %v1068
    %v4082 = vunpack.c.l.b16 %v1069
    %v4083 = vunpack.c.h.b16 %v1069
    %v4084 = vunpack.c.l.b16 %v1070
    %v4085 = vunpack.c.h.b16 %v1070
    %v4086 = vunpack.c.l.b16 %v1071
    %v4087 = vunpack.c.h.b16 %v1071
    %v4088 = vunpack.c.l.b16 %v1072
    %v4089 = vunpack.c.h.b16 %v1072
    %v4090 = vunpack.c.l.b16 %v1073
    %v4091 = vunpack.c.h.b16 %v1073
    %v4092 = vunpack.c.l.b16 %v1074
    %v4093 = vunpack.c.h.b16 %v1074
    %v4094 = vunpack.c.l.b16 %v1075
    %v4095 = vunpack.c.h.b16 %v1075
    %v4096 = vunpack.c.l.b16 %v1076
    %v4097 = vunpack.c.h.b16 %v1076
    %v4098 = vunpack.c.l.b16 %v1077
    %v4099 = vunpack.c.h.b16 %v1077
    %v4100 = vunpack.c.l.b16 %v1078
    %v4101 = vunpack.c.h.b16 %v1078
    %v4102 = vunpack.c.l.b16 %v1079
    %v4103 = vunpack.c.h.b16 %v1079
    %v4104 = vunpack.c.l.b16 %v1080
    %v4105 = vunpack.c.h.b16 %v1080
    %v4106 = vunpack.c.l.b16 %v1081
    %v4107 = vunpack.c.h.b16 %v1081
    %v4108 = vunpack.c.l.b16 %v1082
    %v4109 = vunpack.c.h.b16 %v1082
    %v4110 = vunpack.c.l.b16 %v1083
    %v4111 = vunpack.c.h.b16 %v1083
    %v4112 = vunpack.c.l.b16 %v1084
    %v4113 = vunpack.c.h.b16 %v1084
    %v4114 = vunpack.c.l.b16 %v1085
    %v4115 = vunpack.c.h.b16 %v1085
    %v4116 = vunpack.c.l.b16 %v1086
    %v4117 = vunpack.c.h.b16 %v1086
    %v4118 = vunpack.c.l.b16 %v1087
    %v4119 = vunpack.c.h.b16 %v1087
    %v4120 = vunpack.c.l.b16 %v1088
    %v4121 = vunpack.c.h.b16 %v1088
    %v4122 = vunpack.c.l.b16 %v1089
    %v4123 = vunpack.c.h.b16 %v1089
    %v4124 = vunpack.c.l.b16 %v1090
    %v4125 = vunpack.c.h.b16 %v1090
    %v4126 = vunpack.c.l.b16 %v1091
    %v4127 = vunpack.c.h.b16 %v1091
    %v4128 = vunpack.c.l.b16 %v1092
    %v4129 = vunpack.c.h.b16 %v1092
    %v4130 = vunpack.c.l.b16 %v1093
    %v4131 = vunpack.c.h.b16 %v1093
    %v4132 = vunpack.c.l.b16 %v1094
    %v4133 = vunpack.c.h.b16 %v1094
    %v4134 = vunpack.c.l.b16 %v1095
    %v4135 = vunpack.c.h.b16 %v1095
    %v4136 = vunpack.c.l.b16 %v1096
    %v4137 = vunpack.c.h.b16 %v1096
    %v4138 = vunpack.c.l.b16 %v1097
    %v4139 = vunpack.c.h.b16 %v1097
    %v4140 = vunpack.c.l.b16 %v1098
    %v4141 = vunpack.c.h.b16 %v1098
    %v4142 = vunpack.c.l.b16 %v1099
    %v4143 = vunpack.c.h.b16 %v1099
    %v4144 = vunpack.c.l.b16 %v1100
    %v4145 = vunpack.c.h.b16 %v1100
    %v4146 = vunpack.c.l.b16 %v1101
    %v4147 = vunpack.c.h.b16 %v1101
    %v4148 = vunpack.c.l.b16 %v1102
    %v4149 = vunpack.c.h.b16 %v1102
    %v4150 = vunpack.c.l.b16 %v1103
    %v4151 = vunpack.c.h.b16 %v1103
    %v4152 = vunpack.c.l.b16 %v1104
    %v4153 = vunpack.c.h.b16 %v1104
    %v4154 = vunpack.c.l.b16 %v1105
    %v4155 = vunpack.c.h.b16 %v1105
    %v4156 = vunpack.c.l.b16 %v1106
    %v4157 = vunpack.c.h.b16 %v1106
    %v4158 = vpack.c.b16 %v2272, %v2270
    %v4159 = vpack.c.b16 %v2273, %v2271
    %v4160 = vpack.c.b16 %v2276, %v2274
    %v4161 = vpack.c.b16 %v2277, %v2275
    %v4162 = vpack.c.b16 %v2280, %v2278
    %v4163 = vpack.c.b16 %v2281, %v2279
    %v4164 = vpack.c.b16 %v2284, %v2282
    %v4165 = vpack.c.b16 %v2285, %v2283
    %v4166 = vpack.c.b16 %v2288, %v2286
    %v4167 = vpack.c.b16 %v2289, %v2287
    %v4168 = vpack.c.b16 %v2292, %v2290
    %v4169 = vpack.c.b16 %v2293, %v2291
    %v4170 = vpack.c.b16 %v2296, %v2294
    %v4171 = vpack.c.b16 %v2297, %v2295
    %v4172 = vpack.c.b16 %v2300, %v2298
    %v4173 = vpack.c.b16 %v2301, %v2299
    %v4174 = vpack.c.b16 %v2304, %v2302
    %v4175 = vpack.c.b16 %v2305, %v2303
    %v4176 = vpack.c.b16 %v2308, %v2306
    %v4177 = vpack.c.b16 %v2309, %v2307
    %v4178 = vpack.c.b16 %v2312, %v2310
    %v4179 = vpack.c.b16 %v2313, %v2311
    %v4180 = vpack.c.b16 %v2316, %v2314
    %v4181 = vpack.c.b16 %v2317, %v2315
    %v4182 = vpack.c.b16 %v2320, %v2318
    %v4183 = vpack.c.b16 %v2321, %v2319
    %v4184 = vpack.c.b16 %v2324, %v2322
    %v4185 = vpack.c.b16 %v2325, %v2323
    %v4186 = vpack.c.b16 %v2328, %v2326
    %v4187 = vpack.c.b16 %v2329, %v2327
    %v4188 = vpack.c.b16 %v2332, %v2330
    %v4189 = vpack.c.b16 %v2333, %v2331
    %v4190 = vpack.c.b16 %v2336, %v2334
    %v4191 = vpack.c.b16 %v2337, %v2335
    %v4192 = vpack.c.b16 %v2340, %v2338
    %v4193 = vpack.c.b16 %v2341, %v2339
    %v4194 = vpack.c.b16 %v2344, %v2342
    %v4195 = vpack.c.b16 %v2345, %v2343
    %v4196 = vpack.c.b16 %v2348, %v2346
    %v4197 = vpack.c.b16 %v2349, %v2347
    %v4198 = vpack.c.b16 %v2352, %v2350
    %v4199 = vpack.c.b16 %v2353, %v2351
    %v4200 = vpack.c.b16 %v2356, %v2354
    %v4201 = vpack.c.b16 %v2357, %v2355
    %v4202 = vpack.c.b16 %v2360, %v2358
    %v4203 = vpack.c.b16 %v2361, %v2359
    %v4204 = vpack.c.b16 %v2364, %v2362
    %v4205 = vpack.c.b16 %v2365, %v2363
    %v4206 = vpack.c.b16 %v2368, %v2366
    %v4207 = vpack.c.b16 %v2369, %v2367
    %v4208 = vpack.c.b16 %v2372, %v2370
    %v4209 = vpack.c.b16 %v2373, %v2371
    %v4210 = vpack.c.b16 %v2376, %v2374
    %v4211 = vpack.c.b16 %v2377, %v2375
    %v4212 = vpack.c.b16 %v2380, %v2378
    %v4213 = vpack.c.b16 %v2381, %v2379
    %v4214 = vpack.c.b16 %v2384, %v2382
    %v4215 = vpack.c.b16 %v2385, %v2383
    %v4216 = vpack.c.b16 %v2388, %v2386
    %v4217 = vpack.c.b16 %v2389, %v2387
    %v4218 = vpack.c.b16 %v2392, %v2390
    %v4219 = vpack.c.b16 %v2393, %v2391
    %v4220 = vpack.c.b16 %v2396, %v2394
    %v4221 = vpack.c.b16 %v2397, %v2395
    %v4222 = vpack.c.b16 %v2400, %v2398
    %v4223 = vpack.c.b16 %v2401, %v2399
    %v4224 = vpack.c.b16 %v2404, %v2402
    %v4225 = vpack.c.b16 %v2405, %v2403
    %v4226 = vpack.c.b16 %v2408, %v2406
    %v4227 = vpack.c.b16 %v2409, %v2407
    %v4228 = vpack.c.b16 %v2412, %v2410
    %v4229 = vpack.c.b16 %v2413, %v2411
    %v4230 = vpack.c.b16 %v2416, %v2414
    %v4231 = vpack.c.b16 %v2417, %v2415
    %v4232 = vpack.c.b16 %v2420, %v2418
    %v4233 = vpack.c.b16 %v2421, %v2419
    %v4234 = vpack.c.b16 %v2424, %v2422
    %v4235 = vpack.c.b16 %v2425, %v2423
    %v4236 = vpack.c.b16 %v2428, %v2426
    %v4237 = vpack.c.b16 %v2429, %v2427
    %v4238 = vpack.c.b16 %v2432, %v2430
    %v4239 = vpack.c.b16 %v2433, %v2431
    %v4240 = vpack.c.b16 %v2436, %v2434
    %v4241 = vpack.c.b16 %v2437, %v2435
    %v4242 = vpack.c.b16 %v2440, %v2438
    %v4243 = vpack.c.b16 %v2441, %v2439
    %v4244 = vpack.c.b16 %v2444, %v2442
    %v4245 = vpack.c.b16 %v2445, %v2443
    %v4246 = vpack.c.b16 %v2448, %v2446
    %v4247 = vpack.c.b16 %v2449, %v2447
    %v4248 = vpack.c.b16 %v2452, %v2450
    %v4249 = vpack.c.b16 %v2453, %v2451
    %v4250 = vpack.c.b16 %v2456, %v2454
    %v4251 = vpack.c.b16 %v2457, %v2455
    %v4252 = vpack.c.b16 %v2460, %v2458
    %v4253 = vpack.c.b16 %v2461, %v2459
    %v4254 = vpack.c.b16 %v2464, %v2462
    %v4255 = vpack.c.b16 %v2465, %v2463
    %v4256 = vpack.c.b16 %v2468, %v2466
    %v4257 = vpack.c.b16 %v2469, %v2467
    %v4258 = vpack.c.b16 %v2472, %v2470
    %v4259 = vpack.c.b16 %v2473, %v2471
    %v4260 = vpack.c.b16 %v2476, %v2474
    %v4261 = vpack.c.b16 %v2477, %v2475
    %v4262 = vpack.c.b16 %v2480, %v2478
    %v4263 = vpack.c.b16 %v2481, %v2479
    %v4264 = vpack.c.b16 %v2484, %v2482
    %v4265 = vpack.c.b16 %v2485, %v2483
    %v4266 = vpack.c.b16 %v2488, %v2486
    %v4267 = vpack.c.b16 %v2489, %v2487
    %v4268 = vpack.c.b16 %v2492, %v2490
    %v4269 = vpack.c.b16 %v2493, %v2491
    %v4270 = vpack.c.b16 %v2496, %v2494
    %v4271 = vpack.c.b16 %v2497, %v2495
    %v4272 = vpack.c.b16 %v2500, %v2498
    %v4273 = vpack.c.b16 %v2501, %v2499
    %v4274 = vpack.c.b16 %v2504, %v2502
    %v4275 = vpack.c.b16 %v2505, %v2503
    %v4276 = vpack.c.b16 %v2508, %v2506
    %v4277 = vpack.c.b16 %v2509, %v2507
    %v4278 = vpack.c.b16 %v2512, %v2510
    %v4279 = vpack.c.b16 %v2513, %v2511
    %v4280 = vpack.c.b16 %v2516, %v2514
    %v4281 = vpack.c.b16 %v2517, %v2515
    %v4282 = vpack.c.b16 %v2520, %v2518
    %v4283 = vpack.c.b16 %v2521, %v2519
    %v4284 = vpack.c.b16 %v2524, %v2522
    %v4285 = vpack.c.b16 %v2525, %v2523
    %v4286 = vpack.c.b16 %v2528, %v2526
    %v4287 = vpack.c.b16 %v2529, %v2527
    %v4288 = vpack.c.b16 %v2532, %v2530
    %v4289 = vpack.c.b16 %v2533, %v2531
    %v4290 = vpack.c.b16 %v2536, %v2534
    %v4291 = vpack.c.b16 %v2537, %v2535
    %v4292 = vpack.c.b16 %v2540, %v2538
    %v4293 = vpack.c.b16 %v2541, %v2539
    %v4294 = vpack.c.b16 %v2544, %v2542
    %v4295 = vpack.c.b16 %v2545, %v2543
    %v4296 = vpack.c.b16 %v2548, %v2546
    %v4297 = vpack.c.b16 %v2549, %v2547
    %v4298 = vpack.c.b16 %v2552, %v2550
    %v4299 = vpack.c.b16 %v2553, %v2551
    %v4300 = vpack.c.b16 %v2556, %v2554
    %v4301 = vpack.c.b16 %v2557, %v2555
    %v4302 = vpack.c.b16 %v2560, %v2558
    %v4303 = vpack.c.b16 %v2561, %v2559
    %v4304 = vpack.c.b16 %v2564, %v2562
    %v4305 = vpack.c.b16 %v2565, %v2563
    %v4306 = vpack.c.b16 %v2568, %v2566
    %v4307 = vpack.c.b16 %v2569, %v2567
    %v4308 = vpack.c.b16 %v2572, %v2570
    %v4309 = vpack.c.b16 %v2573, %v2571
    %v4310 = vpack.c.b16 %v2576, %v2574
    %v4311 = vpack.c.b16 %v2577, %v2575
    %v4312 = vpack.c.b16 %v2580, %v2578
    %v4313 = vpack.c.b16 %v2581, %v2579
    %v4314 = vpack.c.b16 %v2584, %v2582
    %v4315 = vpack.c.b16 %v2585, %v2583
    %v4316 = vpack.c.b16 %v2588, %v2586
    %v4317 = vpack.c.b16 %v2589, %v2587
    %v4318 = vpack.c.b16 %v2592, %v2590
    %v4319 = vpack.c.b16 %v2593, %v2591
    %v4320 = vpack.c.b16 %v2596, %v2594
    %v4321 = vpack.c.b16 %v2597, %v2595
    %v4322 = vpack.c.b16 %v2600, %v2598
    %v4323 = vpack.c.b16 %v2601, %v2599
    %v4324 = vpack.c.b16 %v2604, %v2602
    %v4325 = vpack.c.b16 %v2605, %v2603
    %v4326 = vpack.c.b16 %v2608, %v2606
    %v4327 = vpack.c.b16 %v2609, %v2607
    %v4328 = vpack.c.b16 %v2612, %v2610
    %v4329 = vpack.c.b16 %v2613, %v2611
    %v4330 = vpack.c.b16 %v2616, %v2614
    %v4331 = vpack.c.b16 %v2617, %v2615
    %v4332 = vpack.c.b16 %v2620, %v2618
    %v4333 = vpack.c.b16 %v2621, %v2619
    %v4334 = vpack.c.b16 %v2624, %v2622
    %v4335 = vpack.c.b16 %v2625, %v2623
    %v4336 = vpack.c.b16 %v2628, %v2626
    %v4337 = vpack.c.b16 %v2629, %v2627
    %v4338 = vpack.c.b16 %v2632, %v2630
    %v4339 = vpack.c.b16 %v2633, %v2631
    %v4340 = vpack.c.b16 %v2636, %v2634
    %v4341 = vpack.c.b16 %v2637, %v2635
    %v4342 = vpack.c.b16 %v2640, %v2638
    %v4343 = vpack.c.b16 %v2641, %v2639
    %v4344 = vpack.c.b16 %v2644, %v2642
    %v4345 = vpack.c.b16 %v2645, %v2643
    %v4346 = vpack.c.b16 %v2648, %v2646
    %v4347 = vpack.c.b16 %v2649, %v2647
    %v4348 = vpack.c.b16 %v2652, %v2650
    %v4349 = vpack.c.b16 %v2653, %v2651
    %v4350 = vpack.c.b16 %v2656, %v2654
    %v4351 = vpack.c.b16 %v2657, %v2655
    %v4352 = vpack.c.b16 %v2660, %v2658
    %v4353 = vpack.c.b16 %v2661, %v2659
    %v4354 = vpack.c.b16 %v2664, %v2662
    %v4355 = vpack.c.b16 %v2665, %v2663
    %v4356 = vpack.c.b16 %v2668, %v2666
    %v4357 = vpack.c.b16 %v2669, %v2667
    %v4358 = vpack.c.b16 %v2672, %v2670
    %v4359 = vpack.c.b16 %v2673, %v2671
    %v4360 = vpack.c.b16 %v2676, %v2674
    %v4361 = vpack.c.b16 %v2677, %v2675
    %v4362 = vpack.c.b16 %v2680, %v2678
    %v4363 = vpack.c.b16 %v2681, %v2679
    %v4364 = vpack.c.b16 %v2684, %v2682
    %v4365 = vpack.c.b16 %v2685, %v2683
    %v4366 = vpack.c.b16 %v2688, %v2686
    %v4367 = vpack.c.b16 %v2689, %v2687
    %v4368 = vpack.c.b16 %v2692, %v2690
    %v4369 = vpack.c.b16 %v2693, %v2691
    %v4370 = vpack.c.b16 %v2696, %v2694
    %v4371 = vpack.c.b16 %v2697, %v2695
    %v4372 = vpack.c.b16 %v2700, %v2698
    %v4373 = vpack.c.b16 %v2701, %v2699
    %v4374 = vpack.c.b16 %v2704, %v2702
    %v4375 = vpack.c.b16 %v2705, %v2703
    %v4376 = vpack.c.b16 %v2708, %v2706
    %v4377 = vpack.c.b16 %v2709, %v2707
    %v4378 = vpack.c.b16 %v2712, %v2710
    %v4379 = vpack.c.b16 %v2713, %v2711
    %v4380 = vpack.c.b16 %v2716, %v2714
    %v4381 = vpack.c.b16 %v2717, %v2715
    %v4382 = vpack.c.b16 %v2720, %v2718
    %v4383 = vpack.c.b16 %v2721, %v2719
    %v4384 = vpack.c.b16 %v2724, %v2722
    %v4385 = vpack.c.b16 %v2725, %v2723
    %v4386 = vpack.c.b16 %v2728, %v2726
    %v4387 = vpack.c.b16 %v2729, %v2727
    %v4388 = vpack.c.b16 %v2732, %v2730
    %v4389 = vpack.c.b16 %v2733, %v2731
    %v4390 = vpack.c.b16 %v2736, %v2734
    %v4391 = vpack.c.b16 %v2737, %v2735
    %v4392 = vpack.c.b16 %v2740, %v2738
    %v4393 = vpack.c.b16 %v2741, %v2739
    %v4394 = vpack.c.b16 %v2744, %v2742
    %v4395 = vpack.c.b16 %v2745, %v2743
    %v4396 = vpack.c.b16 %v2748, %v2746
    %v4397 = vpack.c.b16 %v2749, %v2747
    %v4398 = vpack.c.b16 %v2752, %v2750
    %v4399 = vpack.c.b16 %v2753, %v2751
    %v4400 = vpack.c.b16 %v2756, %v2754
    %v4401 = vpack.c.b16 %v2757, %v2755
    %v4402 = vpack.c.b16 %v2760, %v2758
    %v4403 = vpack.c.b16 %v2761, %v2759
    %v4404 = vpack.c.b16 %v2764, %v2762
    %v4405 = vpack.c.b16 %v2765, %v2763
    %v4406 = vpack.c.b16 %v2768, %v2766
    %v4407 = vpack.c.b16 %v2769, %v2767
    %v4408 = vpack.c.b16 %v2772, %v2770
    %v4409 = vpack.c.b16 %v2773, %v2771
    %v4410 = vpack.c.b16 %v2776, %v2774
    %v4411 = vpack.c.b16 %v2777, %v2775
    %v4412 = vpack.c.b16 %v2780, %v2778
    %v4413 = vpack.c.b16 %v2781, %v2779
    %v4414 = vpack.c.b16 %v2784, %v2782
    %v4415 = vpack.c.b16 %v2785, %v2783
    %v4416 = vpack.c.b16 %v2788, %v2786
    %v4417 = vpack.c.b16 %v2789, %v2787
    %v4418 = vpack.c.b16 %v2792, %v2790
    %v4419 = vpack.c.b16 %v2793, %v2791
    %v4420 = vpack.c.b16 %v2796, %v2794
    %v4421 = vpack.c.b16 %v2797, %v2795
    %v4422 = vpack.c.b16 %v2800, %v2798
    %v4423 = vpack.c.b16 %v2801, %v2799
    %v4424 = vpack.c.b16 %v2804, %v2802
    %v4425 = vpack.c.b16 %v2805, %v2803
    %v4426 = vpack.c.b16 %v2808, %v2806
    %v4427 = vpack.c.b16 %v2809, %v2807
    %v4428 = vpack.c.b16 %v2812, %v2810
    %v4429 = vpack.c.b16 %v2813, %v2811
    %v4430 = vpack.c.b16 %v2816, %v2814
    %v4431 = vpack.c.b16 %v2817, %v2815
    %v4432 = vpack.c.b16 %v2820, %v2818
    %v4433 = vpack.c.b16 %v2821, %v2819
    %v4434 = vpack.c.b16 %v2824, %v2822
    %v4435 = vpack.c.b16 %v2825, %v2823
    %v4436 = vpack.c.b16 %v2828, %v2826
    %v4437 = vpack.c.b16 %v2829, %v2827
    %v4438 = vpack.c.b16 %v2832, %v2830
    %v4439 = vpack.c.b16 %v2833, %v2831
    %v4440 = vpack.c.b16 %v2836, %v2834
    %v4441 = vpack.c.b16 %v2837, %v2835
    %v4442 = vpack.c.b16 %v2840, %v2838
    %v4443 = vpack.c.b16 %v2841, %v2839
    %v4444 = vpack.c.b16 %v2844, %v2842
    %v4445 = vpack.c.b16 %v2845, %v2843
    %v4446 = vpack.c.b16 %v2848, %v2846
    %v4447 = vpack.c.b16 %v2849, %v2847
    %v4448 = vpack.c.b16 %v2852, %v2850
    %v4449 = vpack.c.b16 %v2853, %v2851
    %v4450 = vpack.c.b16 %v2856, %v2854
    %v4451 = vpack.c.b16 %v2857, %v2855
    %v4452 = vpack.c.b16 %v2860, %v2858
    %v4453 = vpack.c.b16 %v2861, %v2859
    %v4454 = vpack.c.b16 %v2864, %v2862
    %v4455 = vpack.c.b16 %v2865, %v2863
    %v4456 = vpack.c.b16 %v2868, %v2866
    %v4457 = vpack.c.b16 %v2869, %v2867
    %v4458 = vpack.c.b16 %v2872, %v2870
    %v4459 = vpack.c.b16 %v2873, %v2871
    %v4460 = vpack.c.b16 %v2876, %v2874
    %v4461 = vpack.c.b16 %v2877, %v2875
    %v4462 = vpack.c.b16 %v2880, %v2878
    %v4463 = vpack.c.b16 %v2881, %v2879
    %v4464 = vpack.c.b16 %v2884, %v2882
    %v4465 = vpack.c.b16 %v2885, %v2883
    %v4466 = vpack.c.b16 %v2888, %v2886
    %v4467 = vpack.c.b16 %v2889, %v2887
    %v4468 = vpack.c.b16 %v2892, %v2890
    %v4469 = vpack.c.b16 %v2893, %v2891
    %v4470 = vpack.c.b16 %v2896, %v2894
    %v4471 = vpack.c.b16 %v2897, %v2895
    %v4472 = vpack.c.b16 %v2900, %v2898
    %v4473 = vpack.c.b16 %v2901, %v2899
    %v4474 = vpack.c.b16 %v2904, %v2902
    %v4475 = vpack.c.b16 %v2905, %v2903
    %v4476 = vpack.c.b16 %v2908, %v2906
    %v4477 = vpack.c.b16 %v2909, %v2907
    %v4478 = vpack.c.b16 %v2912, %v2910
    %v4479 = vpack.c.b16 %v2913, %v2911
    %v4480 = vpack.c.b16 %v2916, %v2914
    %v4481 = vpack.c.b16 %v2917, %v2915
    %v4482 = vpack.c.b16 %v2920, %v2918
    %v4483 = vpack.c.b16 %v2921, %v2919
    %v4484 = vpack.c.b16 %v2924, %v2922
    %v4485 = vpack.c.b16 %v2925, %v2923
    %v4486 = vpack.c.b16 %v2928, %v2926
    %v4487 = vpack.c.b16 %v2929, %v2927
    %v4488 = vpack.c.b16 %v2932, %v2930
    %v4489 = vpack.c.b16 %v2933, %v2931
    %v4490 = vpack.c.b16 %v2936, %v2934
    %v4491 = vpack.c.b16 %v2937, %v2935
    %v4492 = vpack.c.b16 %v2940, %v2938
    %v4493 = vpack.c.b16 %v2941, %v2939
    %v4494 = vpack.c.b16 %v2944, %v2942
    %v4495 = vpack.c.b16 %v2945, %v2943
    %v4496 = vpack.c.b16 %v2948, %v2946
    %v4497 = vpack.c.b16 %v2949, %v2947
    %v4498 = vpack.c.b16 %v2952, %v2950
    %v4499 = vpack.c.b16 %v2953, %v2951
    %v4500 = vpack.c.b16 %v2956, %v2954
    %v4501 = vpack.c.b16 %v2957, %v2955
    %v4502 = vpack.c.b16 %v2960, %v2958
    %v4503 = vpack.c.b16 %v2961, %v2959
    %v4504 = vpack.c.b16 %v2964, %v2962
    %v4505 = vpack.c.b16 %v2965, %v2963
    %v4506 = vpack.c.b16 %v2968, %v2966
    %v4507 = vpack.c.b16 %v2969, %v2967
    %v4508 = vpack.c.b16 %v2972, %v2970
    %v4509 = vpack.c.b16 %v2973, %v2971
    %v4510 = vpack.c.b16 %v2976, %v2974
    %v4511 = vpack.c.b16 %v2977, %v2975
    %v4512 = vpack.c.b16 %v2980, %v2978
    %v4513 = vpack.c.b16 %v2981, %v2979
    %v4514 = vpack.c.b16 %v2984, %v2982
    %v4515 = vpack.c.b16 %v2985, %v2983
    %v4516 = vpack.c.b16 %v2988, %v2986
    %v4517 = vpack.c.b16 %v2989, %v2987
    %v4518 = vpack.c.b16 %v2992, %v2990
    %v4519 = vpack.c.b16 %v2993, %v2991
    %v4520 = vpack.c.b16 %v2996, %v2994
    %v4521 = vpack.c.b16 %v2997, %v2995
    %v4522 = vpack.c.b16 %v3000, %v2998
    %v4523 = vpack.c.b16 %v3001, %v2999
    %v4524 = vpack.c.b16 %v3004, %v3002
    %v4525 = vpack.c.b16 %v3005, %v3003
    %v4526 = vpack.c.b16 %v3008, %v3006
    %v4527 = vpack.c.b16 %v3009, %v3007
    %v4528 = vpack.c.b16 %v3012, %v3010
    %v4529 = vpack.c.b16 %v3013, %v3011
    %v4530 = vpack.c.b16 %v3016, %v3014
    %v4531 = vpack.c.b16 %v3017, %v3015
    %v4532 = vpack.c.b16 %v3020, %v3018
    %v4533 = vpack.c.b16 %v3021, %v3019
    %v4534 = vpack.c.b16 %v3024, %v3022
    %v4535 = vpack.c.b16 %v3025, %v3023
    %v4536 = vpack.c.b16 %v3028, %v3026
    %v4537 = vpack.c.b16 %v3029, %v3027
    %v4538 = vpack.c.b16 %v3032, %v3030
    %v4539 = vpack.c.b16 %v3033, %v3031
    %v4540 = vpack.c.b16 %v3036, %v3034
    %v4541 = vpack.c.b16 %v3037, %v3035
    %v4542 = vpack.c.b16 %v3040, %v3038
    %v4543 = vpack.c.b16 %v3041, %v3039
    %v4544 = vpack.c.b16 %v3044, %v3042
    %v4545 = vpack.c.b16 %v3045, %v3043
    %v4546 = vpack.c.b16 %v3048, %v3046
    %v4547 = vpack.c.b16 %v3049, %v3047
    %v4548 = vpack.c.b16 %v3052, %v3050
    %v4549 = vpack.c.b16 %v3053, %v3051
    %v4550 = vpack.c.b16 %v3056, %v3054
    %v4551 = vpack.c.b16 %v3057, %v3055
    %v4552 = vpack.c.b16 %v3060, %v3058
    %v4553 = vpack.c.b16 %v3061, %v3059
    %v4554 = vpack.c.b16 %v3064, %v3062
    %v4555 = vpack.c.b16 %v3065, %v3063
    %v4556 = vpack.c.b16 %v3068, %v3066
    %v4557 = vpack.c.b16 %v3069, %v3067
    %v4558 = vpack.c.b16 %v3072, %v3070
    %v4559 = vpack.c.b16 %v3073, %v3071
    %v4560 = vpack.c.b16 %v3076, %v3074
    %v4561 = vpack.c.b16 %v3077, %v3075
    %v4562 = vpack.c.b16 %v3080, %v3078
    %v4563 = vpack.c.b16 %v3081, %v3079
    %v4564 = vpack.c.b16 %v3084, %v3082
    %v4565 = vpack.c.b16 %v3085, %v3083
    %v4566 = vpack.c.b16 %v3088, %v3086
    %v4567 = vpack.c.b16 %v3089, %v3087
    %v4568 = vpack.c.b16 %v3092, %v3090
    %v4569 = vpack.c.b16 %v3093, %v3091
    %v4570 = vpack.c.b16 %v3096, %v3094
    %v4571 = vpack.c.b16 %v3097, %v3095
    %v4572 = vpack.c.b16 %v3100, %v3098
    %v4573 = vpack.c.b16 %v3101, %v3099
    %v4574 = vpack.c.b16 %v3104, %v3102
    %v4575 = vpack.c.b16 %v3105, %v3103
    %v4576 = vpack.c.b16 %v3108, %v3106
    %v4577 = vpack.c.b16 %v3109, %v3107
    %v4578 = vpack.c.b16 %v3112, %v3110
    %v4579 = vpack.c.b16 %v3113, %v3111
    %v4580 = vpack.c.b16 %v3116, %v3114
    %v4581 = vpack.c.b16 %v3117, %v3115
    %v4582 = vpack.c.b16 %v3120, %v3118
    %v4583 = vpack.c.b16 %v3121, %v3119
    %v4584 = vpack.c.b16 %v3124, %v3122
    %v4585 = vpack.c.b16 %v3125, %v3123
    %v4586 = vpack.c.b16 %v3128, %v3126
    %v4587 = vpack.c.b16 %v3129, %v3127
    %v4588 = vpack.c.b16 %v3132, %v3130
    %v4589 = vpack.c.b16 %v3133, %v3131
    %v4590 = vpack.c.b16 %v3136, %v3134
    %v4591 = vpack.c.b16 %v3137, %v3135
    %v4592 = vpack.c.b16 %v3140, %v3138
    %v4593 = vpack.c.b16 %v3141, %v3139
    %v4594 = vpack.c.b16 %v3144, %v3142
    %v4595 = vpack.c.b16 %v3145, %v3143
    %v4596 = vpack.c.b16 %v3148, %v3146
    %v4597 = vpack.c.b16 %v3149, %v3147
    %v4598 = vpack.c.b16 %v3152, %v3150
    %v4599 = vpack.c.b16 %v3153, %v3151
    %v4600 = vpack.c.b16 %v3156, %v3154
    %v4601 = vpack.c.b16 %v3157, %v3155
    %v4602 = vpack.c.b16 %v3160, %v3158
    %v4603 = vpack.c.b16 %v3161, %v3159
    %v4604 = vpack.c.b16 %v3164, %v3162
    %v4605 = vpack.c.b16 %v3165, %v3163
    %v4606 = vpack.c.b16 %v3168, %v3166
    %v4607 = vpack.c.b16 %v3169, %v3167
    %v4608 = vpack.c.b16 %v3172, %v3170
    %v4609 = vpack.c.b16 %v3173, %v3171
    %v4610 = vpack.c.b16 %v3176, %v3174
    %v4611 = vpack.c.b16 %v3177, %v3175
    %v4612 = vpack.c.b16 %v3180, %v3178
    %v4613 = vpack.c.b16 %v3181, %v3179
    %v4614 = vpack.c.b16 %v3184, %v3182
    %v4615 = vpack.c.b16 %v3185, %v3183
    %v4616 = vpack.c.b16 %v3188, %v3186
    %v4617 = vpack.c.b16 %v3189, %v3187
    %v4618 = vpack.c.b16 %v3192, %v3190
    %v4619 = vpack.c.b16 %v3193, %v3191
    %v4620 = vpack.c.b16 %v3196, %v3194
    %v4621 = vpack.c.b16 %v3197, %v3195
    %v4622 = vpack.c.b16 %v3200, %v3198
    %v4623 = vpack.c.b16 %v3201, %v3199
    %v4624 = vpack.c.b16 %v3204, %v3202
    %v4625 = vpack.c.b16 %v3205, %v3203
    %v4626 = vpack.c.b16 %v3208, %v3206
    %v4627 = vpack.c.b16 %v3209, %v3207
    %v4628 = vpack.c.b16 %v3212, %v3210
    %v4629 = vpack.c.b16 %v3213, %v3211
    %v4630 = vpack.c.b16 %v3216, %v3214
    %v4631 = vpack.c.b16 %v3217, %v3215
    %v4632 = vpack.c.b16 %v3220, %v3218
    %v4633 = vpack.c.b16 %v3221, %v3219
    %v4634 = vpack.c.b16 %v3224, %v3222
    %v4635 = vpack.c.b16 %v3225, %v3223
    %v4636 = vpack.c.b16 %v3228, %v3226
    %v4637 = vpack.c.b16 %v3229, %v3227
    %v4638 = vpack.c.b16 %v3232, %v3230
    %v4639 = vpack.c.b16 %v3233, %v3231
    %v4640 = vpack.c.b16 %v3236, %v3234
    %v4641 = vpack.c.b16 %v3237, %v3235
    %v4642 = vpack.c.b16 %v3240, %v3238
    %v4643 = vpack.c.b16 %v3241, %v3239
    %v4644 = vpack.c.b16 %v3244, %v3242
    %v4645 = vpack.c.b16 %v3245, %v3243
    %v4646 = vpack.c.b16 %v3248, %v3246
    %v4647 = vpack.c.b16 %v3249, %v3247
    %v4648 = vpack.c.b16 %v3252, %v3250
    %v4649 = vpack.c.b16 %v3253, %v3251
    %v4650 = vpack.c.b16 %v3256, %v3254
    %v4651 = vpack.c.b16 %v3257, %v3255
    %v4652 = vpack.c.b16 %v3260, %v3258
    %v4653 = vpack.c.b16 %v3261, %v3259
    %v4654 = vpack.c.b16 %v3264, %v3262
    %v4655 = vpack.c.b16 %v3265, %v3263
    %v4656 = vpack.c.b16 %v3268, %v3266
    %v4657 = vpack.c.b16 %v3269, %v3267
    %v4658 = vpack.c.b16 %v3272, %v3270
    %v4659 = vpack.c.b16 %v3273, %v3271
    %v4660 = vpack.c.b16 %v3276, %v3274
    %v4661 = vpack.c.b16 %v3277, %v3275
    %v4662 = vpack.c.b16 %v3280, %v3278
    %v4663 = vpack.c.b16 %v3281, %v3279
    %v4664 = vpack.c.b16 %v3284, %v3282
    %v4665 = vpack.c.b16 %v3285, %v3283
    %v4666 = vpack.c.b16 %v3288, %v3286
    %v4667 = vpack.c.b16 %v3289, %v3287
    %v4668 = vpack.c.b16 %v3292, %v3290
    %v4669 = vpack.c.b16 %v3293, %v3291
    %v4670 = vpack.c.b16 %v3296, %v3294
    %v4671 = vpack.c.b16 %v3297, %v3295
    %v4672 = vpack.c.b16 %v3300, %v3298
    %v4673 = vpack.c.b16 %v3301, %v3299
    %v4674 = vpack.c.b16 %v3304, %v3302
    %v4675 = vpack.c.b16 %v3305, %v3303
    %v4676 = vpack.c.b16 %v3308, %v3306
    %v4677 = vpack.c.b16 %v3309, %v3307
    %v4678 = vpack.c.b16 %v3312, %v3310
    %v4679 = vpack.c.b16 %v3313, %v3311
    %v4680 = vpack.c.b16 %v3316, %v3314
    %v4681 = vpack.c.b16 %v3317, %v3315
    %v4682 = vpack.c.b16 %v3320, %v3318
    %v4683 = vpack.c.b16 %v3321, %v3319
    %v4684 = vpack.c.b16 %v3324, %v3322
    %v4685 = vpack.c.b16 %v3325, %v3323
    %v4686 = vpack.c.b16 %v3328, %v3326
    %v4687 = vpack.c.b16 %v3329, %v3327
    %v4688 = vpack.c.b16 %v3332, %v3330
    %v4689 = vpack.c.b16 %v3333, %v3331
    %v4690 = vpack.c.b16 %v3336, %v3334
    %v4691 = vpack.c.b16 %v3337, %v3335
    %v4692 = vpack.c.b16 %v3340, %v3338
    %v4693 = vpack.c.b16 %v3341, %v3339
    %v4694 = vpack.c.b16 %v3344, %v3342
    %v4695 = vpack.c.b16 %v3345, %v3343
    %v4696 = vpack.c.b16 %v3348, %v3346
    %v4697 = vpack.c.b16 %v3349, %v3347
    %v4698 = vpack.c.b16 %v3352, %v3350
    %v4699 = vpack.c.b16 %v3353, %v3351
    %v4700 = vpack.c.b16 %v3356, %v3354
    %v4701 = vpack.c.b16 %v3357, %v3355
    %v4702 = vpack.c.b16 %v3360, %v3358
    %v4703 = vpack.c.b16 %v3361, %v3359
    %v4704 = vpack.c.b16 %v3364, %v3362
    %v4705 = vpack.c.b16 %v3365, %v3363
    %v4706 = vpack.c.b16 %v3368, %v3366
    %v4707 = vpack.c.b16 %v3369, %v3367
    %v4708 = vpack.c.b16 %v3372, %v3370
    %v4709 = vpack.c.b16 %v3373, %v3371
    %v4710 = vpack.c.b16 %v3376, %v3374
    %v4711 = vpack.c.b16 %v3377, %v3375
    %v4712 = vpack.c.b16 %v3380, %v3378
    %v4713 = vpack.c.b16 %v3381, %v3379
    %v4714 = vpack.c.b16 %v3384, %v3382
    %v4715 = vpack.c.b16 %v3385, %v3383
    %v4716 = vpack.c.b16 %v3388, %v3386
    %v4717 = vpack.c.b16 %v3389, %v3387
    %v4718 = vpack.c.b16 %v3392, %v3390
    %v4719 = vpack.c.b16 %v3393, %v3391
    %v4720 = vpack.c.b16 %v3396, %v3394
    %v4721 = vpack.c.b16 %v3397, %v3395
    %v4722 = vpack.c.b16 %v3400, %v3398
    %v4723 = vpack.c.b16 %v3401, %v3399
    %v4724 = vpack.c.b16 %v3404, %v3402
    %v4725 = vpack.c.b16 %v3405, %v3403
    %v4726 = vpack.c.b16 %v3408, %v3406
    %v4727 = vpack.c.b16 %v3409, %v3407
    %v4728 = vpack.c.b16 %v3412, %v3410
    %v4729 = vpack.c.b16 %v3413, %v3411
    %v4730 = vpack.c.b16 %v3416, %v3414
    %v4731 = vpack.c.b16 %v3417, %v3415
    %v4732 = vpack.c.b16 %v3420, %v3418
    %v4733 = vpack.c.b16 %v3421, %v3419
    %v4734 = vpack.c.b16 %v3424, %v3422
    %v4735 = vpack.c.b16 %v3425, %v3423
    %v4736 = vpack.c.b16 %v3428, %v3426
    %v4737 = vpack.c.b16 %v3429, %v3427
    %v4738 = vpack.c.b16 %v3432, %v3430
    %v4739 = vpack.c.b16 %v3433, %v3431
    %v4740 = vpack.c.b16 %v3436, %v3434
    %v4741 = vpack.c.b16 %v3437, %v3435
    %v4742 = vpack.c.b16 %v3440, %v3438
    %v4743 = vpack.c.b16 %v3441, %v3439
    %v4744 = vpack.c.b16 %v3444, %v3442
    %v4745 = vpack.c.b16 %v3445, %v3443
    %v4746 = vpack.c.b16 %v3448, %v3446
    %v4747 = vpack.c.b16 %v3449, %v3447
    %v4748 = vpack.c.b16 %v3452, %v3450
    %v4749 = vpack.c.b16 %v3453, %v3451
    %v4750 = vpack.c.b16 %v3456, %v3454
    %v4751 = vpack.c.b16 %v3457, %v3455
    %v4752 = vpack.c.b16 %v3460, %v3458
    %v4753 = vpack.c.b16 %v3461, %v3459
    %v4754 = vpack.c.b16 %v3464, %v3462
    %v4755 = vpack.c.b16 %v3465, %v3463
    %v4756 = vpack.c.b16 %v3468, %v3466
    %v4757 = vpack.c.b16 %v3469, %v3467
    %v4758 = vpack.c.b16 %v3472, %v3470
    %v4759 = vpack.c.b16 %v3473, %v3471
    %v4760 = vpack.c.b16 %v3476, %v3474
    %v4761 = vpack.c.b16 %v3477, %v3475
    %v4762 = vpack.c.b16 %v3480, %v3478
    %v4763 = vpack.c.b16 %v3481, %v3479
    %v4764 = vpack.c.b16 %v3484, %v3482
    %v4765 = vpack.c.b16 %v3485, %v3483
    %v4766 = vpack.c.b16 %v3488, %v3486
    %v4767 = vpack.c.b16 %v3489, %v3487
    %v4768 = vpack.c.b16 %v3492, %v3490
    %v4769 = vpack.c.b16 %v3493, %v3491
    %v4770 = vpack.c.b16 %v3496, %v3494
    %v4771 = vpack.c.b16 %v3497, %v3495
    %v4772 = vpack.c.b16 %v3500, %v3498
    %v4773 = vpack.c.b16 %v3501, %v3499
    %v4774 = vpack.c.b16 %v3504, %v3502
    %v4775 = vpack.c.b16 %v3505, %v3503
    %v4776 = vpack.c.b16 %v3508, %v3506
    %v4777 = vpack.c.b16 %v3509, %v3507
    %v4778 = vpack.c.b16 %v3512, %v3510
    %v4779 = vpack.c.b16 %v3513, %v3511
    %v4780 = vpack.c.b16 %v3516, %v3514
    %v4781 = vpack.c.b16 %v3517, %v3515
    %v4782 = vpack.c.b16 %v3520, %v3518
    %v4783 = vpack.c.b16 %v3521, %v3519
    %v4784 = vpack.c.b16 %v3524, %v3522
    %v4785 = vpack.c.b16 %v3525, %v3523
    %v4786 = vpack.c.b16 %v3528, %v3526
    %v4787 = vpack.c.b16 %v3529, %v3527
    %v4788 = vpack.c.b16 %v3532, %v3530
    %v4789 = vpack.c.b16 %v3533, %v3531
    %v4790 = vpack.c.b16 %v3536, %v3534
    %v4791 = vpack.c.b16 %v3537, %v3535
    %v4792 = vpack.c.b16 %v3540, %v3538
    %v4793 = vpack.c.b16 %v3541, %v3539
    %v4794 = vpack.c.b16 %v3544, %v3542
    %v4795 = vpack.c.b16 %v3545, %v3543
    %v4796 = vpack.c.b16 %v3548, %v3546
    %v4797 = vpack.c.b16 %v3549, %v3547
    %v4798 = vpack.c.b16 %v3552, %v3550
    %v4799 = vpack.c.b16 %v3553, %v3551
    %v4800 = vpack.c.b16 %v3556, %v3554
    %v4801 = vpack.c.b16 %v3557, %v3555
    %v4802 = vpack.c.b16 %v3560, %v3558
    %v4803 = vpack.c.b16 %v3561, %v3559
    %v4804 = vpack.c.b16 %v3564, %v3562
    %v4805 = vpack.c.b16 %v3565, %v3563
    %v4806 = vpack.c.b16 %v3568, %v3566
    %v4807 = vpack.c.b16 %v3569, %v3567
    %v4808 = vpack.c.b16 %v3572, %v3570
    %v4809 = vpack.c.b16 %v3573, %v3571
    %v4810 = vpack.c.b16 %v3576, %v3574
    %v4811 = vpack.c.b16 %v3577, %v3575
    %v4812 = vpack.c.b16 %v3580, %v3578
    %v4813 = vpack.c.b16 %v3581, %v3579
    %v4814 = vpack.c.b16 %v3584, %v3582
    %v4815 = vpack.c.b16 %v3585, %v3583
    %v4816 = vpack.c.b16 %v3588, %v3586
    %v4817 = vpack.c.b16 %v3589, %v3587
    %v4818 = vpack.c.b16 %v3592, %v3590
    %v4819 = vpack.c.b16 %v3593, %v3591
    %v4820 = vpack.c.b16 %v3596, %v3594
    %v4821 = vpack.c.b16 %v3597, %v3595
    %v4822 = vpack.c.b16 %v3600, %v3598
    %v4823 = vpack.c.b16 %v3601, %v3599
    %v4824 = vpack.c.b16 %v3604, %v3602
    %v4825 = vpack.c.b16 %v3605, %v3603
    %v4826 = vpack.c.b16 %v3608, %v3606
    %v4827 = vpack.c.b16 %v3609, %v3607
    %v4828 = vpack.c.b16 %v3612, %v3610
    %v4829 = vpack.c.b16 %v3613, %v3611
    %v4830 = vpack.c.b16 %v3616, %v3614
    %v4831 = vpack.c.b16 %v3617, %v3615
    %v4832 = vpack.c.b16 %v3620, %v3618
    %v4833 = vpack.c.b16 %v3621, %v3619
    %v4834 = vpack.c.b16 %v3624, %v3622
    %v4835 = vpack.c.b16 %v3625, %v3623
    %v4836 = vpack.c.b16 %v3628, %v3626
    %v4837 = vpack.c.b16 %v3629, %v3627
    %v4838 = vpack.c.b16 %v3632, %v3630
    %v4839 = vpack.c.b16 %v3633, %v3631
    %v4840 = vpack.c.b16 %v3636, %v3634
    %v4841 = vpack.c.b16 %v3637, %v3635
    %v4842 = vpack.c.b16 %v3640, %v3638
    %v4843 = vpack.c.b16 %v3641, %v3639
    %v4844 = vpack.c.b16 %v3644, %v3642
    %v4845 = vpack.c.b16 %v3645, %v3643
    %v4846 = vpack.c.b16 %v3648, %v3646
    %v4847 = vpack.c.b16 %v3649, %v3647
    %v4848 = vpack.c.b16 %v3652, %v3650
    %v4849 = vpack.c.b16 %v3653, %v3651
    %v4850 = vpack.c.b16 %v3656, %v3654
    %v4851 = vpack.c.b16 %v3657, %v3655
    %v4852 = vpack.c.b16 %v3660, %v3658
    %v4853 = vpack.c.b16 %v3661, %v3659
    %v4854 = vpack.c.b16 %v3664, %v3662
    %v4855 = vpack.c.b16 %v3665, %v3663
    %v4856 = vpack.c.b16 %v3668, %v3666
    %v4857 = vpack.c.b16 %v3669, %v3667
    %v4858 = vpack.c.b16 %v3672, %v3670
    %v4859 = vpack.c.b16 %v3673, %v3671
    %v4860 = vpack.c.b16 %v3676, %v3674
    %v4861 = vpack.c.b16 %v3677, %v3675
    %v4862 = vpack.c.b16 %v3680, %v3678
    %v4863 = vpack.c.b16 %v3681, %v3679
    %v4864 = vpack.c.b16 %v3684, %v3682
    %v4865 = vpack.c.b16 %v3685, %v3683
    %v4866 = vpack.c.b16 %v3688, %v3686
    %v4867 = vpack.c.b16 %v3689, %v3687
    %v4868 = vpack.c.b16 %v3692, %v3690
    %v4869 = vpack.c.b16 %v3693, %v3691
    %v4870 = vpack.c.b16 %v3696, %v3694
    %v4871 = vpack.c.b16 %v3697, %v3695
    %v4872 = vpack.c.b16 %v3700, %v3698
    %v4873 = vpack.c.b16 %v3701, %v3699
    %v4874 = vpack.c.b16 %v3704, %v3702
    %v4875 = vpack.c.b16 %v3705, %v3703
    %v4876 = vpack.c.b16 %v3708, %v3706
    %v4877 = vpack.c.b16 %v3709, %v3707
    %v4878 = vpack.c.b16 %v3712, %v3710
    %v4879 = vpack.c.b16 %v3713, %v3711
    %v4880 = vpack.c.b16 %v3716, %v3714
    %v4881 = vpack.c.b16 %v3717, %v3715
    %v4882 = vpack.c.b16 %v3720, %v3718
    %v4883 = vpack.c.b16 %v3721, %v3719
    %v4884 = vpack.c.b16 %v3724, %v3722
    %v4885 = vpack.c.b16 %v3725, %v3723
    %v4886 = vpack.c.b16 %v3728, %v3726
    %v4887 = vpack.c.b16 %v3729, %v3727
    %v4888 = vpack.c.b16 %v3732, %v3730
    %v4889 = vpack.c.b16 %v3733, %v3731
    %v4890 = vpack.c.b16 %v3736, %v3734
    %v4891 = vpack.c.b16 %v3737, %v3735
    %v4892 = vpack.c.b16 %v3740, %v3738
    %v4893 = vpack.c.b16 %v3741, %v3739
    %v4894 = vpack.c.b16 %v3744, %v3742
    %v4895 = vpack.c.b16 %v3745, %v3743
    %v4896 = vpack.c.b16 %v3748, %v3746
    %v4897 = vpack.c.b16 %v3749, %v3747
    %v4898 = vpack.c.b16 %v3752, %v3750
    %v4899 = vpack.c.b16 %v3753, %v3751
    %v4900 = vpack.c.b16 %v3756, %v3754
    %v4901 = vpack.c.b16 %v3757, %v3755
    %v4902 = vpack.c.b16 %v3760, %v3758
    %v4903 = vpack.c.b16 %v3761, %v3759
    %v4904 = vpack.c.b16 %v3764, %v3762
    %v4905 = vpack.c.b16 %v3765, %v3763
    %v4906 = vpack.c.b16 %v3768, %v3766
    %v4907 = vpack.c.b16 %v3769, %v3767
    %v4908 = vpack.c.b16 %v3772, %v3770
    %v4909 = vpack.c.b16 %v3773, %v3771
    %v4910 = vpack.c.b16 %v3776, %v3774
    %v4911 = vpack.c.b16 %v3777, %v3775
    %v4912 = vpack.c.b16 %v3780, %v3778
    %v4913 = vpack.c.b16 %v3781, %v3779
    %v4914 = vpack.c.b16 %v3784, %v3782
    %v4915 = vpack.c.b16 %v3785, %v3783
    %v4916 = vpack.c.b16 %v3788, %v3786
    %v4917 = vpack.c.b16 %v3789, %v3787
    %v4918 = vpack.c.b16 %v3792, %v3790
    %v4919 = vpack.c.b16 %v3793, %v3791
    %v4920 = vpack.c.b16 %v3796, %v3794
    %v4921 = vpack.c.b16 %v3797, %v3795
    %v4922 = vpack.c.b16 %v3800, %v3798
    %v4923 = vpack.c.b16 %v3801, %v3799
    %v4924 = vpack.c.b16 %v3804, %v3802
    %v4925 = vpack.c.b16 %v3805, %v3803
    %v4926 = vpack.c.b16 %v3808, %v3806
    %v4927 = vpack.c.b16 %v3809, %v3807
    %v4928 = vpack.c.b16 %v3812, %v3810
    %v4929 = vpack.c.b16 %v3813, %v3811
    %v4930 = vpack.c.b16 %v3816, %v3814
    %v4931 = vpack.c.b16 %v3817, %v3815
    %v4932 = vpack.c.b16 %v3820, %v3818
    %v4933 = vpack.c.b16 %v3821, %v3819
    %v4934 = vpack.c.b16 %v3824, %v3822
    %v4935 = vpack.c.b16 %v3825, %v3823
    %v4936 = vpack.c.b16 %v3828, %v3826
    %v4937 = vpack.c.b16 %v3829, %v3827
    %v4938 = vpack.c.b16 %v3832, %v3830
    %v4939 = vpack.c.b16 %v3833, %v3831
    %v4940 = vpack.c.b16 %v3836, %v3834
    %v4941 = vpack.c.b16 %v3837, %v3835
    %v4942 = vpack.c.b16 %v3840, %v3838
    %v4943 = vpack.c.b16 %v3841, %v3839
    %v4944 = vpack.c.b16 %v3844, %v3842
    %v4945 = vpack.c.b16 %v3845, %v3843
    %v4946 = vpack.c.b16 %v3848, %v3846
    %v4947 = vpack.c.b16 %v3849, %v3847
    %v4948 = vpack.c.b16 %v3852, %v3850
    %v4949 = vpack.c.b16 %v3853, %v3851
    %v4950 = vpack.c.b16 %v3856, %v3854
    %v4951 = vpack.c.b16 %v3857, %v3855
    %v4952 = vpack.c.b16 %v3860, %v3858
    %v4953 = vpack.c.b16 %v3861, %v3859
    %v4954 = vpack.c.b16 %v3864, %v3862
    %v4955 = vpack.c.b16 %v3865, %v3863
    %v4956 = vpack.c.b16 %v3868, %v3866
    %v4957 = vpack.c.b16 %v3869, %v3867
    %v4958 = vpack.c.b16 %v3872, %v3870
    %v4959 = vpack.c.b16 %v3873, %v3871
    %v4960 = vpack.c.b16 %v3876, %v3874
    %v4961 = vpack.c.b16 %v3877, %v3875
    %v4962 = vpack.c.b16 %v3880, %v3878
    %v4963 = vpack.c.b16 %v3881, %v3879
    %v4964 = vpack.c.b16 %v3884, %v3882
    %v4965 = vpack.c.b16 %v3885, %v3883
    %v4966 = vpack.c.b16 %v3888, %v3886
    %v4967 = vpack.c.b16 %v3889, %v3887
    %v4968 = vpack.c.b16 %v3892, %v3890
    %v4969 = vpack.c.b16 %v3893, %v3891
    %v4970 = vpack.c.b16 %v3896, %v3894
    %v4971 = vpack.c.b16 %v3897, %v3895
    %v4972 = vpack.c.b16 %v3900, %v3898
    %v4973 = vpack.c.b16 %v3901, %v3899
    %v4974 = vpack.c.b16 %v3904, %v3902
    %v4975 = vpack.c.b16 %v3905, %v3903
    %v4976 = vpack.c.b16 %v3908, %v3906
    %v4977 = vpack.c.b16 %v3909, %v3907
    %v4978 = vpack.c.b16 %v3912, %v3910
    %v4979 = vpack.c.b16 %v3913, %v3911
    %v4980 = vpack.c.b16 %v3916, %v3914
    %v4981 = vpack.c.b16 %v3917, %v3915
    %v4982 = vpack.c.b16 %v3920, %v3918
    %v4983 = vpack.c.b16 %v3921, %v3919
    %v4984 = vpack.c.b16 %v3924, %v3922
    %v4985 = vpack.c.b16 %v3925, %v3923
    %v4986 = vpack.c.b16 %v3928, %v3926
    %v4987 = vpack.c.b16 %v3929, %v3927
    %v4988 = vpack.c.b16 %v3932, %v3930
    %v4989 = vpack.c.b16 %v3933, %v3931
    %v4990 = vpack.c.b16 %v3936, %v3934
    %v4991 = vpack.c.b16 %v3937, %v3935
    %v4992 = vpack.c.b16 %v3940, %v3938
    %v4993 = vpack.c.b16 %v3941, %v3939
    %v4994 = vpack.c.b16 %v3944, %v3942
    %v4995 = vpack.c.b16 %v3945, %v3943
    %v4996 = vpack.c.b16 %v3948, %v3946
    %v4997 = vpack.c.b16 %v3949, %v3947
    %v4998 = vpack.c.b16 %v3952, %v3950
    %v4999 = vpack.c.b16 %v3953, %v3951
    %v5000 = vpack.c.b16 %v3956, %v3954
    %v5001 = vpack.c.b16 %v3957, %v3955
    %v5002 = vpack.c.b16 %v3960, %v3958
    %v5003 = vpack.c.b16 %v3961, %v3959
    %v5004 = vpack.c.b16 %v3964, %v3962
    %v5005 = vpack.c.b16 %v3965, %v3963
    %v5006 = vpack.c.b16 %v3968, %v3966
    %v5007 = vpack.c.b16 %v3969, %v3967
    %v5008 = vpack.c.b16 %v3972, %v3970
    %v5009 = vpack.c.b16 %v3973, %v3971
    %v5010 = vpack.c.b16 %v3976, %v3974
    %v5011 = vpack.c.b16 %v3977, %v3975
    %v5012 = vpack.c.b16 %v3980, %v3978
    %v5013 = vpack.c.b16 %v3981, %v3979
    %v5014 = vpack.c.b16 %v3984, %v3982
    %v5015 = vpack.c.b16 %v3985, %v3983
    %v5016 = vpack.c.b16 %v3988, %v3986
    %v5017 = vpack.c.b16 %v3989, %v3987
    %v5018 = vpack.c.b16 %v3992, %v3990
    %v5019 = vpack.c.b16 %v3993, %v3991
    %v5020 = vpack.c.b16 %v3996, %v3994
    %v5021 = vpack.c.b16 %v3997, %v3995
    %v5022 = vpack.c.b16 %v4000, %v3998
    %v5023 = vpack.c.b16 %v4001, %v3999
    %v5024 = vpack.c.b16 %v4004, %v4002
    %v5025 = vpack.c.b16 %v4005, %v4003
    %v5026 = vpack.c.b16 %v4008, %v4006
    %v5027 = vpack.c.b16 %v4009, %v4007
    %v5028 = vpack.c.b16 %v4012, %v4010
    %v5029 = vpack.c.b16 %v4013, %v4011
    %v5030 = vpack.c.b16 %v4016, %v4014
    %v5031 = vpack.c.b16 %v4017, %v4015
    %v5032 = vpack.c.b16 %v4020, %v4018
    %v5033 = vpack.c.b16 %v4021, %v4019
    %v5034 = vpack.c.b16 %v4024, %v4022
    %v5035 = vpack.c.b16 %v4025, %v4023
    %v5036 = vpack.c.b16 %v4028, %v4026
    %v5037 = vpack.c.b16 %v4029, %v4027
    %v5038 = vpack.c.b16 %v4032, %v4030
    %v5039 = vpack.c.b16 %v4033, %v4031
    %v5040 = vpack.c.b16 %v4036, %v4034
    %v5041 = vpack.c.b16 %v4037, %v4035
    %v5042 = vpack.c.b16 %v4040, %v4038
    %v5043 = vpack.c.b16 %v4041, %v4039
    %v5044 = vpack.c.b16 %v4044, %v4042
    %v5045 = vpack.c.b16 %v4045, %v4043
    %v5046 = vpack.c.b16 %v4048, %v4046
    %v5047 = vpack.c.b16 %v4049, %v4047
    %v5048 = vpack.c.b16 %v4052, %v4050
    %v5049 = vpack.c.b16 %v4053, %v4051
    %v5050 = vpack.c.b16 %v4056, %v4054
    %v5051 = vpack.c.b16 %v4057, %v4055
    %v5052 = vpack.c.b16 %v4060, %v4058
    %v5053 = vpack.c.b16 %v4061, %v4059
    %v5054 = vpack.c.b16 %v4064, %v4062
    %v5055 = vpack.c.b16 %v4065, %v4063
    %v5056 = vpack.c.b16 %v4068, %v4066
    %v5057 = vpack.c.b16 %v4069, %v4067
    %v5058 = vpack.c.b16 %v4072, %v4070
    %v5059 = vpack.c.b16 %v4073, %v4071
    %v5060 = vpack.c.b16 %v4076, %v4074
    %v5061 = vpack.c.b16 %v4077, %v4075
    %v5062 = vpack.c.b16 %v4080, %v4078
    %v5063 = vpack.c.b16 %v4081, %v4079
    %v5064 = vpack.c.b16 %v4084, %v4082
    %v5065 = vpack.c.b16 %v4085, %v4083
    %v5066 = vpack.c.b16 %v4088, %v4086
    %v5067 = vpack.c.b16 %v4089, %v4087
    %v5068 = vpack.c.b16 %v4092, %v4090
    %v5069 = vpack.c.b16 %v4093, %v4091
    %v5070 = vpack.c.b16 %v4096, %v4094
    %v5071 = vpack.c.b16 %v4097, %v4095
    %v5072 = vpack.c.b16 %v4100, %v4098
    %v5073 = vpack.c.b16 %v4101, %v4099
    %v5074 = vpack.c.b16 %v4104, %v4102
    %v5075 = vpack.c.b16 %v4105, %v4103
    %v5076 = vpack.c.b16 %v4108, %v4106
    %v5077 = vpack.c.b16 %v4109, %v4107
    %v5078 = vpack.c.b16 %v4112, %v4110
    %v5079 = vpack.c.b16 %v4113, %v4111
    %v5080 = vpack.c.b16 %v4116, %v4114
    %v5081 = vpack.c.b16 %v4117, %v4115
    %v5082 = vpack.c.b16 %v4120, %v4118
    %v5083 = vpack.c.b16 %v4121, %v4119
    %v5084 = vpack.c.b16 %v4124, %v4122
    %v5085 = vpack.c.b16 %v4125, %v4123
    %v5086 = vpack.c.b16 %v4128, %v4126
    %v5087 = vpack.c.b16 %v4129, %v4127
    %v5088 = vpack.c.b16 %v4132, %v4130
    %v5089 = vpack.c.b16 %v4133, %v4131
    %v5090 = vpack.c.b16 %v4136, %v4134
    %v5091 = vpack.c.b16 %v4137, %v4135
    %v5092 = vpack.c.b16 %v4140, %v4138
    %v5093 = vpack.c.b16 %v4141, %v4139
    %v5094 = vpack.c.b16 %v4144, %v4142
    %v5095 = vpack.c.b16 %v4145, %v4143
    %v5096 = vpack.c.b16 %v4148, %v4146
    %v5097 = vpack.c.b16 %v4149, %v4147
    %v5098 = vpack.c.b16 %v4152, %v4150
    %v5099 = vpack.c.b16 %v4153, %v4151
    %v5100 = vpack.c.b16 %v4156, %v4154
    %v5101 = vpack.c.b16 %v4157, %v4155
    %6046 = vmatprep.subr.bf16.mxu0 %v4173
    %6047 = vmatpush1.bf16.msra.mxu0 %v4172
    %6048 = vmatprep.subr.bf16.mxu0 %v4171
    %6049 = vmatpush1.bf16.msra.mxu0 %v4170
    %6050 = vmatprep.subr.bf16.mxu0 %v4169
    %6051 = vmatpush1.bf16.msra.mxu0 %v4168
    %6052 = vmatprep.subr.bf16.mxu0 %v4167
    %6053 = vmatpush1.bf16.msra.mxu0 %v4166
    %6054 = vmatprep.subr.bf16.mxu0 %v4165
    %6055 = vmatpush1.bf16.msra.mxu0 %v4164
    %6056 = vmatprep.subr.bf16.mxu0 %v4163
    %6057 = vmatpush1.bf16.msra.mxu0 %v4162
    %6058 = vmatprep.subr.bf16.mxu0 %v4161
    %6059 = vmatpush1.bf16.msra.mxu0 %v4160
    %6060 = vmatprep.subr.bf16.mxu0 %v4159
    %6061 = vmatpush1.bf16.msra.mxu0 %v4158
    %6062 = vmatprep.subr.bf16.mxu0 %v4189
    %6063 = vmatpush2.bf16.msra.mxu0 %v4188
    %6064 = vmatprep.subr.bf16.mxu0 %v4187
    %6065 = vmatpush2.bf16.msra.mxu0 %v4186
    %6066 = vmatprep.subr.bf16.mxu0 %v4185
    %6067 = vmatpush2.bf16.msra.mxu0 %v4184
    %6068 = vmatprep.subr.bf16.mxu0 %v4183
    %6069 = vmatpush2.bf16.msra.mxu0 %v4182
    %6070 = vmatprep.subr.bf16.mxu0 %v4181
    %6071 = vmatpush2.bf16.msra.mxu0 %v4180
    %6072 = vmatprep.subr.bf16.mxu0 %v4179
    %6073 = vmatpush2.bf16.msra.mxu0 %v4178
    %6074 = vmatprep.subr.bf16.mxu0 %v4177
    %6075 = vmatpush2.bf16.msra.mxu0 %v4176
    %6076 = vmatprep.subr.bf16.mxu0 %v4175
    %6077 = vmatpush2.bf16.msra.mxu0 %v4174
    %6078 = vmatprep.mubr.bf16.mxu0 %v1209
    %6079 = vmatmul.mubr.bf16.gmra.mxu0 %v1208
    %v6080 = vpop.f32.mrf.mxu0
    %v6081 = vadd.f32 %v1112, %v6080
    %v6082 = vpop.f32.mrf.mxu0
    %v6083 = vadd.f32 %v1116, %v6082
    %v6084 = vpop.f32.mrf.mxu0
    %v6085 = vpop.f32.mrf.mxu0
    %6086 = vdwg.mxu0
    %6087 = vmatprep.subr.bf16.mxu0 %v4205
    %6088 = vmatpush1.bf16.msra.mxu0 %v4204
    %6089 = vmatprep.subr.bf16.mxu0 %v4203
    %6090 = vmatpush1.bf16.msra.mxu0 %v4202
    %6091 = vmatprep.subr.bf16.mxu0 %v4201
    %6092 = vmatpush1.bf16.msra.mxu0 %v4200
    %6093 = vmatprep.subr.bf16.mxu0 %v4199
    %6094 = vmatpush1.bf16.msra.mxu0 %v4198
    %6095 = vmatprep.subr.bf16.mxu0 %v4197
    %6096 = vmatpush1.bf16.msra.mxu0 %v4196
    %6097 = vmatprep.subr.bf16.mxu0 %v4195
    %6098 = vmatpush1.bf16.msra.mxu0 %v4194
    %6099 = vmatprep.subr.bf16.mxu0 %v4193
    %6100 = vmatpush1.bf16.msra.mxu0 %v4192
    %6101 = vmatprep.subr.bf16.mxu0 %v4191
    %6102 = vmatpush1.bf16.msra.mxu0 %v4190
    %6103 = vmatprep.subr.bf16.mxu0 %v4221
    %6104 = vmatpush2.bf16.msra.mxu0 %v4220
    %6105 = vmatprep.subr.bf16.mxu0 %v4219
    %6106 = vmatpush2.bf16.msra.mxu0 %v4218
    %6107 = vmatprep.subr.bf16.mxu0 %v4217
    %6108 = vmatpush2.bf16.msra.mxu0 %v4216
    %6109 = vmatprep.subr.bf16.mxu0 %v4215
    %6110 = vmatpush2.bf16.msra.mxu0 %v4214
    %6111 = vmatprep.subr.bf16.mxu0 %v4213
    %6112 = vmatpush2.bf16.msra.mxu0 %v4212
    %6113 = vmatprep.subr.bf16.mxu0 %v4211
    %6114 = vmatpush2.bf16.msra.mxu0 %v4210
    %6115 = vmatprep.subr.bf16.mxu0 %v4209
    %6116 = vmatpush2.bf16.msra.mxu0 %v4208
    %6117 = vmatprep.subr.bf16.mxu0 %v4207
    %6118 = vmatpush2.bf16.msra.mxu0 %v4206
    %6119 = vmatprep.mubr.bf16.mxu0 %v1211
    %6120 = vmatmul.mubr.bf16.gmra.mxu0 %v1210
    %v6121 = vpop.f32.mrf.mxu0
    %v6122 = vadd.f32 %v6081, %v6121
    %v6123 = vpop.f32.mrf.mxu0
    %v6124 = vadd.f32 %v6083, %v6123
    %v6125 = vpop.f32.mrf.mxu0
    %v6126 = vpop.f32.mrf.mxu0
    %6127 = vdwg.mxu0
    %6128 = vmatprep.subr.bf16.mxu0 %v4237
    %6129 = vmatpush1.bf16.msra.mxu0 %v4236
    %6130 = vmatprep.subr.bf16.mxu0 %v4235
    %6131 = vmatpush1.bf16.msra.mxu0 %v4234
    %6132 = vmatprep.subr.bf16.mxu0 %v4233
    %6133 = vmatpush1.bf16.msra.mxu0 %v4232
    %6134 = vmatprep.subr.bf16.mxu0 %v4231
    %6135 = vmatpush1.bf16.msra.mxu0 %v4230
    %6136 = vmatprep.subr.bf16.mxu0 %v4229
    %6137 = vmatpush1.bf16.msra.mxu0 %v4228
    %6138 = vmatprep.subr.bf16.mxu0 %v4227
    %6139 = vmatpush1.bf16.msra.mxu0 %v4226
    %6140 = vmatprep.subr.bf16.mxu0 %v4225
    %6141 = vmatpush1.bf16.msra.mxu0 %v4224
    %6142 = vmatprep.subr.bf16.mxu0 %v4223
    %6143 = vmatpush1.bf16.msra.mxu0 %v4222
    %6144 = vmatprep.subr.bf16.mxu0 %v4253
    %6145 = vmatpush2.bf16.msra.mxu0 %v4252
    %6146 = vmatprep.subr.bf16.mxu0 %v4251
    %6147 = vmatpush2.bf16.msra.mxu0 %v4250
    %6148 = vmatprep.subr.bf16.mxu0 %v4249
    %6149 = vmatpush2.bf16.msra.mxu0 %v4248
    %6150 = vmatprep.subr.bf16.mxu0 %v4247
    %6151 = vmatpush2.bf16.msra.mxu0 %v4246
    %6152 = vmatprep.subr.bf16.mxu0 %v4245
    %6153 = vmatpush2.bf16.msra.mxu0 %v4244
    %6154 = vmatprep.subr.bf16.mxu0 %v4243
    %6155 = vmatpush2.bf16.msra.mxu0 %v4242
    %6156 = vmatprep.subr.bf16.mxu0 %v4241
    %6157 = vmatpush2.bf16.msra.mxu0 %v4240
    %6158 = vmatprep.subr.bf16.mxu0 %v4239
    %6159 = vmatpush2.bf16.msra.mxu0 %v4238
    %6160 = vmatprep.mubr.bf16.mxu0 %v1213
    %6161 = vmatmul.mubr.bf16.gmra.mxu0 %v1212
    %v6162 = vpop.f32.mrf.mxu0
    %v6163 = vadd.f32 %v6122, %v6162
    %v6164 = vpop.f32.mrf.mxu0
    %v6165 = vadd.f32 %v6124, %v6164
    %v6166 = vpop.f32.mrf.mxu0
    %v6167 = vpop.f32.mrf.mxu0
    %6168 = vdwg.mxu0
    %6169 = vmatprep.subr.bf16.mxu0 %v4269
    %6170 = vmatpush1.bf16.msra.mxu0 %v4268
    %6171 = vmatprep.subr.bf16.mxu0 %v4267
    %6172 = vmatpush1.bf16.msra.mxu0 %v4266
    %6173 = vmatprep.subr.bf16.mxu0 %v4265
    %6174 = vmatpush1.bf16.msra.mxu0 %v4264
    %6175 = vmatprep.subr.bf16.mxu0 %v4263
    %6176 = vmatpush1.bf16.msra.mxu0 %v4262
    %6177 = vmatprep.subr.bf16.mxu0 %v4261
    %6178 = vmatpush1.bf16.msra.mxu0 %v4260
    %6179 = vmatprep.subr.bf16.mxu0 %v4259
    %6180 = vmatpush1.bf16.msra.mxu0 %v4258
    %6181 = vmatprep.subr.bf16.mxu0 %v4257
    %6182 = vmatpush1.bf16.msra.mxu0 %v4256
    %6183 = vmatprep.subr.bf16.mxu0 %v4255
    %6184 = vmatpush1.bf16.msra.mxu0 %v4254
    %6185 = vmatprep.subr.bf16.mxu0 %v4285
    %6186 = vmatpush2.bf16.msra.mxu0 %v4284
    %6187 = vmatprep.subr.bf16.mxu0 %v4283
    %6188 = vmatpush2.bf16.msra.mxu0 %v4282
    %6189 = vmatprep.subr.bf16.mxu0 %v4281
    %6190 = vmatpush2.bf16.msra.mxu0 %v4280
    %6191 = vmatprep.subr.bf16.mxu0 %v4279
    %6192 = vmatpush2.bf16.msra.mxu0 %v4278
    %6193 = vmatprep.subr.bf16.mxu0 %v4277
    %6194 = vmatpush2.bf16.msra.mxu0 %v4276
    %6195 = vmatprep.subr.bf16.mxu0 %v4275
    %6196 = vmatpush2.bf16.msra.mxu0 %v4274
    %6197 = vmatprep.subr.bf16.mxu0 %v4273
    %6198 = vmatpush2.bf16.msra.mxu0 %v4272
    %6199 = vmatprep.subr.bf16.mxu0 %v4271
    %6200 = vmatpush2.bf16.msra.mxu0 %v4270
    %6201 = vmatprep.mubr.bf16.mxu0 %v1215
    %6202 = vmatmul.mubr.bf16.gmra.mxu0 %v1214
    %v6203 = vpop.f32.mrf.mxu0
    %v6204 = vadd.f32 %v6163, %v6203
    %v6205 = vpop.f32.mrf.mxu0
    %v6206 = vadd.f32 %v6165, %v6205
    %v6207 = vpop.f32.mrf.mxu0
    %v6208 = vpop.f32.mrf.mxu0
    %6209 = vdwg.mxu0
    %6210 = vmatprep.subr.bf16.mxu0 %v4301
    %6211 = vmatpush1.bf16.msra.mxu0 %v4300
    %6212 = vmatprep.subr.bf16.mxu0 %v4299
    %6213 = vmatpush1.bf16.msra.mxu0 %v4298
    %6214 = vmatprep.subr.bf16.mxu0 %v4297
    %6215 = vmatpush1.bf16.msra.mxu0 %v4296
    %6216 = vmatprep.subr.bf16.mxu0 %v4295
    %6217 = vmatpush1.bf16.msra.mxu0 %v4294
    %6218 = vmatprep.subr.bf16.mxu0 %v4293
    %6219 = vmatpush1.bf16.msra.mxu0 %v4292
    %6220 = vmatprep.subr.bf16.mxu0 %v4291
    %6221 = vmatpush1.bf16.msra.mxu0 %v4290
    %6222 = vmatprep.subr.bf16.mxu0 %v4289
    %6223 = vmatpush1.bf16.msra.mxu0 %v4288
    %6224 = vmatprep.subr.bf16.mxu0 %v4287
    %6225 = vmatpush1.bf16.msra.mxu0 %v4286
    %6226 = vmatprep.subr.bf16.mxu0 %v4317
    %6227 = vmatpush2.bf16.msra.mxu0 %v4316
    %6228 = vmatprep.subr.bf16.mxu0 %v4315
    %6229 = vmatpush2.bf16.msra.mxu0 %v4314
    %6230 = vmatprep.subr.bf16.mxu0 %v4313
    %6231 = vmatpush2.bf16.msra.mxu0 %v4312
    %6232 = vmatprep.subr.bf16.mxu0 %v4311
    %6233 = vmatpush2.bf16.msra.mxu0 %v4310
    %6234 = vmatprep.subr.bf16.mxu0 %v4309
    %6235 = vmatpush2.bf16.msra.mxu0 %v4308
    %6236 = vmatprep.subr.bf16.mxu0 %v4307
    %6237 = vmatpush2.bf16.msra.mxu0 %v4306
    %6238 = vmatprep.subr.bf16.mxu0 %v4305
    %6239 = vmatpush2.bf16.msra.mxu0 %v4304
    %6240 = vmatprep.subr.bf16.mxu0 %v4303
    %6241 = vmatpush2.bf16.msra.mxu0 %v4302
    %6242 = vmatprep.mubr.bf16.mxu0 %v1217
    %6243 = vmatmul.mubr.bf16.gmra.mxu0 %v1216
    %v6244 = vpop.f32.mrf.mxu0
    %v6245 = vadd.f32 %v6204, %v6244
    %v6246 = vpop.f32.mrf.mxu0
    %v6247 = vadd.f32 %v6206, %v6246
    %v6248 = vpop.f32.mrf.mxu0
    %v6249 = vpop.f32.mrf.mxu0
    %6250 = vdwg.mxu0
    %6251 = vmatprep.subr.bf16.mxu0 %v4333
    %6252 = vmatpush1.bf16.msra.mxu0 %v4332
    %6253 = vmatprep.subr.bf16.mxu0 %v4331
    %6254 = vmatpush1.bf16.msra.mxu0 %v4330
    %6255 = vmatprep.subr.bf16.mxu0 %v4329
    %6256 = vmatpush1.bf16.msra.mxu0 %v4328
    %6257 = vmatprep.subr.bf16.mxu0 %v4327
    %6258 = vmatpush1.bf16.msra.mxu0 %v4326
    %6259 = vmatprep.subr.bf16.mxu0 %v4325
    %6260 = vmatpush1.bf16.msra.mxu0 %v4324
    %6261 = vmatprep.subr.bf16.mxu0 %v4323
    %6262 = vmatpush1.bf16.msra.mxu0 %v4322
    %6263 = vmatprep.subr.bf16.mxu0 %v4321
    %6264 = vmatpush1.bf16.msra.mxu0 %v4320
    %6265 = vmatprep.subr.bf16.mxu0 %v4319
    %6266 = vmatpush1.bf16.msra.mxu0 %v4318
    %6267 = vmatprep.subr.bf16.mxu0 %v4349
    %6268 = vmatpush2.bf16.msra.mxu0 %v4348
    %6269 = vmatprep.subr.bf16.mxu0 %v4347
    %6270 = vmatpush2.bf16.msra.mxu0 %v4346
    %6271 = vmatprep.subr.bf16.mxu0 %v4345
    %6272 = vmatpush2.bf16.msra.mxu0 %v4344
    %6273 = vmatprep.subr.bf16.mxu0 %v4343
    %6274 = vmatpush2.bf16.msra.mxu0 %v4342
    %6275 = vmatprep.subr.bf16.mxu0 %v4341
    %6276 = vmatpush2.bf16.msra.mxu0 %v4340
    %6277 = vmatprep.subr.bf16.mxu0 %v4339
    %6278 = vmatpush2.bf16.msra.mxu0 %v4338
    %6279 = vmatprep.subr.bf16.mxu0 %v4337
    %6280 = vmatpush2.bf16.msra.mxu0 %v4336
    %6281 = vmatprep.subr.bf16.mxu0 %v4335
    %6282 = vmatpush2.bf16.msra.mxu0 %v4334
    %6283 = vmatprep.mubr.bf16.mxu0 %v1219
    %6284 = vmatmul.mubr.bf16.gmra.mxu0 %v1218
    %v6285 = vpop.f32.mrf.mxu0
    %v6286 = vadd.f32 %v6245, %v6285
    %v6287 = vpop.f32.mrf.mxu0
    %v6288 = vadd.f32 %v6247, %v6287
    %v6289 = vpop.f32.mrf.mxu0
    %v6290 = vpop.f32.mrf.mxu0
    %6291 = vdwg.mxu0
    %6292 = vmatprep.subr.bf16.mxu0 %v4365
    %6293 = vmatpush1.bf16.msra.mxu0 %v4364
    %6294 = vmatprep.subr.bf16.mxu0 %v4363
    %6295 = vmatpush1.bf16.msra.mxu0 %v4362
    %6296 = vmatprep.subr.bf16.mxu0 %v4361
    %6297 = vmatpush1.bf16.msra.mxu0 %v4360
    %6298 = vmatprep.subr.bf16.mxu0 %v4359
    %6299 = vmatpush1.bf16.msra.mxu0 %v4358
    %6300 = vmatprep.subr.bf16.mxu0 %v4357
    %6301 = vmatpush1.bf16.msra.mxu0 %v4356
    %6302 = vmatprep.subr.bf16.mxu0 %v4355
    %6303 = vmatpush1.bf16.msra.mxu0 %v4354
    %6304 = vmatprep.subr.bf16.mxu0 %v4353
    %6305 = vmatpush1.bf16.msra.mxu0 %v4352
    %6306 = vmatprep.subr.bf16.mxu0 %v4351
    %6307 = vmatpush1.bf16.msra.mxu0 %v4350
    %6308 = vmatprep.subr.bf16.mxu0 %v4381
    %6309 = vmatpush2.bf16.msra.mxu0 %v4380
    %6310 = vmatprep.subr.bf16.mxu0 %v4379
    %6311 = vmatpush2.bf16.msra.mxu0 %v4378
    %6312 = vmatprep.subr.bf16.mxu0 %v4377
    %6313 = vmatpush2.bf16.msra.mxu0 %v4376
    %6314 = vmatprep.subr.bf16.mxu0 %v4375
    %6315 = vmatpush2.bf16.msra.mxu0 %v4374
    %6316 = vmatprep.subr.bf16.mxu0 %v4373
    %6317 = vmatpush2.bf16.msra.mxu0 %v4372
    %6318 = vmatprep.subr.bf16.mxu0 %v4371
    %6319 = vmatpush2.bf16.msra.mxu0 %v4370
    %6320 = vmatprep.subr.bf16.mxu0 %v4369
    %6321 = vmatpush2.bf16.msra.mxu0 %v4368
    %6322 = vmatprep.subr.bf16.mxu0 %v4367
    %6323 = vmatpush2.bf16.msra.mxu0 %v4366
    %6324 = vmatprep.mubr.bf16.mxu0 %v1221
    %6325 = vmatmul.mubr.bf16.gmra.mxu0 %v1220
    %v6326 = vpop.f32.mrf.mxu0
    %v6327 = vadd.f32 %v6286, %v6326
    %v6328 = vpop.f32.mrf.mxu0
    %v6329 = vadd.f32 %v6288, %v6328
    %v6330 = vpop.f32.mrf.mxu0
    %v6331 = vpop.f32.mrf.mxu0
    %6332 = vdwg.mxu0
    %6333 = vmatprep.subr.bf16.mxu0 %v4397
    %6334 = vmatpush1.bf16.msra.mxu0 %v4396
    %6335 = vmatprep.subr.bf16.mxu0 %v4395
    %6336 = vmatpush1.bf16.msra.mxu0 %v4394
    %6337 = vmatprep.subr.bf16.mxu0 %v4393
    %6338 = vmatpush1.bf16.msra.mxu0 %v4392
    %6339 = vmatprep.subr.bf16.mxu0 %v4391
    %6340 = vmatpush1.bf16.msra.mxu0 %v4390
    %6341 = vmatprep.subr.bf16.mxu0 %v4389
    %6342 = vmatpush1.bf16.msra.mxu0 %v4388
    %6343 = vmatprep.subr.bf16.mxu0 %v4387
    %6344 = vmatpush1.bf16.msra.mxu0 %v4386
    %6345 = vmatprep.subr.bf16.mxu0 %v4385
    %6346 = vmatpush1.bf16.msra.mxu0 %v4384
    %6347 = vmatprep.subr.bf16.mxu0 %v4383
    %6348 = vmatpush1.bf16.msra.mxu0 %v4382
    %6349 = vmatprep.subr.bf16.mxu0 %v4413
    %6350 = vmatpush2.bf16.msra.mxu0 %v4412
    %6351 = vmatprep.subr.bf16.mxu0 %v4411
    %6352 = vmatpush2.bf16.msra.mxu0 %v4410
    %6353 = vmatprep.subr.bf16.mxu0 %v4409
    %6354 = vmatpush2.bf16.msra.mxu0 %v4408
    %6355 = vmatprep.subr.bf16.mxu0 %v4407
    %6356 = vmatpush2.bf16.msra.mxu0 %v4406
    %6357 = vmatprep.subr.bf16.mxu0 %v4405
    %6358 = vmatpush2.bf16.msra.mxu0 %v4404
    %6359 = vmatprep.subr.bf16.mxu0 %v4403
    %6360 = vmatpush2.bf16.msra.mxu0 %v4402
    %6361 = vmatprep.subr.bf16.mxu0 %v4401
    %6362 = vmatpush2.bf16.msra.mxu0 %v4400
    %6363 = vmatprep.subr.bf16.mxu0 %v4399
    %6364 = vmatpush2.bf16.msra.mxu0 %v4398
    %6365 = vmatprep.mubr.bf16.mxu0 %v1223
    %6366 = vmatmul.mubr.bf16.gmra.mxu0 %v1222
    %v6367 = vpop.f32.mrf.mxu0
    %v6368 = vadd.f32 %v6327, %v6367
    %v6369 = vpop.f32.mrf.mxu0
    %v6370 = vadd.f32 %v6329, %v6369
    %v6371 = vpop.f32.mrf.mxu0
    %v6372 = vpop.f32.mrf.mxu0
    %6373 = vdwg.mxu0
    %6374 = vmatprep.subr.bf16.mxu0 %v4429
    %6375 = vmatpush1.bf16.msra.mxu0 %v4428
    %6376 = vmatprep.subr.bf16.mxu0 %v4427
    %6377 = vmatpush1.bf16.msra.mxu0 %v4426
    %6378 = vmatprep.subr.bf16.mxu0 %v4425
    %6379 = vmatpush1.bf16.msra.mxu0 %v4424
    %6380 = vmatprep.subr.bf16.mxu0 %v4423
    %6381 = vmatpush1.bf16.msra.mxu0 %v4422
    %6382 = vmatprep.subr.bf16.mxu0 %v4421
    %6383 = vmatpush1.bf16.msra.mxu0 %v4420
    %6384 = vmatprep.subr.bf16.mxu0 %v4419
    %6385 = vmatpush1.bf16.msra.mxu0 %v4418
    %6386 = vmatprep.subr.bf16.mxu0 %v4417
    %6387 = vmatpush1.bf16.msra.mxu0 %v4416
    %6388 = vmatprep.subr.bf16.mxu0 %v4415
    %6389 = vmatpush1.bf16.msra.mxu0 %v4414
    %6390 = vmatprep.subr.bf16.mxu0 %v4445
    %6391 = vmatpush2.bf16.msra.mxu0 %v4444
    %6392 = vmatprep.subr.bf16.mxu0 %v4443
    %6393 = vmatpush2.bf16.msra.mxu0 %v4442
    %6394 = vmatprep.subr.bf16.mxu0 %v4441
    %6395 = vmatpush2.bf16.msra.mxu0 %v4440
    %6396 = vmatprep.subr.bf16.mxu0 %v4439
    %6397 = vmatpush2.bf16.msra.mxu0 %v4438
    %6398 = vmatprep.subr.bf16.mxu0 %v4437
    %6399 = vmatpush2.bf16.msra.mxu0 %v4436
    %6400 = vmatprep.subr.bf16.mxu0 %v4435
    %6401 = vmatpush2.bf16.msra.mxu0 %v4434
    %6402 = vmatprep.subr.bf16.mxu0 %v4433
    %6403 = vmatpush2.bf16.msra.mxu0 %v4432
    %6404 = vmatprep.subr.bf16.mxu0 %v4431
    %6405 = vmatpush2.bf16.msra.mxu0 %v4430
    %6406 = vmatprep.mubr.bf16.mxu0 %v1225
    %6407 = vmatmul.mubr.bf16.gmra.mxu0 %v1224
    %v6408 = vpop.f32.mrf.mxu0
    %v6409 = vadd.f32 %v6368, %v6408
    %v6410 = vpop.f32.mrf.mxu0
    %v6411 = vadd.f32 %v6370, %v6410
    %v6412 = vpop.f32.mrf.mxu0
    %v6413 = vpop.f32.mrf.mxu0
    %6414 = vdwg.mxu0
    %6415 = vmatprep.subr.bf16.mxu0 %v4461
    %6416 = vmatpush1.bf16.msra.mxu0 %v4460
    %6417 = vmatprep.subr.bf16.mxu0 %v4459
    %6418 = vmatpush1.bf16.msra.mxu0 %v4458
    %6419 = vmatprep.subr.bf16.mxu0 %v4457
    %6420 = vmatpush1.bf16.msra.mxu0 %v4456
    %6421 = vmatprep.subr.bf16.mxu0 %v4455
    %6422 = vmatpush1.bf16.msra.mxu0 %v4454
    %6423 = vmatprep.subr.bf16.mxu0 %v4453
    %6424 = vmatpush1.bf16.msra.mxu0 %v4452
    %6425 = vmatprep.subr.bf16.mxu0 %v4451
    %6426 = vmatpush1.bf16.msra.mxu0 %v4450
    %6427 = vmatprep.subr.bf16.mxu0 %v4449
    %6428 = vmatpush1.bf16.msra.mxu0 %v4448
    %6429 = vmatprep.subr.bf16.mxu0 %v4447
    %6430 = vmatpush1.bf16.msra.mxu0 %v4446
    %6431 = vmatprep.subr.bf16.mxu0 %v4477
    %6432 = vmatpush2.bf16.msra.mxu0 %v4476
    %6433 = vmatprep.subr.bf16.mxu0 %v4475
    %6434 = vmatpush2.bf16.msra.mxu0 %v4474
    %6435 = vmatprep.subr.bf16.mxu0 %v4473
    %6436 = vmatpush2.bf16.msra.mxu0 %v4472
    %6437 = vmatprep.subr.bf16.mxu0 %v4471
    %6438 = vmatpush2.bf16.msra.mxu0 %v4470
    %6439 = vmatprep.subr.bf16.mxu0 %v4469
    %6440 = vmatpush2.bf16.msra.mxu0 %v4468
    %6441 = vmatprep.subr.bf16.mxu0 %v4467
    %6442 = vmatpush2.bf16.msra.mxu0 %v4466
    %6443 = vmatprep.subr.bf16.mxu0 %v4465
    %6444 = vmatpush2.bf16.msra.mxu0 %v4464
    %6445 = vmatprep.subr.bf16.mxu0 %v4463
    %6446 = vmatpush2.bf16.msra.mxu0 %v4462
    %6447 = vmatprep.mubr.bf16.mxu0 %v1227
    %6448 = vmatmul.mubr.bf16.gmra.mxu0 %v1226
    %v6449 = vpop.f32.mrf.mxu0
    %v6450 = vadd.f32 %v6409, %v6449
    %v6451 = vpop.f32.mrf.mxu0
    %v6452 = vadd.f32 %v6411, %v6451
    %v6453 = vpop.f32.mrf.mxu0
    %v6454 = vpop.f32.mrf.mxu0
    %6455 = vdwg.mxu0
    %6456 = vmatprep.subr.bf16.mxu0 %v4493
    %6457 = vmatpush1.bf16.msra.mxu0 %v4492
    %6458 = vmatprep.subr.bf16.mxu0 %v4491
    %6459 = vmatpush1.bf16.msra.mxu0 %v4490
    %6460 = vmatprep.subr.bf16.mxu0 %v4489
    %6461 = vmatpush1.bf16.msra.mxu0 %v4488
    %6462 = vmatprep.subr.bf16.mxu0 %v4487
    %6463 = vmatpush1.bf16.msra.mxu0 %v4486
    %6464 = vmatprep.subr.bf16.mxu0 %v4485
    %6465 = vmatpush1.bf16.msra.mxu0 %v4484
    %6466 = vmatprep.subr.bf16.mxu0 %v4483
    %6467 = vmatpush1.bf16.msra.mxu0 %v4482
    %6468 = vmatprep.subr.bf16.mxu0 %v4481
    %6469 = vmatpush1.bf16.msra.mxu0 %v4480
    %6470 = vmatprep.subr.bf16.mxu0 %v4479
    %6471 = vmatpush1.bf16.msra.mxu0 %v4478
    %6472 = vmatprep.subr.bf16.mxu0 %v4509
    %6473 = vmatpush2.bf16.msra.mxu0 %v4508
    %6474 = vmatprep.subr.bf16.mxu0 %v4507
    %6475 = vmatpush2.bf16.msra.mxu0 %v4506
    %6476 = vmatprep.subr.bf16.mxu0 %v4505
    %6477 = vmatpush2.bf16.msra.mxu0 %v4504
    %6478 = vmatprep.subr.bf16.mxu0 %v4503
    %6479 = vmatpush2.bf16.msra.mxu0 %v4502
    %6480 = vmatprep.subr.bf16.mxu0 %v4501
    %6481 = vmatpush2.bf16.msra.mxu0 %v4500
    %6482 = vmatprep.subr.bf16.mxu0 %v4499
    %6483 = vmatpush2.bf16.msra.mxu0 %v4498
    %6484 = vmatprep.subr.bf16.mxu0 %v4497
    %6485 = vmatpush2.bf16.msra.mxu0 %v4496
    %6486 = vmatprep.subr.bf16.mxu0 %v4495
    %6487 = vmatpush2.bf16.msra.mxu0 %v4494
    %6488 = vmatprep.mubr.bf16.mxu0 %v1229
    %6489 = vmatmul.mubr.bf16.gmra.mxu0 %v1228
    %v6490 = vpop.f32.mrf.mxu0
    %v6491 = vadd.f32 %v6450, %v6490
    %v6492 = vpop.f32.mrf.mxu0
    %v6493 = vadd.f32 %v6452, %v6492
    %v6494 = vpop.f32.mrf.mxu0
    %v6495 = vpop.f32.mrf.mxu0
    %6496 = vdwg.mxu0
    %6497 = vmatprep.subr.bf16.mxu0 %v4525
    %6498 = vmatpush1.bf16.msra.mxu0 %v4524
    %6499 = vmatprep.subr.bf16.mxu0 %v4523
    %6500 = vmatpush1.bf16.msra.mxu0 %v4522
    %6501 = vmatprep.subr.bf16.mxu0 %v4521
    %6502 = vmatpush1.bf16.msra.mxu0 %v4520
    %6503 = vmatprep.subr.bf16.mxu0 %v4519
    %6504 = vmatpush1.bf16.msra.mxu0 %v4518
    %6505 = vmatprep.subr.bf16.mxu0 %v4517
    %6506 = vmatpush1.bf16.msra.mxu0 %v4516
    %6507 = vmatprep.subr.bf16.mxu0 %v4515
    %6508 = vmatpush1.bf16.msra.mxu0 %v4514
    %6509 = vmatprep.subr.bf16.mxu0 %v4513
    %6510 = vmatpush1.bf16.msra.mxu0 %v4512
    %6511 = vmatprep.subr.bf16.mxu0 %v4511
    %6512 = vmatpush1.bf16.msra.mxu0 %v4510
    %6513 = vmatprep.subr.bf16.mxu0 %v4541
    %6514 = vmatpush2.bf16.msra.mxu0 %v4540
    %6515 = vmatprep.subr.bf16.mxu0 %v4539
    %6516 = vmatpush2.bf16.msra.mxu0 %v4538
    %6517 = vmatprep.subr.bf16.mxu0 %v4537
    %6518 = vmatpush2.bf16.msra.mxu0 %v4536
    %6519 = vmatprep.subr.bf16.mxu0 %v4535
    %6520 = vmatpush2.bf16.msra.mxu0 %v4534
    %6521 = vmatprep.subr.bf16.mxu0 %v4533
    %6522 = vmatpush2.bf16.msra.mxu0 %v4532
    %6523 = vmatprep.subr.bf16.mxu0 %v4531
    %6524 = vmatpush2.bf16.msra.mxu0 %v4530
    %6525 = vmatprep.subr.bf16.mxu0 %v4529
    %6526 = vmatpush2.bf16.msra.mxu0 %v4528
    %6527 = vmatprep.subr.bf16.mxu0 %v4527
    %6528 = vmatpush2.bf16.msra.mxu0 %v4526
    %6529 = vmatprep.mubr.bf16.mxu0 %v1231
    %6530 = vmatmul.mubr.bf16.gmra.mxu0 %v1230
    %v6531 = vpop.f32.mrf.mxu0
    %v6532 = vadd.f32 %v6491, %v6531
    %v6533 = vpop.f32.mrf.mxu0
    %v6534 = vadd.f32 %v6493, %v6533
    %v6535 = vpop.f32.mrf.mxu0
    %v6536 = vpop.f32.mrf.mxu0
    %6537 = vdwg.mxu0
    %6538 = vmatprep.subr.bf16.mxu0 %v4557
    %6539 = vmatpush1.bf16.msra.mxu0 %v4556
    %6540 = vmatprep.subr.bf16.mxu0 %v4555
    %6541 = vmatpush1.bf16.msra.mxu0 %v4554
    %6542 = vmatprep.subr.bf16.mxu0 %v4553
    %6543 = vmatpush1.bf16.msra.mxu0 %v4552
    %6544 = vmatprep.subr.bf16.mxu0 %v4551
    %6545 = vmatpush1.bf16.msra.mxu0 %v4550
    %6546 = vmatprep.subr.bf16.mxu0 %v4549
    %6547 = vmatpush1.bf16.msra.mxu0 %v4548
    %6548 = vmatprep.subr.bf16.mxu0 %v4547
    %6549 = vmatpush1.bf16.msra.mxu0 %v4546
    %6550 = vmatprep.subr.bf16.mxu0 %v4545
    %6551 = vmatpush1.bf16.msra.mxu0 %v4544
    %6552 = vmatprep.subr.bf16.mxu0 %v4543
    %6553 = vmatpush1.bf16.msra.mxu0 %v4542
    %6554 = vmatprep.subr.bf16.mxu0 %v4573
    %6555 = vmatpush2.bf16.msra.mxu0 %v4572
    %6556 = vmatprep.subr.bf16.mxu0 %v4571
    %6557 = vmatpush2.bf16.msra.mxu0 %v4570
    %6558 = vmatprep.subr.bf16.mxu0 %v4569
    %6559 = vmatpush2.bf16.msra.mxu0 %v4568
    %6560 = vmatprep.subr.bf16.mxu0 %v4567
    %6561 = vmatpush2.bf16.msra.mxu0 %v4566
    %6562 = vmatprep.subr.bf16.mxu0 %v4565
    %6563 = vmatpush2.bf16.msra.mxu0 %v4564
    %6564 = vmatprep.subr.bf16.mxu0 %v4563
    %6565 = vmatpush2.bf16.msra.mxu0 %v4562
    %6566 = vmatprep.subr.bf16.mxu0 %v4561
    %6567 = vmatpush2.bf16.msra.mxu0 %v4560
    %6568 = vmatprep.subr.bf16.mxu0 %v4559
    %6569 = vmatpush2.bf16.msra.mxu0 %v4558
    %6570 = vmatprep.mubr.bf16.mxu0 %v1233
    %6571 = vmatmul.mubr.bf16.gmra.mxu0 %v1232
    %v6572 = vpop.f32.mrf.mxu0
    %v6573 = vadd.f32 %v6532, %v6572
    %v6574 = vpop.f32.mrf.mxu0
    %v6575 = vadd.f32 %v6534, %v6574
    %v6576 = vpop.f32.mrf.mxu0
    %v6577 = vpop.f32.mrf.mxu0
    %6578 = vdwg.mxu0
    %6579 = vmatprep.subr.bf16.mxu0 %v4589
    %6580 = vmatpush1.bf16.msra.mxu0 %v4588
    %6581 = vmatprep.subr.bf16.mxu0 %v4587
    %6582 = vmatpush1.bf16.msra.mxu0 %v4586
    %6583 = vmatprep.subr.bf16.mxu0 %v4585
    %6584 = vmatpush1.bf16.msra.mxu0 %v4584
    %6585 = vmatprep.subr.bf16.mxu0 %v4583
    %6586 = vmatpush1.bf16.msra.mxu0 %v4582
    %6587 = vmatprep.subr.bf16.mxu0 %v4581
    %6588 = vmatpush1.bf16.msra.mxu0 %v4580
    %6589 = vmatprep.subr.bf16.mxu0 %v4579
    %6590 = vmatpush1.bf16.msra.mxu0 %v4578
    %6591 = vmatprep.subr.bf16.mxu0 %v4577
    %6592 = vmatpush1.bf16.msra.mxu0 %v4576
    %6593 = vmatprep.subr.bf16.mxu0 %v4575
    %6594 = vmatpush1.bf16.msra.mxu0 %v4574
    %6595 = vmatprep.subr.bf16.mxu0 %v4605
    %6596 = vmatpush2.bf16.msra.mxu0 %v4604
    %6597 = vmatprep.subr.bf16.mxu0 %v4603
    %6598 = vmatpush2.bf16.msra.mxu0 %v4602
    %6599 = vmatprep.subr.bf16.mxu0 %v4601
    %6600 = vmatpush2.bf16.msra.mxu0 %v4600
    %6601 = vmatprep.subr.bf16.mxu0 %v4599
    %6602 = vmatpush2.bf16.msra.mxu0 %v4598
    %6603 = vmatprep.subr.bf16.mxu0 %v4597
    %6604 = vmatpush2.bf16.msra.mxu0 %v4596
    %6605 = vmatprep.subr.bf16.mxu0 %v4595
    %6606 = vmatpush2.bf16.msra.mxu0 %v4594
    %6607 = vmatprep.subr.bf16.mxu0 %v4593
    %6608 = vmatpush2.bf16.msra.mxu0 %v4592
    %6609 = vmatprep.subr.bf16.mxu0 %v4591
    %6610 = vmatpush2.bf16.msra.mxu0 %v4590
    %6611 = vmatprep.mubr.bf16.mxu0 %v1235
    %6612 = vmatmul.mubr.bf16.gmra.mxu0 %v1234
    %v6613 = vpop.f32.mrf.mxu0
    %v6614 = vadd.f32 %v6573, %v6613
    %v6615 = vpop.f32.mrf.mxu0
    %v6616 = vadd.f32 %v6575, %v6615
    %v6617 = vpop.f32.mrf.mxu0
    %v6618 = vpop.f32.mrf.mxu0
    %6619 = vdwg.mxu0
    %6620 = vmatprep.subr.bf16.mxu0 %v4621
    %6621 = vmatpush1.bf16.msra.mxu0 %v4620
    %6622 = vmatprep.subr.bf16.mxu0 %v4619
    %6623 = vmatpush1.bf16.msra.mxu0 %v4618
    %6624 = vmatprep.subr.bf16.mxu0 %v4617
    %6625 = vmatpush1.bf16.msra.mxu0 %v4616
    %6626 = vmatprep.subr.bf16.mxu0 %v4615
    %6627 = vmatpush1.bf16.msra.mxu0 %v4614
    %6628 = vmatprep.subr.bf16.mxu0 %v4613
    %6629 = vmatpush1.bf16.msra.mxu0 %v4612
    %6630 = vmatprep.subr.bf16.mxu0 %v4611
    %6631 = vmatpush1.bf16.msra.mxu0 %v4610
    %6632 = vmatprep.subr.bf16.mxu0 %v4609
    %6633 = vmatpush1.bf16.msra.mxu0 %v4608
    %6634 = vmatprep.subr.bf16.mxu0 %v4607
    %6635 = vmatpush1.bf16.msra.mxu0 %v4606
    %6636 = vmatprep.subr.bf16.mxu0 %v4637
    %6637 = vmatpush2.bf16.msra.mxu0 %v4636
    %6638 = vmatprep.subr.bf16.mxu0 %v4635
    %6639 = vmatpush2.bf16.msra.mxu0 %v4634
    %6640 = vmatprep.subr.bf16.mxu0 %v4633
    %6641 = vmatpush2.bf16.msra.mxu0 %v4632
    %6642 = vmatprep.subr.bf16.mxu0 %v4631
    %6643 = vmatpush2.bf16.msra.mxu0 %v4630
    %6644 = vmatprep.subr.bf16.mxu0 %v4629
    %6645 = vmatpush2.bf16.msra.mxu0 %v4628
    %6646 = vmatprep.subr.bf16.mxu0 %v4627
    %6647 = vmatpush2.bf16.msra.mxu0 %v4626
    %6648 = vmatprep.subr.bf16.mxu0 %v4625
    %6649 = vmatpush2.bf16.msra.mxu0 %v4624
    %6650 = vmatprep.subr.bf16.mxu0 %v4623
    %6651 = vmatpush2.bf16.msra.mxu0 %v4622
    %6652 = vmatprep.mubr.bf16.mxu0 %v1237
    %6653 = vmatmul.mubr.bf16.gmra.mxu0 %v1236
    %v6654 = vpop.f32.mrf.mxu0
    %v6655 = vadd.f32 %v6614, %v6654
    %v6656 = vpop.f32.mrf.mxu0
    %v6657 = vadd.f32 %v6616, %v6656
    %v6658 = vpop.f32.mrf.mxu0
    %v6659 = vpop.f32.mrf.mxu0
    %6660 = vdwg.mxu0
    %6661 = vmatprep.subr.bf16.mxu0 %v4653
    %6662 = vmatpush1.bf16.msra.mxu0 %v4652
    %6663 = vmatprep.subr.bf16.mxu0 %v4651
    %6664 = vmatpush1.bf16.msra.mxu0 %v4650
    %6665 = vmatprep.subr.bf16.mxu0 %v4649
    %6666 = vmatpush1.bf16.msra.mxu0 %v4648
    %6667 = vmatprep.subr.bf16.mxu0 %v4647
    %6668 = vmatpush1.bf16.msra.mxu0 %v4646
    %6669 = vmatprep.subr.bf16.mxu0 %v4645
    %6670 = vmatpush1.bf16.msra.mxu0 %v4644
    %6671 = vmatprep.subr.bf16.mxu0 %v4643
    %6672 = vmatpush1.bf16.msra.mxu0 %v4642
    %6673 = vmatprep.subr.bf16.mxu0 %v4641
    %6674 = vmatpush1.bf16.msra.mxu0 %v4640
    %6675 = vmatprep.subr.bf16.mxu0 %v4639
    %6676 = vmatpush1.bf16.msra.mxu0 %v4638
    %6677 = vmatprep.subr.bf16.mxu0 %v4669
    %6678 = vmatpush2.bf16.msra.mxu0 %v4668
    %6679 = vmatprep.subr.bf16.mxu0 %v4667
    %6680 = vmatpush2.bf16.msra.mxu0 %v4666
    %6681 = vmatprep.subr.bf16.mxu0 %v4665
    %6682 = vmatpush2.bf16.msra.mxu0 %v4664
    %6683 = vmatprep.subr.bf16.mxu0 %v4663
    %6684 = vmatpush2.bf16.msra.mxu0 %v4662
    %6685 = vmatprep.subr.bf16.mxu0 %v4661
    %6686 = vmatpush2.bf16.msra.mxu0 %v4660
    %6687 = vmatprep.subr.bf16.mxu0 %v4659
    %6688 = vmatpush2.bf16.msra.mxu0 %v4658
    %6689 = vmatprep.subr.bf16.mxu0 %v4657
    %6690 = vmatpush2.bf16.msra.mxu0 %v4656
    %6691 = vmatprep.subr.bf16.mxu0 %v4655
    %6692 = vmatpush2.bf16.msra.mxu0 %v4654
    %6693 = vmatprep.mubr.bf16.mxu0 %v1239
    %6694 = vmatmul.mubr.bf16.gmra.mxu0 %v1238
    %v6695 = vpop.f32.mrf.mxu0
    %v6696 = vadd.f32 %v6655, %v6695
    %v6697 = vpop.f32.mrf.mxu0
    %v6698 = vadd.f32 %v6657, %v6697
    %v6699 = vpop.f32.mrf.mxu0
    %v6700 = vpop.f32.mrf.mxu0
    %6701 = vdwg.mxu0
    %6702 = vmatprep.subr.bf16.mxu0 %v4685
    %6703 = vmatpush1.bf16.msra.mxu0 %v4684
    %6704 = vmatprep.subr.bf16.mxu0 %v4683
    %6705 = vmatpush1.bf16.msra.mxu0 %v4682
    %6706 = vmatprep.subr.bf16.mxu0 %v4681
    %6707 = vmatpush1.bf16.msra.mxu0 %v4680
    %6708 = vmatprep.subr.bf16.mxu0 %v4679
    %6709 = vmatpush1.bf16.msra.mxu0 %v4678
    %6710 = vmatprep.subr.bf16.mxu0 %v4677
    %6711 = vmatpush1.bf16.msra.mxu0 %v4676
    %6712 = vmatprep.subr.bf16.mxu0 %v4675
    %6713 = vmatpush1.bf16.msra.mxu0 %v4674
    %6714 = vmatprep.subr.bf16.mxu0 %v4673
    %6715 = vmatpush1.bf16.msra.mxu0 %v4672
    %6716 = vmatprep.subr.bf16.mxu0 %v4671
    %6717 = vmatpush1.bf16.msra.mxu0 %v4670
    %6718 = vmatprep.subr.bf16.mxu0 %v4701
    %6719 = vmatpush2.bf16.msra.mxu0 %v4700
    %6720 = vmatprep.subr.bf16.mxu0 %v4699
    %6721 = vmatpush2.bf16.msra.mxu0 %v4698
    %6722 = vmatprep.subr.bf16.mxu0 %v4697
    %6723 = vmatpush2.bf16.msra.mxu0 %v4696
    %6724 = vmatprep.subr.bf16.mxu0 %v4695
    %6725 = vmatpush2.bf16.msra.mxu0 %v4694
    %6726 = vmatprep.subr.bf16.mxu0 %v4693
    %6727 = vmatpush2.bf16.msra.mxu0 %v4692
    %6728 = vmatprep.subr.bf16.mxu0 %v4691
    %6729 = vmatpush2.bf16.msra.mxu0 %v4690
    %6730 = vmatprep.subr.bf16.mxu0 %v4689
    %6731 = vmatpush2.bf16.msra.mxu0 %v4688
    %6732 = vmatprep.subr.bf16.mxu0 %v4687
    %6733 = vmatpush2.bf16.msra.mxu0 %v4686
    %6734 = vmatprep.mubr.bf16.mxu0 %v1241
    %6735 = vmatmul.mubr.bf16.gmra.mxu0 %v1240
    %v6736 = vpop.f32.mrf.mxu0
    %v6737 = vadd.f32 %v6696, %v6736
    %v6738 = vpop.f32.mrf.mxu0
    %v6739 = vadd.f32 %v6698, %v6738
    %v6740 = vpop.f32.mrf.mxu0
    %v6741 = vpop.f32.mrf.mxu0
    %6742 = vdwg.mxu0
    %6743 = vmatprep.subr.bf16.mxu0 %v4717
    %6744 = vmatpush1.bf16.msra.mxu0 %v4716
    %6745 = vmatprep.subr.bf16.mxu0 %v4715
    %6746 = vmatpush1.bf16.msra.mxu0 %v4714
    %6747 = vmatprep.subr.bf16.mxu0 %v4713
    %6748 = vmatpush1.bf16.msra.mxu0 %v4712
    %6749 = vmatprep.subr.bf16.mxu0 %v4711
    %6750 = vmatpush1.bf16.msra.mxu0 %v4710
    %6751 = vmatprep.subr.bf16.mxu0 %v4709
    %6752 = vmatpush1.bf16.msra.mxu0 %v4708
    %6753 = vmatprep.subr.bf16.mxu0 %v4707
    %6754 = vmatpush1.bf16.msra.mxu0 %v4706
    %6755 = vmatprep.subr.bf16.mxu0 %v4705
    %6756 = vmatpush1.bf16.msra.mxu0 %v4704
    %6757 = vmatprep.subr.bf16.mxu0 %v4703
    %6758 = vmatpush1.bf16.msra.mxu0 %v4702
    %6759 = vmatprep.subr.bf16.mxu0 %v4733
    %6760 = vmatpush2.bf16.msra.mxu0 %v4732
    %6761 = vmatprep.subr.bf16.mxu0 %v4731
    %6762 = vmatpush2.bf16.msra.mxu0 %v4730
    %6763 = vmatprep.subr.bf16.mxu0 %v4729
    %6764 = vmatpush2.bf16.msra.mxu0 %v4728
    %6765 = vmatprep.subr.bf16.mxu0 %v4727
    %6766 = vmatpush2.bf16.msra.mxu0 %v4726
    %6767 = vmatprep.subr.bf16.mxu0 %v4725
    %6768 = vmatpush2.bf16.msra.mxu0 %v4724
    %6769 = vmatprep.subr.bf16.mxu0 %v4723
    %6770 = vmatpush2.bf16.msra.mxu0 %v4722
    %6771 = vmatprep.subr.bf16.mxu0 %v4721
    %6772 = vmatpush2.bf16.msra.mxu0 %v4720
    %6773 = vmatprep.subr.bf16.mxu0 %v4719
    %6774 = vmatpush2.bf16.msra.mxu0 %v4718
    %6775 = vmatprep.mubr.bf16.mxu0 %v1243
    %6776 = vmatmul.mubr.bf16.gmra.mxu0 %v1242
    %v6777 = vpop.f32.mrf.mxu0
    %v6778 = vadd.f32 %v6737, %v6777
    %v6779 = vpop.f32.mrf.mxu0
    %v6780 = vadd.f32 %v6739, %v6779
    %v6781 = vpop.f32.mrf.mxu0
    %v6782 = vpop.f32.mrf.mxu0
    %6783 = vdwg.mxu0
    %6784 = vmatprep.subr.bf16.mxu0 %v4749
    %6785 = vmatpush1.bf16.msra.mxu0 %v4748
    %6786 = vmatprep.subr.bf16.mxu0 %v4747
    %6787 = vmatpush1.bf16.msra.mxu0 %v4746
    %6788 = vmatprep.subr.bf16.mxu0 %v4745
    %6789 = vmatpush1.bf16.msra.mxu0 %v4744
    %6790 = vmatprep.subr.bf16.mxu0 %v4743
    %6791 = vmatpush1.bf16.msra.mxu0 %v4742
    %6792 = vmatprep.subr.bf16.mxu0 %v4741
    %6793 = vmatpush1.bf16.msra.mxu0 %v4740
    %6794 = vmatprep.subr.bf16.mxu0 %v4739
    %6795 = vmatpush1.bf16.msra.mxu0 %v4738
    %6796 = vmatprep.subr.bf16.mxu0 %v4737
    %6797 = vmatpush1.bf16.msra.mxu0 %v4736
    %6798 = vmatprep.subr.bf16.mxu0 %v4735
    %6799 = vmatpush1.bf16.msra.mxu0 %v4734
    %6800 = vmatprep.subr.bf16.mxu0 %v4765
    %6801 = vmatpush2.bf16.msra.mxu0 %v4764
    %6802 = vmatprep.subr.bf16.mxu0 %v4763
    %6803 = vmatpush2.bf16.msra.mxu0 %v4762
    %6804 = vmatprep.subr.bf16.mxu0 %v4761
    %6805 = vmatpush2.bf16.msra.mxu0 %v4760
    %6806 = vmatprep.subr.bf16.mxu0 %v4759
    %6807 = vmatpush2.bf16.msra.mxu0 %v4758
    %6808 = vmatprep.subr.bf16.mxu0 %v4757
    %6809 = vmatpush2.bf16.msra.mxu0 %v4756
    %6810 = vmatprep.subr.bf16.mxu0 %v4755
    %6811 = vmatpush2.bf16.msra.mxu0 %v4754
    %6812 = vmatprep.subr.bf16.mxu0 %v4753
    %6813 = vmatpush2.bf16.msra.mxu0 %v4752
    %6814 = vmatprep.subr.bf16.mxu0 %v4751
    %6815 = vmatpush2.bf16.msra.mxu0 %v4750
    %6816 = vmatprep.mubr.bf16.mxu0 %v1245
    %6817 = vmatmul.mubr.bf16.gmra.mxu0 %v1244
    %v6818 = vpop.f32.mrf.mxu0
    %v6819 = vadd.f32 %v6778, %v6818
    %v6820 = vpop.f32.mrf.mxu0
    %v6821 = vadd.f32 %v6780, %v6820
    %v6822 = vpop.f32.mrf.mxu0
    %v6823 = vpop.f32.mrf.mxu0
    %6824 = vdwg.mxu0
    %6825 = vmatprep.subr.bf16.mxu0 %v4781
    %6826 = vmatpush1.bf16.msra.mxu0 %v4780
    %6827 = vmatprep.subr.bf16.mxu0 %v4779
    %6828 = vmatpush1.bf16.msra.mxu0 %v4778
    %6829 = vmatprep.subr.bf16.mxu0 %v4777
    %6830 = vmatpush1.bf16.msra.mxu0 %v4776
    %6831 = vmatprep.subr.bf16.mxu0 %v4775
    %6832 = vmatpush1.bf16.msra.mxu0 %v4774
    %6833 = vmatprep.subr.bf16.mxu0 %v4773
    %6834 = vmatpush1.bf16.msra.mxu0 %v4772
    %6835 = vmatprep.subr.bf16.mxu0 %v4771
    %6836 = vmatpush1.bf16.msra.mxu0 %v4770
    %6837 = vmatprep.subr.bf16.mxu0 %v4769
    %6838 = vmatpush1.bf16.msra.mxu0 %v4768
    %6839 = vmatprep.subr.bf16.mxu0 %v4767
    %6840 = vmatpush1.bf16.msra.mxu0 %v4766
    %6841 = vmatprep.subr.bf16.mxu0 %v4797
    %6842 = vmatpush2.bf16.msra.mxu0 %v4796
    %6843 = vmatprep.subr.bf16.mxu0 %v4795
    %6844 = vmatpush2.bf16.msra.mxu0 %v4794
    %6845 = vmatprep.subr.bf16.mxu0 %v4793
    %6846 = vmatpush2.bf16.msra.mxu0 %v4792
    %6847 = vmatprep.subr.bf16.mxu0 %v4791
    %6848 = vmatpush2.bf16.msra.mxu0 %v4790
    %6849 = vmatprep.subr.bf16.mxu0 %v4789
    %6850 = vmatpush2.bf16.msra.mxu0 %v4788
    %6851 = vmatprep.subr.bf16.mxu0 %v4787
    %6852 = vmatpush2.bf16.msra.mxu0 %v4786
    %6853 = vmatprep.subr.bf16.mxu0 %v4785
    %6854 = vmatpush2.bf16.msra.mxu0 %v4784
    %6855 = vmatprep.subr.bf16.mxu0 %v4783
    %6856 = vmatpush2.bf16.msra.mxu0 %v4782
    %6857 = vmatprep.mubr.bf16.mxu0 %v1247
    %6858 = vmatmul.mubr.bf16.gmra.mxu0 %v1246
    %v6859 = vpop.f32.mrf.mxu0
    %v6860 = vadd.f32 %v6819, %v6859
    %v6861 = vpop.f32.mrf.mxu0
    %v6862 = vadd.f32 %v6821, %v6861
    %v6863 = vpop.f32.mrf.mxu0
    %v6864 = vpop.f32.mrf.mxu0
    %6865 = vdwg.mxu0
    %6866 = vmatprep.subr.bf16.mxu0 %v4813
    %6867 = vmatpush1.bf16.msra.mxu0 %v4812
    %6868 = vmatprep.subr.bf16.mxu0 %v4811
    %6869 = vmatpush1.bf16.msra.mxu0 %v4810
    %6870 = vmatprep.subr.bf16.mxu0 %v4809
    %6871 = vmatpush1.bf16.msra.mxu0 %v4808
    %6872 = vmatprep.subr.bf16.mxu0 %v4807
    %6873 = vmatpush1.bf16.msra.mxu0 %v4806
    %6874 = vmatprep.subr.bf16.mxu0 %v4805
    %6875 = vmatpush1.bf16.msra.mxu0 %v4804
    %6876 = vmatprep.subr.bf16.mxu0 %v4803
    %6877 = vmatpush1.bf16.msra.mxu0 %v4802
    %6878 = vmatprep.subr.bf16.mxu0 %v4801
    %6879 = vmatpush1.bf16.msra.mxu0 %v4800
    %6880 = vmatprep.subr.bf16.mxu0 %v4799
    %6881 = vmatpush1.bf16.msra.mxu0 %v4798
    %6882 = vmatprep.subr.bf16.mxu0 %v4829
    %6883 = vmatpush2.bf16.msra.mxu0 %v4828
    %6884 = vmatprep.subr.bf16.mxu0 %v4827
    %6885 = vmatpush2.bf16.msra.mxu0 %v4826
    %6886 = vmatprep.subr.bf16.mxu0 %v4825
    %6887 = vmatpush2.bf16.msra.mxu0 %v4824
    %6888 = vmatprep.subr.bf16.mxu0 %v4823
    %6889 = vmatpush2.bf16.msra.mxu0 %v4822
    %6890 = vmatprep.subr.bf16.mxu0 %v4821
    %6891 = vmatpush2.bf16.msra.mxu0 %v4820
    %6892 = vmatprep.subr.bf16.mxu0 %v4819
    %6893 = vmatpush2.bf16.msra.mxu0 %v4818
    %6894 = vmatprep.subr.bf16.mxu0 %v4817
    %6895 = vmatpush2.bf16.msra.mxu0 %v4816
    %6896 = vmatprep.subr.bf16.mxu0 %v4815
    %6897 = vmatpush2.bf16.msra.mxu0 %v4814
    %6898 = vmatprep.mubr.bf16.mxu0 %v1249
    %6899 = vmatmul.mubr.bf16.gmra.mxu0 %v1248
    %v6900 = vpop.f32.mrf.mxu0
    %v6901 = vadd.f32 %v6860, %v6900
    %v6902 = vpop.f32.mrf.mxu0
    %v6903 = vadd.f32 %v6862, %v6902
    %v6904 = vpop.f32.mrf.mxu0
    %v6905 = vpop.f32.mrf.mxu0
    %6906 = vdwg.mxu0
    %6907 = vmatprep.subr.bf16.mxu0 %v4845
    %6908 = vmatpush1.bf16.msra.mxu0 %v4844
    %6909 = vmatprep.subr.bf16.mxu0 %v4843
    %6910 = vmatpush1.bf16.msra.mxu0 %v4842
    %6911 = vmatprep.subr.bf16.mxu0 %v4841
    %6912 = vmatpush1.bf16.msra.mxu0 %v4840
    %6913 = vmatprep.subr.bf16.mxu0 %v4839
    %6914 = vmatpush1.bf16.msra.mxu0 %v4838
    %6915 = vmatprep.subr.bf16.mxu0 %v4837
    %6916 = vmatpush1.bf16.msra.mxu0 %v4836
    %6917 = vmatprep.subr.bf16.mxu0 %v4835
    %6918 = vmatpush1.bf16.msra.mxu0 %v4834
    %6919 = vmatprep.subr.bf16.mxu0 %v4833
    %6920 = vmatpush1.bf16.msra.mxu0 %v4832
    %6921 = vmatprep.subr.bf16.mxu0 %v4831
    %6922 = vmatpush1.bf16.msra.mxu0 %v4830
    %6923 = vmatprep.subr.bf16.mxu0 %v4861
    %6924 = vmatpush2.bf16.msra.mxu0 %v4860
    %6925 = vmatprep.subr.bf16.mxu0 %v4859
    %6926 = vmatpush2.bf16.msra.mxu0 %v4858
    %6927 = vmatprep.subr.bf16.mxu0 %v4857
    %6928 = vmatpush2.bf16.msra.mxu0 %v4856
    %6929 = vmatprep.subr.bf16.mxu0 %v4855
    %6930 = vmatpush2.bf16.msra.mxu0 %v4854
    %6931 = vmatprep.subr.bf16.mxu0 %v4853
    %6932 = vmatpush2.bf16.msra.mxu0 %v4852
    %6933 = vmatprep.subr.bf16.mxu0 %v4851
    %6934 = vmatpush2.bf16.msra.mxu0 %v4850
    %6935 = vmatprep.subr.bf16.mxu0 %v4849
    %6936 = vmatpush2.bf16.msra.mxu0 %v4848
    %6937 = vmatprep.subr.bf16.mxu0 %v4847
    %6938 = vmatpush2.bf16.msra.mxu0 %v4846
    %6939 = vmatprep.mubr.bf16.mxu0 %v1251
    %6940 = vmatmul.mubr.bf16.gmra.mxu0 %v1250
    %v6941 = vpop.f32.mrf.mxu0
    %v6942 = vadd.f32 %v6901, %v6941
    %v6943 = vpop.f32.mrf.mxu0
    %v6944 = vadd.f32 %v6903, %v6943
    %v6945 = vpop.f32.mrf.mxu0
    %v6946 = vpop.f32.mrf.mxu0
    %6947 = vdwg.mxu0
    %6948 = vmatprep.subr.bf16.mxu0 %v4877
    %6949 = vmatpush1.bf16.msra.mxu0 %v4876
    %6950 = vmatprep.subr.bf16.mxu0 %v4875
    %6951 = vmatpush1.bf16.msra.mxu0 %v4874
    %6952 = vmatprep.subr.bf16.mxu0 %v4873
    %6953 = vmatpush1.bf16.msra.mxu0 %v4872
    %6954 = vmatprep.subr.bf16.mxu0 %v4871
    %6955 = vmatpush1.bf16.msra.mxu0 %v4870
    %6956 = vmatprep.subr.bf16.mxu0 %v4869
    %6957 = vmatpush1.bf16.msra.mxu0 %v4868
    %6958 = vmatprep.subr.bf16.mxu0 %v4867
    %6959 = vmatpush1.bf16.msra.mxu0 %v4866
    %6960 = vmatprep.subr.bf16.mxu0 %v4865
    %6961 = vmatpush1.bf16.msra.mxu0 %v4864
    %6962 = vmatprep.subr.bf16.mxu0 %v4863
    %6963 = vmatpush1.bf16.msra.mxu0 %v4862
    %6964 = vmatprep.subr.bf16.mxu0 %v4893
    %6965 = vmatpush2.bf16.msra.mxu0 %v4892
    %6966 = vmatprep.subr.bf16.mxu0 %v4891
    %6967 = vmatpush2.bf16.msra.mxu0 %v4890
    %6968 = vmatprep.subr.bf16.mxu0 %v4889
    %6969 = vmatpush2.bf16.msra.mxu0 %v4888
    %6970 = vmatprep.subr.bf16.mxu0 %v4887
    %6971 = vmatpush2.bf16.msra.mxu0 %v4886
    %6972 = vmatprep.subr.bf16.mxu0 %v4885
    %6973 = vmatpush2.bf16.msra.mxu0 %v4884
    %6974 = vmatprep.subr.bf16.mxu0 %v4883
    %6975 = vmatpush2.bf16.msra.mxu0 %v4882
    %6976 = vmatprep.subr.bf16.mxu0 %v4881
    %6977 = vmatpush2.bf16.msra.mxu0 %v4880
    %6978 = vmatprep.subr.bf16.mxu0 %v4879
    %6979 = vmatpush2.bf16.msra.mxu0 %v4878
    %6980 = vmatprep.mubr.bf16.mxu0 %v1253
    %6981 = vmatmul.mubr.bf16.gmra.mxu0 %v1252
    %v6982 = vpop.f32.mrf.mxu0
    %v6983 = vadd.f32 %v6942, %v6982
    %v6984 = vpop.f32.mrf.mxu0
    %v6985 = vadd.f32 %v6944, %v6984
    %v6986 = vpop.f32.mrf.mxu0
    %v6987 = vpop.f32.mrf.mxu0
    %6988 = vdwg.mxu0
    %6989 = vmatprep.subr.bf16.mxu0 %v4909
    %6990 = vmatpush1.bf16.msra.mxu0 %v4908
    %6991 = vmatprep.subr.bf16.mxu0 %v4907
    %6992 = vmatpush1.bf16.msra.mxu0 %v4906
    %6993 = vmatprep.subr.bf16.mxu0 %v4905
    %6994 = vmatpush1.bf16.msra.mxu0 %v4904
    %6995 = vmatprep.subr.bf16.mxu0 %v4903
    %6996 = vmatpush1.bf16.msra.mxu0 %v4902
    %6997 = vmatprep.subr.bf16.mxu0 %v4901
    %6998 = vmatpush1.bf16.msra.mxu0 %v4900
    %6999 = vmatprep.subr.bf16.mxu0 %v4899
    %7000 = vmatpush1.bf16.msra.mxu0 %v4898
    %7001 = vmatprep.subr.bf16.mxu0 %v4897
    %7002 = vmatpush1.bf16.msra.mxu0 %v4896
    %7003 = vmatprep.subr.bf16.mxu0 %v4895
    %7004 = vmatpush1.bf16.msra.mxu0 %v4894
    %7005 = vmatprep.subr.bf16.mxu0 %v4925
    %7006 = vmatpush2.bf16.msra.mxu0 %v4924
    %7007 = vmatprep.subr.bf16.mxu0 %v4923
    %7008 = vmatpush2.bf16.msra.mxu0 %v4922
    %7009 = vmatprep.subr.bf16.mxu0 %v4921
    %7010 = vmatpush2.bf16.msra.mxu0 %v4920
    %7011 = vmatprep.subr.bf16.mxu0 %v4919
    %7012 = vmatpush2.bf16.msra.mxu0 %v4918
    %7013 = vmatprep.subr.bf16.mxu0 %v4917
    %7014 = vmatpush2.bf16.msra.mxu0 %v4916
    %7015 = vmatprep.subr.bf16.mxu0 %v4915
    %7016 = vmatpush2.bf16.msra.mxu0 %v4914
    %7017 = vmatprep.subr.bf16.mxu0 %v4913
    %7018 = vmatpush2.bf16.msra.mxu0 %v4912
    %7019 = vmatprep.subr.bf16.mxu0 %v4911
    %7020 = vmatpush2.bf16.msra.mxu0 %v4910
    %7021 = vmatprep.mubr.bf16.mxu0 %v1255
    %7022 = vmatmul.mubr.bf16.gmra.mxu0 %v1254
    %v7023 = vpop.f32.mrf.mxu0
    %v7024 = vadd.f32 %v6983, %v7023
    %v7025 = vpop.f32.mrf.mxu0
    %v7026 = vadd.f32 %v6985, %v7025
    %v7027 = vpop.f32.mrf.mxu0
    %v7028 = vpop.f32.mrf.mxu0
    %7029 = vdwg.mxu0
    %7030 = vmatprep.subr.bf16.mxu0 %v4941
    %7031 = vmatpush1.bf16.msra.mxu0 %v4940
    %7032 = vmatprep.subr.bf16.mxu0 %v4939
    %7033 = vmatpush1.bf16.msra.mxu0 %v4938
    %7034 = vmatprep.subr.bf16.mxu0 %v4937
    %7035 = vmatpush1.bf16.msra.mxu0 %v4936
    %7036 = vmatprep.subr.bf16.mxu0 %v4935
    %7037 = vmatpush1.bf16.msra.mxu0 %v4934
    %7038 = vmatprep.subr.bf16.mxu0 %v4933
    %7039 = vmatpush1.bf16.msra.mxu0 %v4932
    %7040 = vmatprep.subr.bf16.mxu0 %v4931
    %7041 = vmatpush1.bf16.msra.mxu0 %v4930
    %7042 = vmatprep.subr.bf16.mxu0 %v4929
    %7043 = vmatpush1.bf16.msra.mxu0 %v4928
    %7044 = vmatprep.subr.bf16.mxu0 %v4927
    %7045 = vmatpush1.bf16.msra.mxu0 %v4926
    %7046 = vmatprep.subr.bf16.mxu0 %v4957
    %7047 = vmatpush2.bf16.msra.mxu0 %v4956
    %7048 = vmatprep.subr.bf16.mxu0 %v4955
    %7049 = vmatpush2.bf16.msra.mxu0 %v4954
    %7050 = vmatprep.subr.bf16.mxu0 %v4953
    %7051 = vmatpush2.bf16.msra.mxu0 %v4952
    %7052 = vmatprep.subr.bf16.mxu0 %v4951
    %7053 = vmatpush2.bf16.msra.mxu0 %v4950
    %7054 = vmatprep.subr.bf16.mxu0 %v4949
    %7055 = vmatpush2.bf16.msra.mxu0 %v4948
    %7056 = vmatprep.subr.bf16.mxu0 %v4947
    %7057 = vmatpush2.bf16.msra.mxu0 %v4946
    %7058 = vmatprep.subr.bf16.mxu0 %v4945
    %7059 = vmatpush2.bf16.msra.mxu0 %v4944
    %7060 = vmatprep.subr.bf16.mxu0 %v4943
    %7061 = vmatpush2.bf16.msra.mxu0 %v4942
    %7062 = vmatprep.mubr.bf16.mxu0 %v1257
    %7063 = vmatmul.mubr.bf16.gmra.mxu0 %v1256
    %v7064 = vpop.f32.mrf.mxu0
    %v7065 = vadd.f32 %v7024, %v7064
    %v7066 = vpop.f32.mrf.mxu0
    %v7067 = vadd.f32 %v7026, %v7066
    %v7068 = vpop.f32.mrf.mxu0
    %v7069 = vpop.f32.mrf.mxu0
    %7070 = vdwg.mxu0
    %7071 = vmatprep.subr.bf16.mxu0 %v4973
    %7072 = vmatpush1.bf16.msra.mxu0 %v4972
    %7073 = vmatprep.subr.bf16.mxu0 %v4971
    %7074 = vmatpush1.bf16.msra.mxu0 %v4970
    %7075 = vmatprep.subr.bf16.mxu0 %v4969
    %7076 = vmatpush1.bf16.msra.mxu0 %v4968
    %7077 = vmatprep.subr.bf16.mxu0 %v4967
    %7078 = vmatpush1.bf16.msra.mxu0 %v4966
    %7079 = vmatprep.subr.bf16.mxu0 %v4965
    %7080 = vmatpush1.bf16.msra.mxu0 %v4964
    %7081 = vmatprep.subr.bf16.mxu0 %v4963
    %7082 = vmatpush1.bf16.msra.mxu0 %v4962
    %7083 = vmatprep.subr.bf16.mxu0 %v4961
    %7084 = vmatpush1.bf16.msra.mxu0 %v4960
    %7085 = vmatprep.subr.bf16.mxu0 %v4959
    %7086 = vmatpush1.bf16.msra.mxu0 %v4958
    %7087 = vmatprep.subr.bf16.mxu0 %v4989
    %7088 = vmatpush2.bf16.msra.mxu0 %v4988
    %7089 = vmatprep.subr.bf16.mxu0 %v4987
    %7090 = vmatpush2.bf16.msra.mxu0 %v4986
    %7091 = vmatprep.subr.bf16.mxu0 %v4985
    %7092 = vmatpush2.bf16.msra.mxu0 %v4984
    %7093 = vmatprep.subr.bf16.mxu0 %v4983
    %7094 = vmatpush2.bf16.msra.mxu0 %v4982
    %7095 = vmatprep.subr.bf16.mxu0 %v4981
    %7096 = vmatpush2.bf16.msra.mxu0 %v4980
    %7097 = vmatprep.subr.bf16.mxu0 %v4979
    %7098 = vmatpush2.bf16.msra.mxu0 %v4978
    %7099 = vmatprep.subr.bf16.mxu0 %v4977
    %7100 = vmatpush2.bf16.msra.mxu0 %v4976
    %7101 = vmatprep.subr.bf16.mxu0 %v4975
    %7102 = vmatpush2.bf16.msra.mxu0 %v4974
    %7103 = vmatprep.mubr.bf16.mxu0 %v1259
    %7104 = vmatmul.mubr.bf16.gmra.mxu0 %v1258
    %v7105 = vpop.f32.mrf.mxu0
    %v7106 = vadd.f32 %v7065, %v7105
    %v7107 = vpop.f32.mrf.mxu0
    %v7108 = vadd.f32 %v7067, %v7107
    %v7109 = vpop.f32.mrf.mxu0
    %v7110 = vpop.f32.mrf.mxu0
    %7111 = vdwg.mxu0
    %7112 = vmatprep.subr.bf16.mxu0 %v5005
    %7113 = vmatpush1.bf16.msra.mxu0 %v5004
    %7114 = vmatprep.subr.bf16.mxu0 %v5003
    %7115 = vmatpush1.bf16.msra.mxu0 %v5002
    %7116 = vmatprep.subr.bf16.mxu0 %v5001
    %7117 = vmatpush1.bf16.msra.mxu0 %v5000
    %7118 = vmatprep.subr.bf16.mxu0 %v4999
    %7119 = vmatpush1.bf16.msra.mxu0 %v4998
    %7120 = vmatprep.subr.bf16.mxu0 %v4997
    %7121 = vmatpush1.bf16.msra.mxu0 %v4996
    %7122 = vmatprep.subr.bf16.mxu0 %v4995
    %7123 = vmatpush1.bf16.msra.mxu0 %v4994
    %7124 = vmatprep.subr.bf16.mxu0 %v4993
    %7125 = vmatpush1.bf16.msra.mxu0 %v4992
    %7126 = vmatprep.subr.bf16.mxu0 %v4991
    %7127 = vmatpush1.bf16.msra.mxu0 %v4990
    %7128 = vmatprep.subr.bf16.mxu0 %v5021
    %7129 = vmatpush2.bf16.msra.mxu0 %v5020
    %7130 = vmatprep.subr.bf16.mxu0 %v5019
    %7131 = vmatpush2.bf16.msra.mxu0 %v5018
    %7132 = vmatprep.subr.bf16.mxu0 %v5017
    %7133 = vmatpush2.bf16.msra.mxu0 %v5016
    %7134 = vmatprep.subr.bf16.mxu0 %v5015
    %7135 = vmatpush2.bf16.msra.mxu0 %v5014
    %7136 = vmatprep.subr.bf16.mxu0 %v5013
    %7137 = vmatpush2.bf16.msra.mxu0 %v5012
    %7138 = vmatprep.subr.bf16.mxu0 %v5011
    %7139 = vmatpush2.bf16.msra.mxu0 %v5010
    %7140 = vmatprep.subr.bf16.mxu0 %v5009
    %7141 = vmatpush2.bf16.msra.mxu0 %v5008
    %7142 = vmatprep.subr.bf16.mxu0 %v5007
    %7143 = vmatpush2.bf16.msra.mxu0 %v5006
    %7144 = vmatprep.mubr.bf16.mxu0 %v1261
    %7145 = vmatmul.mubr.bf16.gmra.mxu0 %v1260
    %v7146 = vpop.f32.mrf.mxu0
    %v7147 = vadd.f32 %v7106, %v7146
    %v7148 = vpop.f32.mrf.mxu0
    %v7149 = vadd.f32 %v7108, %v7148
    %v7150 = vpop.f32.mrf.mxu0
    %v7151 = vpop.f32.mrf.mxu0
    %7152 = vdwg.mxu0
    %7153 = vmatprep.subr.bf16.mxu0 %v5037
    %7154 = vmatpush1.bf16.msra.mxu0 %v5036
    %7155 = vmatprep.subr.bf16.mxu0 %v5035
    %7156 = vmatpush1.bf16.msra.mxu0 %v5034
    %7157 = vmatprep.subr.bf16.mxu0 %v5033
    %7158 = vmatpush1.bf16.msra.mxu0 %v5032
    %7159 = vmatprep.subr.bf16.mxu0 %v5031
    %7160 = vmatpush1.bf16.msra.mxu0 %v5030
    %7161 = vmatprep.subr.bf16.mxu0 %v5029
    %7162 = vmatpush1.bf16.msra.mxu0 %v5028
    %7163 = vmatprep.subr.bf16.mxu0 %v5027
    %7164 = vmatpush1.bf16.msra.mxu0 %v5026
    %7165 = vmatprep.subr.bf16.mxu0 %v5025
    %7166 = vmatpush1.bf16.msra.mxu0 %v5024
    %7167 = vmatprep.subr.bf16.mxu0 %v5023
    %7168 = vmatpush1.bf16.msra.mxu0 %v5022
    %7169 = vmatprep.subr.bf16.mxu0 %v5053
    %7170 = vmatpush2.bf16.msra.mxu0 %v5052
    %7171 = vmatprep.subr.bf16.mxu0 %v5051
    %7172 = vmatpush2.bf16.msra.mxu0 %v5050
    %7173 = vmatprep.subr.bf16.mxu0 %v5049
    %7174 = vmatpush2.bf16.msra.mxu0 %v5048
    %7175 = vmatprep.subr.bf16.mxu0 %v5047
    %7176 = vmatpush2.bf16.msra.mxu0 %v5046
    %7177 = vmatprep.subr.bf16.mxu0 %v5045
    %7178 = vmatpush2.bf16.msra.mxu0 %v5044
    %7179 = vmatprep.subr.bf16.mxu0 %v5043
    %7180 = vmatpush2.bf16.msra.mxu0 %v5042
    %7181 = vmatprep.subr.bf16.mxu0 %v5041
    %7182 = vmatpush2.bf16.msra.mxu0 %v5040
    %7183 = vmatprep.subr.bf16.mxu0 %v5039
    %7184 = vmatpush2.bf16.msra.mxu0 %v5038
    %7185 = vmatprep.mubr.bf16.mxu0 %v1263
    %7186 = vmatmul.mubr.bf16.gmra.mxu0 %v1262
    %v7187 = vpop.f32.mrf.mxu0
    %v7188 = vadd.f32 %v7147, %v7187
    %v7189 = vpop.f32.mrf.mxu0
    %v7190 = vadd.f32 %v7149, %v7189
    %v7191 = vpop.f32.mrf.mxu0
    %v7192 = vpop.f32.mrf.mxu0
    %7193 = vdwg.mxu0
    %7194 = vmatprep.subr.bf16.mxu0 %v5069
    %7195 = vmatpush1.bf16.msra.mxu0 %v5068
    %7196 = vmatprep.subr.bf16.mxu0 %v5067
    %7197 = vmatpush1.bf16.msra.mxu0 %v5066
    %7198 = vmatprep.subr.bf16.mxu0 %v5065
    %7199 = vmatpush1.bf16.msra.mxu0 %v5064
    %7200 = vmatprep.subr.bf16.mxu0 %v5063
    %7201 = vmatpush1.bf16.msra.mxu0 %v5062
    %7202 = vmatprep.subr.bf16.mxu0 %v5061
    %7203 = vmatpush1.bf16.msra.mxu0 %v5060
    %7204 = vmatprep.subr.bf16.mxu0 %v5059
    %7205 = vmatpush1.bf16.msra.mxu0 %v5058
    %7206 = vmatprep.subr.bf16.mxu0 %v5057
    %7207 = vmatpush1.bf16.msra.mxu0 %v5056
    %7208 = vmatprep.subr.bf16.mxu0 %v5055
    %7209 = vmatpush1.bf16.msra.mxu0 %v5054
    %7210 = vmatprep.subr.bf16.mxu0 %v5085
    %7211 = vmatpush2.bf16.msra.mxu0 %v5084
    %7212 = vmatprep.subr.bf16.mxu0 %v5083
    %7213 = vmatpush2.bf16.msra.mxu0 %v5082
    %7214 = vmatprep.subr.bf16.mxu0 %v5081
    %7215 = vmatpush2.bf16.msra.mxu0 %v5080
    %7216 = vmatprep.subr.bf16.mxu0 %v5079
    %7217 = vmatpush2.bf16.msra.mxu0 %v5078
    %7218 = vmatprep.subr.bf16.mxu0 %v5077
    %7219 = vmatpush2.bf16.msra.mxu0 %v5076
    %7220 = vmatprep.subr.bf16.mxu0 %v5075
    %7221 = vmatpush2.bf16.msra.mxu0 %v5074
    %7222 = vmatprep.subr.bf16.mxu0 %v5073
    %7223 = vmatpush2.bf16.msra.mxu0 %v5072
    %7224 = vmatprep.subr.bf16.mxu0 %v5071
    %7225 = vmatpush2.bf16.msra.mxu0 %v5070
    %7226 = vmatprep.mubr.bf16.mxu0 %v1265
    %7227 = vmatmul.mubr.bf16.gmra.mxu0 %v1264
    %v7228 = vpop.f32.mrf.mxu0
    %v7229 = vadd.f32 %v7188, %v7228
    %v7230 = vpop.f32.mrf.mxu0
    %v7231 = vadd.f32 %v7190, %v7230
    %v7232 = vpop.f32.mrf.mxu0
    %v7233 = vpop.f32.mrf.mxu0
    %7234 = vdwg.mxu0
    %7235 = vmatprep.subr.bf16.mxu0 %v5101
    %7236 = vmatpush1.bf16.msra.mxu0 %v5100
    %7237 = vmatprep.subr.bf16.mxu0 %v5099
    %7238 = vmatpush1.bf16.msra.mxu0 %v5098
    %7239 = vmatprep.subr.bf16.mxu0 %v5097
    %7240 = vmatpush1.bf16.msra.mxu0 %v5096
    %7241 = vmatprep.subr.bf16.mxu0 %v5095
    %7242 = vmatpush1.bf16.msra.mxu0 %v5094
    %7243 = vmatprep.subr.bf16.mxu0 %v5093
    %7244 = vmatpush1.bf16.msra.mxu0 %v5092
    %7245 = vmatprep.subr.bf16.mxu0 %v5091
    %7246 = vmatpush1.bf16.msra.mxu0 %v5090
    %7247 = vmatprep.subr.bf16.mxu0 %v5089
    %7248 = vmatpush1.bf16.msra.mxu0 %v5088
    %7249 = vmatprep.subr.bf16.mxu0 %v5087
    %7250 = vmatpush1.bf16.msra.mxu0 %v5086
    %7251 = vmatprep.subr.bf16.mxu0 0
    %7252 = vmatpush2.bf16.msra.mxu0 0
    %7253 = vmatprep.subr.bf16.mxu0 0
    %7254 = vmatpush2.bf16.msra.mxu0 0
    %7255 = vmatprep.subr.bf16.mxu0 0
    %7256 = vmatpush2.bf16.msra.mxu0 0
    %7257 = vmatprep.subr.bf16.mxu0 0
    %7258 = vmatpush2.bf16.msra.mxu0 0
    %7259 = vmatprep.subr.bf16.mxu0 0
    %7260 = vmatpush2.bf16.msra.mxu0 0
    %7261 = vmatprep.subr.bf16.mxu0 0
    %7262 = vmatpush2.bf16.msra.mxu0 0
    %7263 = vmatprep.subr.bf16.mxu0 0
    %7264 = vmatpush2.bf16.msra.mxu0 0
    %7265 = vmatprep.subr.bf16.mxu0 0
    %7266 = vmatpush2.bf16.msra.mxu0 0
    %7267 = vmatprep.mubr.bf16.mxu0 0
    %7268 = vmatmul.mubr.bf16.gmra.mxu0 %v1266
    %v7269 = vpop.f32.mrf.mxu0
    %v7270 = vadd.f32 %v7229, %v7269
    %v7271 = vpop.f32.mrf.mxu0
    %v7272 = vadd.f32 %v7231, %v7271
    %v7273 = vpop.f32.mrf.mxu0
    %v7274 = vpop.f32.mrf.mxu0
    %7275 = vdwg.mxu0
    %v7276 = vmax.f32 %v7270, 0.0
    %v7277 = vmax.f32 %v7272, 0.0
    %v7278 = vpack.c.bf16 %v7276, %v7276
    %v7279 = vpack.c.bf16 %v7277, %v7277
    %v7280 = vld [vmem:[#allocation8] sm:$0xf]
    %v7281 = vld [vmem:[#allocation8 + $0x4] sm:$0xf]
    %v7282 = vld [vmem:[#allocation8 + $0x8] sm:$0xf]
    %v7283 = vld [vmem:[#allocation8 + $0xc] sm:$0xf]
    %v7284 = vld [vmem:[#allocation8 + $0x10] sm:$0xf]
    %v7285 = vld [vmem:[#allocation8 + $0x14] sm:$0xf]
    %v7286 = vld [vmem:[#allocation8 + $0x18] sm:$0xf]
    %v7287 = vld [vmem:[#allocation8 + $0x1c] sm:$0xf]
    %v7288 = vld [vmem:[#allocation8 + $0x20] sm:$0xf]
    %v7289 = vld [vmem:[#allocation8 + $0x24] sm:$0xf]
    %v7290 = vld [vmem:[#allocation8 + $0x28] sm:$0xf]
    %v7291 = vld [vmem:[#allocation8 + $0x2c] sm:$0xf]
    %v7292 = vld [vmem:[#allocation8 + $0x30] sm:$0xf]
    %v7293 = vld [vmem:[#allocation8 + $0x34] sm:$0xf]
    %v7294 = vld [vmem:[#allocation8 + $0x38] sm:$0xf]
    %v7295 = vld [vmem:[#allocation8 + $0x3c] sm:$0xf]
    %v7296 = vld [vmem:[#allocation8 + $0x40] sm:$0xf]
    %v7297 = vld [vmem:[#allocation8 + $0x44] sm:$0xf]
    %v7298 = vld [vmem:[#allocation8 + $0x48] sm:$0xf]
    %v7299 = vld [vmem:[#allocation8 + $0x4c] sm:$0xf]
    %v7300 = vld [vmem:[#allocation8 + $0x50] sm:$0xf]
    %v7301 = vld [vmem:[#allocation8 + $0x54] sm:$0xf]
    %v7302 = vld [vmem:[#allocation8 + $0x58] sm:$0xf]
    %v7303 = vld [vmem:[#allocation8 + $0x5c] sm:$0xf]
    %v7304 = vld [vmem:[#allocation8 + $0x60] sm:$0xf]
    %v7305 = vld [vmem:[#allocation8 + $0x64] sm:$0xf]
    %v7306 = vld [vmem:[#allocation8 + $0x68] sm:$0xf]
    %v7307 = vld [vmem:[#allocation8 + $0x6c] sm:$0xf]
    %v7308 = vld [vmem:[#allocation8 + $0x70] sm:$0xf]
    %v7309 = vld [vmem:[#allocation8 + $0x74] sm:$0xf]
    %v7310 = vld [vmem:[#allocation8 + $0x78] sm:$0xf]
    %v7311 = vld [vmem:[#allocation8 + $0x7c] sm:$0xf]
    %v7312 = vld [vmem:[#allocation10] sm:$0x1]
    %v7314 = vlaneseq
    %v7315 = vshrl.u32 %v7314, 7
    %v7316 = vsub.s32 0, %v7315
    %v7317 = vrot.slane %v7312, %v7316
    %v7351 = vunpack.c.l.b16 %v7280
    %v7352 = vunpack.c.l.b16 %v7281
    %v7353 = vunpack.c.l.b16 %v7282
    %v7354 = vunpack.c.l.b16 %v7283
    %v7355 = vunpack.c.l.b16 %v7284
    %v7356 = vunpack.c.l.b16 %v7285
    %v7357 = vunpack.c.l.b16 %v7286
    %v7358 = vunpack.c.l.b16 %v7287
    %v7359 = vunpack.c.l.b16 %v7288
    %v7360 = vunpack.c.l.b16 %v7289
    %v7361 = vunpack.c.l.b16 %v7290
    %v7362 = vunpack.c.l.b16 %v7291
    %v7363 = vunpack.c.l.b16 %v7292
    %v7364 = vunpack.c.l.b16 %v7293
    %v7365 = vunpack.c.l.b16 %v7294
    %v7366 = vunpack.c.l.b16 %v7295
    %v7367 = vunpack.c.l.b16 %v7296
    %v7368 = vunpack.c.l.b16 %v7297
    %v7369 = vunpack.c.l.b16 %v7298
    %v7370 = vunpack.c.l.b16 %v7299
    %v7371 = vunpack.c.l.b16 %v7300
    %v7372 = vunpack.c.l.b16 %v7301
    %v7373 = vunpack.c.l.b16 %v7302
    %v7374 = vunpack.c.l.b16 %v7303
    %v7375 = vunpack.c.l.b16 %v7304
    %v7376 = vunpack.c.l.b16 %v7305
    %v7377 = vunpack.c.l.b16 %v7306
    %v7378 = vunpack.c.l.b16 %v7307
    %v7379 = vunpack.c.l.b16 %v7308
    %v7380 = vunpack.c.l.b16 %v7309
    %v7381 = vunpack.c.l.b16 %v7310
    %v7382 = vunpack.c.l.b16 %v7311
    %v7383 = vpack.c.b16 %v7352, %v7351
    %v7384 = vpack.c.b16 %v7354, %v7353
    %v7385 = vpack.c.b16 %v7356, %v7355
    %v7386 = vpack.c.b16 %v7358, %v7357
    %v7387 = vpack.c.b16 %v7360, %v7359
    %v7388 = vpack.c.b16 %v7362, %v7361
    %v7389 = vpack.c.b16 %v7364, %v7363
    %v7390 = vpack.c.b16 %v7366, %v7365
    %v7391 = vpack.c.b16 %v7368, %v7367
    %v7392 = vpack.c.b16 %v7370, %v7369
    %v7393 = vpack.c.b16 %v7372, %v7371
    %v7394 = vpack.c.b16 %v7374, %v7373
    %v7395 = vpack.c.b16 %v7376, %v7375
    %v7396 = vpack.c.b16 %v7378, %v7377
    %v7397 = vpack.c.b16 %v7380, %v7379
    %v7398 = vpack.c.b16 %v7382, %v7381
    %7415 = vmatprep.subr.bf16.mxu0 0
    %7416 = vmatpush1.bf16.msra.mxu0 %v7390
    %7417 = vmatprep.subr.bf16.mxu0 0
    %7418 = vmatpush1.bf16.msra.mxu0 %v7389
    %7419 = vmatprep.subr.bf16.mxu0 0
    %7420 = vmatpush1.bf16.msra.mxu0 %v7388
    %7421 = vmatprep.subr.bf16.mxu0 0
    %7422 = vmatpush1.bf16.msra.mxu0 %v7387
    %7423 = vmatprep.subr.bf16.mxu0 0
    %7424 = vmatpush1.bf16.msra.mxu0 %v7386
    %7425 = vmatprep.subr.bf16.mxu0 0
    %7426 = vmatpush1.bf16.msra.mxu0 %v7385
    %7427 = vmatprep.subr.bf16.mxu0 0
    %7428 = vmatpush1.bf16.msra.mxu0 %v7384
    %7429 = vmatprep.subr.bf16.mxu0 0
    %7430 = vmatpush1.bf16.msra.mxu0 %v7383
    %7431 = vmatprep.subr.bf16.mxu0 0
    %7432 = vmatpush2.bf16.msra.mxu0 %v7398
    %7433 = vmatprep.subr.bf16.mxu0 0
    %7434 = vmatpush2.bf16.msra.mxu0 %v7397
    %7435 = vmatprep.subr.bf16.mxu0 0
    %7436 = vmatpush2.bf16.msra.mxu0 %v7396
    %7437 = vmatprep.subr.bf16.mxu0 0
    %7438 = vmatpush2.bf16.msra.mxu0 %v7395
    %7439 = vmatprep.subr.bf16.mxu0 0
    %7440 = vmatpush2.bf16.msra.mxu0 %v7394
    %7441 = vmatprep.subr.bf16.mxu0 0
    %7442 = vmatpush2.bf16.msra.mxu0 %v7393
    %7443 = vmatprep.subr.bf16.mxu0 0
    %7444 = vmatpush2.bf16.msra.mxu0 %v7392
    %7445 = vmatprep.subr.bf16.mxu0 0
    %7446 = vmatpush2.bf16.msra.mxu0 %v7391
    %7447 = vmatprep.mubr.bf16.mxu0 %v7279
    %7448 = vmatmul.mubr.bf16.gmra.mxu0 %v7278
    %v7449 = vpop.f32.mrf.mxu0
    %v7450 = vadd.f32 %v7317, %v7449
    %v7451 = vpop.f32.mrf.mxu0
    %v7452 = vpop.f32.mrf.mxu0
    %v7453 = vpop.f32.mrf.mxu0
    %7454 = vdwg.mxu0
    %v7455 = vmax.f32 %v7450, 0.0
    %v7456 = vpack.c.bf16 %v7455, %v7455
    %v7457 = vld [vmem:[%s5] sm:$0xf]
    %v7458 = vld [vmem:[%s5 + $0x4] sm:$0xf]
    %v7459 = vld [vmem:[%s5 + $0x8] sm:$0xf]
    %v7460 = vld [vmem:[%s5 + $0xc] sm:$0xf]
    %v7461 = vld [vmem:[%s5 + $0x10] sm:$0xf]
    %v7462 = vld [vmem:[%s5 + $0x14] sm:$0xf]
    %v7463 = vld [vmem:[%s5 + $0x18] sm:$0xf]
    %v7464 = vld [vmem:[%s5 + $0x1c] sm:$0xf]
    %v7465 = vld [vmem:[%s5 + $0x20] sm:$0xf]
    %v7466 = vld [vmem:[%s5 + $0x24] sm:$0xf]
    %v7467 = vld [vmem:[%s5 + $0x28] sm:$0xf]
    %v7468 = vld [vmem:[%s5 + $0x2c] sm:$0xf]
    %v7469 = vld [vmem:[%s5 + $0x30] sm:$0xf]
    %v7470 = vld [vmem:[%s5 + $0x34] sm:$0xf]
    %v7471 = vld [vmem:[%s5 + $0x38] sm:$0xf]
    %v7472 = vld [vmem:[%s5 + $0x3c] sm:$0xf]
    %v7473 = vld [vmem:[#allocation11] sm:$0x1]
    %v7475 = vlaneseq
    %v7476 = vshrl.u32 %v7475, 7
    %v7477 = vsub.s32 0, %v7476
    %v7478 = vrot.slane %v7473, %v7477
    %v7496 = vunpack.c.l.b16 %v7457
    %v7497 = vunpack.c.l.b16 %v7458
    %v7498 = vunpack.c.l.b16 %v7459
    %v7499 = vunpack.c.l.b16 %v7460
    %v7500 = vunpack.c.l.b16 %v7461
    %v7501 = vunpack.c.l.b16 %v7462
    %v7502 = vunpack.c.l.b16 %v7463
    %v7503 = vunpack.c.l.b16 %v7464
    %v7504 = vunpack.c.l.b16 %v7465
    %v7505 = vunpack.c.l.b16 %v7466
    %v7506 = vunpack.c.l.b16 %v7467
    %v7507 = vunpack.c.l.b16 %v7468
    %v7508 = vunpack.c.l.b16 %v7469
    %v7509 = vunpack.c.l.b16 %v7470
    %v7510 = vunpack.c.l.b16 %v7471
    %v7511 = vunpack.c.l.b16 %v7472
    %v7512 = vpack.c.b16 %v7497, %v7496
    %v7513 = vpack.c.b16 %v7499, %v7498
    %v7514 = vpack.c.b16 %v7501, %v7500
    %v7515 = vpack.c.b16 %v7503, %v7502
    %v7516 = vpack.c.b16 %v7505, %v7504
    %v7517 = vpack.c.b16 %v7507, %v7506
    %v7518 = vpack.c.b16 %v7509, %v7508
    %v7519 = vpack.c.b16 %v7511, %v7510
    %7528 = vmatprep.subr.bf16.mxu0 0
    %7529 = vmatpush1.bf16.msra.mxu0 %v7519
    %7530 = vmatprep.subr.bf16.mxu0 0
    %7531 = vmatpush1.bf16.msra.mxu0 %v7518
    %7532 = vmatprep.subr.bf16.mxu0 0
    %7533 = vmatpush1.bf16.msra.mxu0 %v7517
    %7534 = vmatprep.subr.bf16.mxu0 0
    %7535 = vmatpush1.bf16.msra.mxu0 %v7516
    %7536 = vmatprep.subr.bf16.mxu0 0
    %7537 = vmatpush1.bf16.msra.mxu0 %v7515
    %7538 = vmatprep.subr.bf16.mxu0 0
    %7539 = vmatpush1.bf16.msra.mxu0 %v7514
    %7540 = vmatprep.subr.bf16.mxu0 0
    %7541 = vmatpush1.bf16.msra.mxu0 %v7513
    %7542 = vmatprep.subr.bf16.mxu0 0
    %7543 = vmatpush1.bf16.msra.mxu0 %v7512
    %7544 = vmatprep.subr.bf16.mxu0 0
    %7545 = vmatpush2.bf16.msra.mxu0 0
    %7546 = vmatprep.subr.bf16.mxu0 0
    %7547 = vmatpush2.bf16.msra.mxu0 0
    %7548 = vmatprep.subr.bf16.mxu0 0
    %7549 = vmatpush2.bf16.msra.mxu0 0
    %7550 = vmatprep.subr.bf16.mxu0 0
    %7551 = vmatpush2.bf16.msra.mxu0 0
    %7552 = vmatprep.subr.bf16.mxu0 0
    %7553 = vmatpush2.bf16.msra.mxu0 0
    %7554 = vmatprep.subr.bf16.mxu0 0
    %7555 = vmatpush2.bf16.msra.mxu0 0
    %7556 = vmatprep.subr.bf16.mxu0 0
    %7557 = vmatpush2.bf16.msra.mxu0 0
    %7558 = vmatprep.subr.bf16.mxu0 0
    %7559 = vmatpush2.bf16.msra.mxu0 0
    %7560 = vmatprep.mubr.bf16.mxu0 0
    %7561 = vmatmul.mubr.bf16.gmra.mxu0 %v7456
    %v7562 = vpop.f32.mrf.mxu0
    %v7563 = vadd.f32 %v7478, %v7562
    %v7564 = vpop.f32.mrf.mxu0
    %v7565 = vpop.f32.mrf.mxu0
    %v7566 = vpop.f32.mrf.mxu0
    %7567 = vdwg.mxu0
    %v7568 = vmax.f32 %v7563, 0.0
    %v7569 = vpack.c.bf16 %v7568, %v7568
    %v7570 = vld [vmem:[#allocation13] sm:$0xf]
    %v7571 = vld [vmem:[#allocation13 + $0x4] sm:$0xf]
    %v7572 = vld [vmem:[#allocation13 + $0x8] sm:$0xf]
    %v7573 = vld [vmem:[#allocation13 + $0xc] sm:$0xf]
    %v7574 = vld [vmem:[#allocation13 + $0x10] sm:$0xf]
    %v7575 = vld [vmem:[#allocation13 + $0x14] sm:$0xf]
    %v7576 = vld [vmem:[#allocation13 + $0x18] sm:$0xf]
    %v7577 = vld [vmem:[#allocation13 + $0x1c] sm:$0xf]
    %v7578 = vld [vmem:[#allocation14] sm:$0x1]
    %v7580 = vlaneseq
    %v7581 = vshrl.u32 %v7580, 7
    %v7582 = vsub.s32 0, %v7581
    %v7583 = vrot.slane %v7578, %v7582
    %v7593 = vunpack.c.l.b16 %v7570
    %v7594 = vunpack.c.l.b16 %v7571
    %v7595 = vunpack.c.l.b16 %v7572
    %v7596 = vunpack.c.l.b16 %v7573
    %v7597 = vunpack.c.l.b16 %v7574
    %v7598 = vunpack.c.l.b16 %v7575
    %v7599 = vunpack.c.l.b16 %v7576
    %v7600 = vunpack.c.l.b16 %v7577
    %v7601 = vpack.c.b16 %v7594, %v7593
    %v7602 = vpack.c.b16 %v7596, %v7595
    %v7603 = vpack.c.b16 %v7598, %v7597
    %v7604 = vpack.c.b16 %v7600, %v7599
    %vm7609 = vcmask 523264
    %v7611 = vsel %vm7609, %v7569, 0
    %7613 = vmatprep.subr.bf16.mxu0 0
    %7614 = vmatpush1.bf16.msra.mxu0 0
    %7615 = vmatprep.subr.bf16.mxu0 0
    %7616 = vmatpush1.bf16.msra.mxu0 0
    %7617 = vmatprep.subr.bf16.mxu0 0
    %7618 = vmatpush1.bf16.msra.mxu0 0
    %7619 = vmatprep.subr.bf16.mxu0 0
    %7620 = vmatpush1.bf16.msra.mxu0 0
    %7621 = vmatprep.subr.bf16.mxu0 0
    %7622 = vmatpush1.bf16.msra.mxu0 %v7604
    %7623 = vmatprep.subr.bf16.mxu0 0
    %7624 = vmatpush1.bf16.msra.mxu0 %v7603
    %7625 = vmatprep.subr.bf16.mxu0 0
    %7626 = vmatpush1.bf16.msra.mxu0 %v7602
    %7627 = vmatprep.subr.bf16.mxu0 0
    %7628 = vmatpush1.bf16.msra.mxu0 %v7601
    %7629 = vmatprep.subr.bf16.mxu0 0
    %7630 = vmatpush2.bf16.msra.mxu0 0
    %7631 = vmatprep.subr.bf16.mxu0 0
    %7632 = vmatpush2.bf16.msra.mxu0 0
    %7633 = vmatprep.subr.bf16.mxu0 0
    %7634 = vmatpush2.bf16.msra.mxu0 0
    %7635 = vmatprep.subr.bf16.mxu0 0
    %7636 = vmatpush2.bf16.msra.mxu0 0
    %7637 = vmatprep.subr.bf16.mxu0 0
    %7638 = vmatpush2.bf16.msra.mxu0 0
    %7639 = vmatprep.subr.bf16.mxu0 0
    %7640 = vmatpush2.bf16.msra.mxu0 0
    %7641 = vmatprep.subr.bf16.mxu0 0
    %7642 = vmatpush2.bf16.msra.mxu0 0
    %7643 = vmatprep.subr.bf16.mxu0 0
    %7644 = vmatpush2.bf16.msra.mxu0 0
    %7645 = vmatprep.mubr.bf16.mxu0 0
    %7646 = vmatmul.mubr.bf16.gmra.mxu0 %v7611
    %v7647 = vpop.f32.mrf.mxu0
    %v7648 = vadd.f32 %v7583, %v7647
    %v7649 = vpop.f32.mrf.mxu0
    %v7650 = vpop.f32.mrf.mxu0
    %v7651 = vpop.f32.mrf.mxu0
    %7652 = vdwg.mxu0
    %7653 = vst [vmem:[#allocation16] sm:$0xff] %v7648
    // Predicated region
    $region70: #{tpu_custom_call.1} parent=1 // pred_check
      _
    $region71: #{tpu_custom_call.1} parent=1 // pred_check_branch
      %7655 = sbr.rel (0) target = $region73
    $region72: #{tpu_custom_call.1} parent=1 // pred_region
      %s7657 = ssub.s32 128, 128
      %7658 = vsyncadd [#allocation4], %s7657
      %s7660 = sshll.u32 [#allocation16], 4
      %s7661 = int_to_ptr.vmem [resolvable:$true] %s7660
      %7663 = dma.vmem_to_hbm [thread:$0]  %s7661, 128, %s9, [#allocation4]
    $region73: #{tpu_custom_call.1} parent=1 // pred_fallthru
      _
    // Predicated region
    $region74: #{tpu_custom_call.1} parent=1 // pred_check
      _
    $region75: #{tpu_custom_call.1} parent=1 // pred_check_branch
      %7665 = sbr.rel (0) target = $region77
    $region76: #{tpu_custom_call.1} parent=1 // pred_region
      %7666 = dma.done [#allocation4], 128
    $region77: #{tpu_custom_call.1} parent=1 // pred_fallthru
      _
    %7667 = vsyncpa [#allocation3], 1
    %7668 = vsyncpa [#allocation6], 1
    %7669 = vsyncpa [#allocation9], 1
    %7670 = vsyncpa [#allocation12], 1
    %7671 = vsyncpa [#allocation15], 1
    %7672 = vsyncpa [#allocation4], 1

</llo_original>
